<compile_context>
chip_gen: v7x
topology: tpu7x:2x2x1
jax: 0.10.0
libtpu: 0.0.40
codegen_flags: <defaults>
</compile_context>

<pallas_src>
import functools
import math

import jax
import jax.numpy as jnp
from jax.experimental import pallas as pl
from jax.experimental.pallas import tpu as pltpu

BN_EPS = 1e-5
NEG_SLOPE = 0.1
SUBLANE = 8
ACC_BUDGET_BYTES = 2 * 1024 * 1024  # per-step f32 accumulator budget


def _round_up(x, m):
    return ((x + m - 1) // m) * m


def _vmem_limit_bytes():
    # 96 MiB on v5e/v6e (128 MiB physical VMEM), ~48 MiB ceiling on v7x (64 MiB).
    try:
        cap = getattr(pltpu.get_tpu_info(), "vmem_capacity_bytes", None)
        if cap:
            return int(min(96 * 1024 * 1024, (int(cap) * 3) // 4))
    except Exception:
        pass
    return 48 * 1024 * 1024


VMEM_LIMIT = _vmem_limit_bytes()


def _pick_row_tile(ho, wo, cin, cout):
    """Largest divisor of Ho keeping the f32 accumulator under the budget."""
    per_row = wo * max(cin, cout) * 4
    cap = max(1, ACC_BUDGET_BYTES // per_row)
    th = int(min(ho, cap))
    while ho % th:
        th -= 1
    return th


# ---------------------------------------------------------------------------
# Kernel A: fused "valid" stride-1 KxK conv over a pre-padded NHWC image plus
# per-channel BN pass-1 partial statistics.
#   x_ref    : (1, Hp, Wp, Cin)  bf16  (whole padded image of batch element n,
#                                       resident across the inner row-tile axis)
#   w_ref    : (K*K, Cin, Cout)  bf16  (resident)
#   y_ref    : (1, TH, Wo, Cout) bf16  conv output tile (pre-BN)
#   stats_ref: (1, 1, 2, Cout)   f32   row 0 = sum, row 1 = sum of squares
# ---------------------------------------------------------------------------
def _conv_stats_kernel(x_ref, w_ref, y_ref, stats_ref, *, K, TH, Wo):
    t = pl.program_id(1)
    Cin = x_ref.shape[3]
    Cout = w_ref.shape[2]
    # Padded-image rows needed for output rows [t*TH, t*TH + TH).
    win = x_ref[0, pl.ds(t * TH, TH + K - 1), :, :]        # (TH+K-1, Wp, Cin)
    acc = jnp.zeros((TH * Wo, Cout), jnp.float32)
    for ky in range(K):                                    # K*K shifted matmuls
        for kx in range(K):
            xs = win[ky:ky + TH, kx:kx + Wo, :].reshape(TH * Wo, Cin)
            acc = acc + jnp.dot(xs, w_ref[ky * K + kx],
                                preferred_element_type=jnp.float32)
    y_ref[...] = acc.reshape(y_ref.shape).astype(y_ref.dtype)
    # BN pass-1 partials from the f32 accumulator; only rows 0/1 are written.
    stats_ref[0, 0, 0:1, :] = jnp.sum(acc, axis=0, keepdims=True)
    stats_ref[0, 0, 1:2, :] = jnp.sum(acc * acc, axis=0, keepdims=True)


# ---------------------------------------------------------------------------
# Kernel B: final elementwise BatchNorm (pre-folded scale/shift) + LeakyReLU.
# bf16 loads, f32 math (v5e VPU has no bf16 ALU), f32 store (module output).
# ---------------------------------------------------------------------------
def _bn_lrelu_kernel(y_ref, sc_ref, sh_ref, o_ref):
    y = y_ref[...].astype(jnp.float32) * sc_ref[...] + sh_ref[...]
    o_ref[...] = jnp.where(y > 0, y, NEG_SLOPE * y)


def _conv_stage(xp, w_kcc, *, K):
    """Fused conv (pre-padded, valid, stride 1) + BN pass-1 stats."""
    N, Hp, Wp, Cin = xp.shape
    KK, _, Cout = w_kcc.shape
    Ho, Wo = Hp - K + 1, Wp - K + 1
    TH = _pick_row_tile(Ho, Wo, Cin, Cout)
    n_t = Ho // TH
    kernel = functools.partial(_conv_stats_kernel, K=K, TH=TH, Wo=Wo)
    flops = 2 * N * Ho * Wo * KK * Cin * Cout
    bytes_acc = (xp.size * 2 + w_kcc.size * 2
                 + N * Ho * Wo * Cout * 2 + N * n_t * 2 * Cout * 4)
    y, stats = pl.pallas_call(
        kernel,
        grid=(N, n_t),
        in_specs=[
            pl.BlockSpec((1, Hp, Wp, Cin), lambda n, t: (n, 0, 0, 0)),
            pl.BlockSpec((KK, Cin, Cout), lambda n, t: (0, 0, 0)),
        ],
        out_specs=(
            pl.BlockSpec((1, TH, Wo, Cout), lambda n, t: (n, t, 0, 0)),
            pl.BlockSpec((1, 1, 2, Cout), lambda n, t: (n, t, 0, 0)),
        ),
        out_shape=(
            jax.ShapeDtypeStruct((N, Ho, Wo, Cout), jnp.bfloat16),
            jax.ShapeDtypeStruct((N, n_t, 2, Cout), jnp.float32),
        ),
        compiler_params=pltpu.CompilerParams(
            dimension_semantics=("parallel", "parallel"),
            vmem_limit_bytes=VMEM_LIMIT),
        cost_estimate=pl.CostEstimate(
            flops=flops, transcendentals=0, bytes_accessed=bytes_acc),
    )(xp, w_kcc)
    return y, stats


def _fold_stats(stats, gamma, beta, count):
    """Partial (sum, sumsq) -> BN scale/shift.  Biased variance (training BN)."""
    ch_sum = jnp.sum(stats[:, :, 0, :], axis=(0, 1))
    ch_ssq = jnp.sum(stats[:, :, 1, :], axis=(0, 1))
    mean = ch_sum / float(count)
    var = jnp.maximum(ch_ssq / float(count) - mean * mean, 0.0)
    scale = gamma.astype(jnp.float32) * jax.lax.rsqrt(var + BN_EPS)
    shift = beta.astype(jnp.float32) - mean * scale
    return scale, shift


def _bn_lrelu(y, scale, shift):
    """Final-stage standalone BN-apply + LeakyReLU epilogue (f32 output)."""
    N, Ho, Wo, C = y.shape
    M = N * Ho * Wo
    tm = min(4096, _round_up(M, SUBLANE))
    yf = y.reshape(M, C)
    out = pl.pallas_call(
        _bn_lrelu_kernel,
        grid=(pl.cdiv(M, tm),),
        in_specs=[
            pl.BlockSpec((tm, C), lambda i: (i, 0)),
            pl.BlockSpec((1, C), lambda i: (0, 0)),
            pl.BlockSpec((1, C), lambda i: (0, 0)),
        ],
        out_specs=pl.BlockSpec((tm, C), lambda i: (i, 0)),
        out_shape=jax.ShapeDtypeStruct((M, C), jnp.float32),
        compiler_params=pltpu.CompilerParams(
            dimension_semantics=("parallel",),
            vmem_limit_bytes=VMEM_LIMIT),
        cost_estimate=pl.CostEstimate(
            flops=3 * M * C, transcendentals=0,
            bytes_accessed=M * C * 2 + M * C * 4 + 2 * C * 4),
    )(yf, scale.reshape(1, C), shift.reshape(1, C))
    return out.reshape(N, Ho, Wo, C)


def dis_block_forward(x_nchw, params):
    """DisBlock.forward.  Input/output layout: NCHW (matches PyTorch)."""
    x = jnp.transpose(x_nchw, (0, 2, 3, 1))                 # NCHW -> NHWC
    N, H, W, Cin = x.shape
    assert H % 2 == 0 and W % 2 == 0, "stride-2 stage assumes even H, W"

    # Conv biases ("b1"/"b2") are cancelled exactly by training-mode BN mean
    # subtraction, so they are intentionally not used in the compute.

    # ---- stage 1: conv 3x3 / s1 / p1  (+ BN1 pass-1 stats) -----------------
    C1 = params["w1"].shape[0]
    w1r = (jnp.transpose(params["w1"], (2, 3, 1, 0))        # (3,3,Cin,C1)
           .reshape(9, Cin, C1).astype(jnp.bfloat16))
    xp1 = jnp.pad(x, ((0, 0), (1, 1), (1, 1), (0, 0))).astype(jnp.bfloat16)
    y1, st1 = _conv_stage(xp1, w1r, K=3)
    sc1, sh1 = _fold_stats(st1, params["gamma1"], params["beta1"], N * H * W)

    # ---- BN1-apply + LeakyReLU + pad + space-to-depth (one fused XLA pass) --
    a = y1.astype(jnp.float32) * sc1 + sh1
    a = jnp.where(a > 0, a, NEG_SLOPE * a)
    ap = jnp.pad(a, ((0, 0), (1, 1), (1, 1), (0, 0)))
    Hp, Wp = H + 2, W + 2
    xp2 = (ap.reshape(N, Hp // 2, 2, Wp // 2, 2, C1)
             .transpose(0, 1, 3, 2, 4, 5)
             .reshape(N, Hp // 2, Wp // 2, 4 * C1)
             .astype(jnp.bfloat16))

    # ---- stage 2: conv 4x4 / s2 / p1  ==  2x2 / s1 conv on s2d layout ------
    C2 = params["w2"].shape[0]
    w2r = (jnp.transpose(params["w2"], (2, 3, 1, 0))        # (ky,kx,c,co)
           .reshape(2, 2, 2, 2, C1, C2)                     # (qy,dy,qx,dx,c,co)
           .transpose(0, 2, 1, 3, 4, 5)                     # (qy,qx,dy,dx,c,co)
           .reshape(4, 4 * C1, C2).astype(jnp.bfloat16))
    y2, st2 = _conv_stage(xp2, w2r, K=2)
    sc2, sh2 = _fold_stats(st2, params["gamma2"], params["beta2"],
                           N * (H // 2) * (W // 2))

    # ---- final BN2-apply + LeakyReLU epilogue ------------------------------
    out = _bn_lrelu(y2, sc2, sh2)
    return jnp.transpose(out, (0, 3, 1, 2))                 # NHWC -> NCHW


def init_params(key, in_channels, out_channels, scale=0.1):
    """Mirrors initialize_weights([conv1, conv2], 0.1): Kaiming normal
    (a=0, fan_in, gain=sqrt(2)) * 0.1, conv biases zeroed, BN gamma=1/beta=0."""
    k1, k2 = jax.random.split(key)
    std1 = math.sqrt(2.0 / (in_channels * 3 * 3)) * scale
    std2 = math.sqrt(2.0 / (out_channels * 4 * 4)) * scale
    return {
        "w1": jax.random.normal(k1, (out_channels, in_channels, 3, 3), jnp.float32) * std1,
        "b1": jnp.zeros((out_channels,), jnp.float32),
        "gamma1": jnp.ones((out_channels,), jnp.float32),
        "beta1": jnp.zeros((out_channels,), jnp.float32),
        "w2": jax.random.normal(k2, (out_channels, out_channels, 4, 4), jnp.float32) * std2,
        "b2": jnp.zeros((out_channels,), jnp.float32),
        "gamma2": jnp.ones((out_channels,), jnp.float32),
        "beta2": jnp.zeros((out_channels,), jnp.float32),
    }


def _ref_forward(x, p):
    """Pure-JAX f32 reference of DisBlock.forward (training-mode BN)."""
    def stage(x, w, b, gamma, beta, stride, pad):
        y = jax.lax.conv_general_dilated(
            x, w, window_strides=(stride, stride),
            padding=((pad, pad), (pad, pad)),
            dimension_numbers=("NCHW", "OIHW", "NCHW"),
            precision=jax.lax.Precision.HIGHEST)
        y = y + b.reshape(1, -1, 1, 1)
        mean = jnp.mean(y, axis=(0, 2, 3), keepdims=True)
        var = jnp.var(y, axis=(0, 2, 3), keepdims=True)     # biased
        yh = (y - mean) * jax.lax.rsqrt(var + BN_EPS)
        yh = yh * gamma.reshape(1, -1, 1, 1) + beta.reshape(1, -1, 1, 1)
        return jnp.where(yh > 0, yh, NEG_SLOPE * yh)

    x = stage(x, p["w1"], p["b1"], p["gamma1"], p["beta1"], 1, 1)
    x = stage(x, p["w2"], p["b2"], p["gamma2"], p["beta2"], 2, 1)
    return x


if __name__ == "__main__":
    key = jax.random.PRNGKey(0)
    kx, kp = jax.random.split(key)
    # Small shapes consistent with the module (module default is 64 channels).
    N, C, H, W = 2, 8, 16, 16
    x = jax.random.normal(kx, (N, C, H, W), jnp.float32)
    params = init_params(kp, in_channels=C, out_channels=C, scale=0.1)

    y = jax.jit(dis_block_forward)(x, params)
    jax.block_until_ready(y)

    # conv1 keeps spatial size (k=3, p=1); conv2 halves it (k=4, s=2, p=1).
    assert y.shape == (N, C, H // 2, W // 2), y.shape
    assert bool(jnp.all(jnp.isfinite(y)))

    # Cross-check vs. pure-JAX f32 reference (bf16 MXU inputs => loose tol).
    y_ref = jax.jit(_ref_forward)(x, params)
    err = float(jnp.max(jnp.abs(y - y_ref)))
    assert err < 1.5e-1, f"max abs err vs reference: {err}"
    print("KERNEL_OK")
</pallas_src>

<mosaic_0001>
module attributes {stable_mosaic.version = 11 : i64} {
  func.func @_conv_stats_kernel(%arg0: i32, %arg1: i32, %arg2: memref<1x18x18x8xbf16, #tpu.memory_space<vmem>>, %arg3: memref<9x8x8xbf16, #tpu.memory_space<vmem>>, %arg4: memref<1x16x16x8xbf16, #tpu.memory_space<vmem>>, %arg5: memref<1x1x2x8xf32, #tpu.memory_space<vmem>>) attributes {dimension_semantics = [#tpu.dimension_semantics<parallel>, #tpu.dimension_semantics<parallel>], iteration_bounds = array<i64: 2, 1>, scalar_prefetch = 0 : i64, scratch_operands = 0 : i64, tpu.core_type = #tpu.core_type<tc>, window_params = [{transform_indices = @transform_0, window_bounds = array<i64: 1, 18, 18, 8>}, {pipeline_mode = #tpu.pipeline_mode<synchronous>, transform_indices = @transform_1, window_bounds = array<i64: 9, 8, 8>}, {transform_indices = @transform_2, window_bounds = array<i64: 1, 16, 16, 8>}, {transform_indices = @transform_3, window_bounds = array<i64: 1, 1, 2, 8>}]} {
    %c16_i32 = arith.constant 16 : i32
    %0 = arith.muli %arg1, %c16_i32 : i32
    %c0 = arith.constant 0 : index
    %1 = arith.index_cast %0 : i32 to index
    %c0_0 = arith.constant 0 : index
    %c0_1 = arith.constant 0 : index
    %2 = vector.load %arg2[%c0, %1, %c0_0, %c0_1] : memref<1x18x18x8xbf16, #tpu.memory_space<vmem>>, vector<1x18x18x8xbf16>
    %3 = vector.shape_cast %2 : vector<1x18x18x8xbf16> to vector<18x18x8xbf16>
    %cst = arith.constant 0.000000e+00 : f32
    %4 = vector.broadcast %cst : f32 to vector<256x8xf32>
    %5 = vector.extract_strided_slice %3 {offsets = [0, 0, 0], sizes = [16, 16, 8], strides = [1, 1, 1]} : vector<18x18x8xbf16> to vector<16x16x8xbf16>
    %6 = vector.shape_cast %5 : vector<16x16x8xbf16> to vector<256x8xbf16>
    %c0_2 = arith.constant 0 : index
    %c0_3 = arith.constant 0 : index
    %c0_4 = arith.constant 0 : index
    %7 = vector.load %arg3[%c0_2, %c0_3, %c0_4] : memref<9x8x8xbf16, #tpu.memory_space<vmem>>, vector<1x8x8xbf16>
    %8 = vector.shape_cast %7 : vector<1x8x8xbf16> to vector<8x8xbf16>
    %cst_5 = arith.constant dense<0.000000e+00> : vector<256x8xf32>
    %9 = tpu.matmul %6, %8, %cst_5 {dimension_numbers = #tpu.dot_dimension_numbers<[1], [0], [0], [1], [0, 0, 1, 1], [], []>} : vector<256x8xbf16>, vector<8x8xbf16>, vector<256x8xf32> -> vector<256x8xf32>
    %10 = arith.addf %4, %9 : vector<256x8xf32>
    %11 = vector.extract_strided_slice %3 {offsets = [0, 1, 0], sizes = [16, 16, 8], strides = [1, 1, 1]} : vector<18x18x8xbf16> to vector<16x16x8xbf16>
    %12 = vector.shape_cast %11 : vector<16x16x8xbf16> to vector<256x8xbf16>
    %c1 = arith.constant 1 : index
    %c0_6 = arith.constant 0 : index
    %c0_7 = arith.constant 0 : index
    %13 = vector.load %arg3[%c1, %c0_6, %c0_7] : memref<9x8x8xbf16, #tpu.memory_space<vmem>>, vector<1x8x8xbf16>
    %14 = vector.shape_cast %13 : vector<1x8x8xbf16> to vector<8x8xbf16>
    %cst_8 = arith.constant dense<0.000000e+00> : vector<256x8xf32>
    %15 = tpu.matmul %12, %14, %cst_8 {dimension_numbers = #tpu.dot_dimension_numbers<[1], [0], [0], [1], [0, 0, 1, 1], [], []>} : vector<256x8xbf16>, vector<8x8xbf16>, vector<256x8xf32> -> vector<256x8xf32>
    %16 = arith.addf %10, %15 : vector<256x8xf32>
    %17 = vector.extract_strided_slice %3 {offsets = [0, 2, 0], sizes = [16, 16, 8], strides = [1, 1, 1]} : vector<18x18x8xbf16> to vector<16x16x8xbf16>
    %18 = vector.shape_cast %17 : vector<16x16x8xbf16> to vector<256x8xbf16>
    %c2 = arith.constant 2 : index
    %c0_9 = arith.constant 0 : index
    %c0_10 = arith.constant 0 : index
    %19 = vector.load %arg3[%c2, %c0_9, %c0_10] : memref<9x8x8xbf16, #tpu.memory_space<vmem>>, vector<1x8x8xbf16>
    %20 = vector.shape_cast %19 : vector<1x8x8xbf16> to vector<8x8xbf16>
    %cst_11 = arith.constant dense<0.000000e+00> : vector<256x8xf32>
    %21 = tpu.matmul %18, %20, %cst_11 {dimension_numbers = #tpu.dot_dimension_numbers<[1], [0], [0], [1], [0, 0, 1, 1], [], []>} : vector<256x8xbf16>, vector<8x8xbf16>, vector<256x8xf32> -> vector<256x8xf32>
    %22 = arith.addf %16, %21 : vector<256x8xf32>
    %23 = vector.extract_strided_slice %3 {offsets = [1, 0, 0], sizes = [16, 16, 8], strides = [1, 1, 1]} : vector<18x18x8xbf16> to vector<16x16x8xbf16>
    %24 = vector.shape_cast %23 : vector<16x16x8xbf16> to vector<256x8xbf16>
    %c3 = arith.constant 3 : index
    %c0_12 = arith.constant 0 : index
    %c0_13 = arith.constant 0 : index
    %25 = vector.load %arg3[%c3, %c0_12, %c0_13] : memref<9x8x8xbf16, #tpu.memory_space<vmem>>, vector<1x8x8xbf16>
    %26 = vector.shape_cast %25 : vector<1x8x8xbf16> to vector<8x8xbf16>
    %cst_14 = arith.constant dense<0.000000e+00> : vector<256x8xf32>
    %27 = tpu.matmul %24, %26, %cst_14 {dimension_numbers = #tpu.dot_dimension_numbers<[1], [0], [0], [1], [0, 0, 1, 1], [], []>} : vector<256x8xbf16>, vector<8x8xbf16>, vector<256x8xf32> -> vector<256x8xf32>
    %28 = arith.addf %22, %27 : vector<256x8xf32>
    %29 = vector.extract_strided_slice %3 {offsets = [1, 1, 0], sizes = [16, 16, 8], strides = [1, 1, 1]} : vector<18x18x8xbf16> to vector<16x16x8xbf16>
    %30 = vector.shape_cast %29 : vector<16x16x8xbf16> to vector<256x8xbf16>
    %c4 = arith.constant 4 : index
    %c0_15 = arith.constant 0 : index
    %c0_16 = arith.constant 0 : index
    %31 = vector.load %arg3[%c4, %c0_15, %c0_16] : memref<9x8x8xbf16, #tpu.memory_space<vmem>>, vector<1x8x8xbf16>
    %32 = vector.shape_cast %31 : vector<1x8x8xbf16> to vector<8x8xbf16>
    %cst_17 = arith.constant dense<0.000000e+00> : vector<256x8xf32>
    %33 = tpu.matmul %30, %32, %cst_17 {dimension_numbers = #tpu.dot_dimension_numbers<[1], [0], [0], [1], [0, 0, 1, 1], [], []>} : vector<256x8xbf16>, vector<8x8xbf16>, vector<256x8xf32> -> vector<256x8xf32>
    %34 = arith.addf %28, %33 : vector<256x8xf32>
    %35 = vector.extract_strided_slice %3 {offsets = [1, 2, 0], sizes = [16, 16, 8], strides = [1, 1, 1]} : vector<18x18x8xbf16> to vector<16x16x8xbf16>
    %36 = vector.shape_cast %35 : vector<16x16x8xbf16> to vector<256x8xbf16>
    %c5 = arith.constant 5 : index
    %c0_18 = arith.constant 0 : index
    %c0_19 = arith.constant 0 : index
    %37 = vector.load %arg3[%c5, %c0_18, %c0_19] : memref<9x8x8xbf16, #tpu.memory_space<vmem>>, vector<1x8x8xbf16>
    %38 = vector.shape_cast %37 : vector<1x8x8xbf16> to vector<8x8xbf16>
    %cst_20 = arith.constant dense<0.000000e+00> : vector<256x8xf32>
    %39 = tpu.matmul %36, %38, %cst_20 {dimension_numbers = #tpu.dot_dimension_numbers<[1], [0], [0], [1], [0, 0, 1, 1], [], []>} : vector<256x8xbf16>, vector<8x8xbf16>, vector<256x8xf32> -> vector<256x8xf32>
    %40 = arith.addf %34, %39 : vector<256x8xf32>
    %41 = vector.extract_strided_slice %3 {offsets = [2, 0, 0], sizes = [16, 16, 8], strides = [1, 1, 1]} : vector<18x18x8xbf16> to vector<16x16x8xbf16>
    %42 = vector.shape_cast %41 : vector<16x16x8xbf16> to vector<256x8xbf16>
    %c6 = arith.constant 6 : index
    %c0_21 = arith.constant 0 : index
    %c0_22 = arith.constant 0 : index
    %43 = vector.load %arg3[%c6, %c0_21, %c0_22] : memref<9x8x8xbf16, #tpu.memory_space<vmem>>, vector<1x8x8xbf16>
    %44 = vector.shape_cast %43 : vector<1x8x8xbf16> to vector<8x8xbf16>
    %cst_23 = arith.constant dense<0.000000e+00> : vector<256x8xf32>
    %45 = tpu.matmul %42, %44, %cst_23 {dimension_numbers = #tpu.dot_dimension_numbers<[1], [0], [0], [1], [0, 0, 1, 1], [], []>} : vector<256x8xbf16>, vector<8x8xbf16>, vector<256x8xf32> -> vector<256x8xf32>
    %46 = arith.addf %40, %45 : vector<256x8xf32>
    %47 = vector.extract_strided_slice %3 {offsets = [2, 1, 0], sizes = [16, 16, 8], strides = [1, 1, 1]} : vector<18x18x8xbf16> to vector<16x16x8xbf16>
    %48 = vector.shape_cast %47 : vector<16x16x8xbf16> to vector<256x8xbf16>
    %c7 = arith.constant 7 : index
    %c0_24 = arith.constant 0 : index
    %c0_25 = arith.constant 0 : index
    %49 = vector.load %arg3[%c7, %c0_24, %c0_25] : memref<9x8x8xbf16, #tpu.memory_space<vmem>>, vector<1x8x8xbf16>
    %50 = vector.shape_cast %49 : vector<1x8x8xbf16> to vector<8x8xbf16>
    %cst_26 = arith.constant dense<0.000000e+00> : vector<256x8xf32>
    %51 = tpu.matmul %48, %50, %cst_26 {dimension_numbers = #tpu.dot_dimension_numbers<[1], [0], [0], [1], [0, 0, 1, 1], [], []>} : vector<256x8xbf16>, vector<8x8xbf16>, vector<256x8xf32> -> vector<256x8xf32>
    %52 = arith.addf %46, %51 : vector<256x8xf32>
    %53 = vector.extract_strided_slice %3 {offsets = [2, 2, 0], sizes = [16, 16, 8], strides = [1, 1, 1]} : vector<18x18x8xbf16> to vector<16x16x8xbf16>
    %54 = vector.shape_cast %53 : vector<16x16x8xbf16> to vector<256x8xbf16>
    %c8 = arith.constant 8 : index
    %c0_27 = arith.constant 0 : index
    %c0_28 = arith.constant 0 : index
    %55 = vector.load %arg3[%c8, %c0_27, %c0_28] : memref<9x8x8xbf16, #tpu.memory_space<vmem>>, vector<1x8x8xbf16>
    %56 = vector.shape_cast %55 : vector<1x8x8xbf16> to vector<8x8xbf16>
    %cst_29 = arith.constant dense<0.000000e+00> : vector<256x8xf32>
    %57 = tpu.matmul %54, %56, %cst_29 {dimension_numbers = #tpu.dot_dimension_numbers<[1], [0], [0], [1], [0, 0, 1, 1], [], []>} : vector<256x8xbf16>, vector<8x8xbf16>, vector<256x8xf32> -> vector<256x8xf32>
    %58 = arith.addf %52, %57 : vector<256x8xf32>
    %59 = vector.shape_cast %58 : vector<256x8xf32> to vector<1x16x16x8xf32>
    %60 = arith.truncf %59 : vector<1x16x16x8xf32> to vector<1x16x16x8xbf16>
    %c0_30 = arith.constant 0 : index
    %c0_31 = arith.constant 0 : index
    %c0_32 = arith.constant 0 : index
    %c0_33 = arith.constant 0 : index
    %61 = vector.load %arg4[%c0_30, %c0_31, %c0_32, %c0_33] : memref<1x16x16x8xbf16, #tpu.memory_space<vmem>>, vector<1x16x16x8xbf16>
    tpu.vector_store %arg4[%c0_30, %c0_31, %c0_32, %c0_33], %60 {strides = array<i32>} : memref<1x16x16x8xbf16, #tpu.memory_space<vmem>>, vector<1x16x16x8xbf16>,
    %cst_34 = arith.constant dense<0.000000e+00> : vector<8xf32>
    %62 = vector.multi_reduction <add>, %58, %cst_34 [0] : vector<256x8xf32> to vector<8xf32>
    %63 = vector.shape_cast %62 : vector<8xf32> to vector<1x8xf32>
    %c0_35 = arith.constant 0 : index
    %c0_36 = arith.constant 0 : index
    %c0_37 = arith.constant 0 : index
    %c0_38 = arith.constant 0 : index
    %64 = vector.load %arg5[%c0_35, %c0_36, %c0_37, %c0_38] : memref<1x1x2x8xf32, #tpu.memory_space<vmem>>, vector<1x1x1x8xf32>
    %65 = vector.shape_cast %64 : vector<1x1x1x8xf32> to vector<1x8xf32>
    %66 = vector.shape_cast %63 : vector<1x8xf32> to vector<1x1x1x8xf32>
    tpu.vector_store %arg5[%c0_35, %c0_36, %c0_37, %c0_38], %66 {strides = array<i32>} : memref<1x1x2x8xf32, #tpu.memory_space<vmem>>, vector<1x1x1x8xf32>,
    %67 = arith.mulf %58, %58 : vector<256x8xf32>
    %cst_39 = arith.constant dense<0.000000e+00> : vector<8xf32>
    %68 = vector.multi_reduction <add>, %67, %cst_39 [0] : vector<256x8xf32> to vector<8xf32>
    %69 = vector.shape_cast %68 : vector<8xf32> to vector<1x8xf32>
    %c0_40 = arith.constant 0 : index
    %c0_41 = arith.constant 0 : index
    %c1_42 = arith.constant 1 : index
    %c0_43 = arith.constant 0 : index
    %70 = vector.load %arg5[%c0_40, %c0_41, %c1_42, %c0_43] : memref<1x1x2x8xf32, #tpu.memory_space<vmem>>, vector<1x1x1x8xf32>
    %71 = vector.shape_cast %70 : vector<1x1x1x8xf32> to vector<1x8xf32>
    %72 = vector.shape_cast %69 : vector<1x8xf32> to vector<1x1x1x8xf32>
    tpu.vector_store %arg5[%c0_40, %c0_41, %c1_42, %c0_43], %72 {strides = array<i32>} : memref<1x1x2x8xf32, #tpu.memory_space<vmem>>, vector<1x1x1x8xf32>,
    return
  }
  func.func @transform_0(%arg0: i32, %arg1: i32) -> (i32, i32, i32, i32) {
    %c0_i32 = arith.constant 0 : i32
    %c0_i32_0 = arith.constant 0 : i32
    %c0_i32_1 = arith.constant 0 : i32
    %c0_i32_2 = arith.constant 0 : i32
    return %arg0, %c0_i32, %c0_i32_0, %c0_i32_1 : i32, i32, i32, i32
  }
  func.func @transform_1(%arg0: i32, %arg1: i32) -> (i32, i32, i32) {
    %c0_i32 = arith.constant 0 : i32
    %c0_i32_0 = arith.constant 0 : i32
    %c0_i32_1 = arith.constant 0 : i32
    %c0_i32_2 = arith.constant 0 : i32
    return %c0_i32, %c0_i32_0, %c0_i32_1 : i32, i32, i32
  }
  func.func @transform_2(%arg0: i32, %arg1: i32) -> (i32, i32, i32, i32) {
    %c0_i32 = arith.constant 0 : i32
    %c0_i32_0 = arith.constant 0 : i32
    %c0_i32_1 = arith.constant 0 : i32
    return %arg0, %arg1, %c0_i32, %c0_i32_0 : i32, i32, i32, i32
  }
  func.func @transform_3(%arg0: i32, %arg1: i32) -> (i32, i32, i32, i32) {
    %c0_i32 = arith.constant 0 : i32
    %c0_i32_0 = arith.constant 0 : i32
    %c0_i32_1 = arith.constant 0 : i32
    return %arg0, %arg1, %c0_i32, %c0_i32_0 : i32, i32, i32, i32
  }
}

module attributes {stable_mosaic.version = 11 : i64} {
  func.func @_bn_lrelu_kernel(%arg0: i32, %arg1: memref<128x8xbf16, #tpu.memory_space<vmem>>, %arg2: memref<1x8xf32, #tpu.memory_space<vmem>>, %arg3: memref<1x8xf32, #tpu.memory_space<vmem>>, %arg4: memref<128x8xf32, #tpu.memory_space<vmem>>) attributes {dimension_semantics = [#tpu.dimension_semantics<parallel>], iteration_bounds = array<i64: 1>, scalar_prefetch = 0 : i64, scratch_operands = 0 : i64, tpu.core_type = #tpu.core_type<tc>, window_params = [{transform_indices = @transform_0, window_bounds = array<i64: 128, 8>}, {pipeline_mode = #tpu.pipeline_mode<synchronous>, transform_indices = @transform_1, window_bounds = array<i64: 1, 8>}, {pipeline_mode = #tpu.pipeline_mode<synchronous>, transform_indices = @transform_2, window_bounds = array<i64: 1, 8>}, {transform_indices = @transform_3, window_bounds = array<i64: 128, 8>}]} {
    %c0 = arith.constant 0 : index
    %c0_0 = arith.constant 0 : index
    %0 = vector.load %arg1[%c0, %c0_0] : memref<128x8xbf16, #tpu.memory_space<vmem>>, vector<128x8xbf16>
    %1 = arith.extf %0 : vector<128x8xbf16> to vector<128x8xf32>
    %c0_1 = arith.constant 0 : index
    %c0_2 = arith.constant 0 : index
    %2 = vector.load %arg2[%c0_1, %c0_2] : memref<1x8xf32, #tpu.memory_space<vmem>>, vector<1x8xf32>
    %3 = vector.broadcast %2 : vector<1x8xf32> to vector<128x8xf32>
    %4 = arith.mulf %1, %3 : vector<128x8xf32>
    %c0_3 = arith.constant 0 : index
    %c0_4 = arith.constant 0 : index
    %5 = vector.load %arg3[%c0_3, %c0_4] : memref<1x8xf32, #tpu.memory_space<vmem>>, vector<1x8xf32>
    %6 = vector.broadcast %5 : vector<1x8xf32> to vector<128x8xf32>
    %7 = arith.addf %4, %6 : vector<128x8xf32>
    %cst = arith.constant 0.000000e+00 : f32
    %8 = vector.broadcast %cst : f32 to vector<128x8xf32>
    %9 = arith.cmpf ogt, %7, %8 : vector<128x8xf32>
    %cst_5 = arith.constant 1.000000e-01 : f32
    %10 = vector.broadcast %cst_5 : f32 to vector<128x8xf32>
    %11 = arith.mulf %10, %7 : vector<128x8xf32>
    %12 = arith.select %9, %7, %11 : vector<128x8xi1>, vector<128x8xf32>
    %c0_6 = arith.constant 0 : index
    %c0_7 = arith.constant 0 : index
    %13 = vector.load %arg4[%c0_6, %c0_7] : memref<128x8xf32, #tpu.memory_space<vmem>>, vector<128x8xf32>
    tpu.vector_store %arg4[%c0_6, %c0_7], %12 {strides = array<i32>} : memref<128x8xf32, #tpu.memory_space<vmem>>, vector<128x8xf32>,
    return
  }
  func.func @transform_0(%arg0: i32) -> (i32, i32) {
    %c0_i32 = arith.constant 0 : i32
    %c0_i32_0 = arith.constant 0 : i32
    return %arg0, %c0_i32 : i32, i32
  }
  func.func @transform_1(%arg0: i32) -> (i32, i32) {
    %c0_i32 = arith.constant 0 : i32
    %c0_i32_0 = arith.constant 0 : i32
    %c0_i32_1 = arith.constant 0 : i32
    return %c0_i32, %c0_i32_0 : i32, i32
  }
  func.func @transform_2(%arg0: i32) -> (i32, i32) {
    %c0_i32 = arith.constant 0 : i32
    %c0_i32_0 = arith.constant 0 : i32
    %c0_i32_1 = arith.constant 0 : i32
    return %c0_i32, %c0_i32_0 : i32, i32
  }
  func.func @transform_3(%arg0: i32) -> (i32, i32) {
    %c0_i32 = arith.constant 0 : i32
    %c0_i32_0 = arith.constant 0 : i32
    return %arg0, %c0_i32 : i32, i32
  }
}

module attributes {stable_mosaic.version = 11 : i64} {
  func.func @_conv_stats_kernel(%arg0: i32, %arg1: i32, %arg2: memref<1x9x9x32xbf16, #tpu.memory_space<vmem>>, %arg3: memref<4x32x8xbf16, #tpu.memory_space<vmem>>, %arg4: memref<1x8x8x8xbf16, #tpu.memory_space<vmem>>, %arg5: memref<1x1x2x8xf32, #tpu.memory_space<vmem>>) attributes {dimension_semantics = [#tpu.dimension_semantics<parallel>, #tpu.dimension_semantics<parallel>], iteration_bounds = array<i64: 2, 1>, scalar_prefetch = 0 : i64, scratch_operands = 0 : i64, tpu.core_type = #tpu.core_type<tc>, window_params = [{transform_indices = @transform_0, window_bounds = array<i64: 1, 9, 9, 32>}, {pipeline_mode = #tpu.pipeline_mode<synchronous>, transform_indices = @transform_1, window_bounds = array<i64: 4, 32, 8>}, {transform_indices = @transform_2, window_bounds = array<i64: 1, 8, 8, 8>}, {transform_indices = @transform_3, window_bounds = array<i64: 1, 1, 2, 8>}]} {
    %c8_i32 = arith.constant 8 : i32
    %0 = arith.muli %arg1, %c8_i32 : i32
    %c0 = arith.constant 0 : index
    %1 = arith.index_cast %0 : i32 to index
    %c0_0 = arith.constant 0 : index
    %c0_1 = arith.constant 0 : index
    %2 = vector.load %arg2[%c0, %1, %c0_0, %c0_1] : memref<1x9x9x32xbf16, #tpu.memory_space<vmem>>, vector<1x9x9x32xbf16>
    %3 = vector.shape_cast %2 : vector<1x9x9x32xbf16> to vector<9x9x32xbf16>
    %cst = arith.constant 0.000000e+00 : f32
    %4 = vector.broadcast %cst : f32 to vector<64x8xf32>
    %5 = vector.extract_strided_slice %3 {offsets = [0, 0, 0], sizes = [8, 8, 32], strides = [1, 1, 1]} : vector<9x9x32xbf16> to vector<8x8x32xbf16>
    %6 = vector.shape_cast %5 : vector<8x8x32xbf16> to vector<64x32xbf16>
    %c0_2 = arith.constant 0 : index
    %c0_3 = arith.constant 0 : index
    %c0_4 = arith.constant 0 : index
    %7 = vector.load %arg3[%c0_2, %c0_3, %c0_4] : memref<4x32x8xbf16, #tpu.memory_space<vmem>>, vector<1x32x8xbf16>
    %8 = vector.shape_cast %7 : vector<1x32x8xbf16> to vector<32x8xbf16>
    %cst_5 = arith.constant dense<0.000000e+00> : vector<64x8xf32>
    %9 = tpu.matmul %6, %8, %cst_5 {dimension_numbers = #tpu.dot_dimension_numbers<[1], [0], [0], [1], [0, 0, 1, 1], [], []>} : vector<64x32xbf16>, vector<32x8xbf16>, vector<64x8xf32> -> vector<64x8xf32>
    %10 = arith.addf %4, %9 : vector<64x8xf32>
    %11 = vector.extract_strided_slice %3 {offsets = [0, 1, 0], sizes = [8, 8, 32], strides = [1, 1, 1]} : vector<9x9x32xbf16> to vector<8x8x32xbf16>
    %12 = vector.shape_cast %11 : vector<8x8x32xbf16> to vector<64x32xbf16>
    %c1 = arith.constant 1 : index
    %c0_6 = arith.constant 0 : index
    %c0_7 = arith.constant 0 : index
    %13 = vector.load %arg3[%c1, %c0_6, %c0_7] : memref<4x32x8xbf16, #tpu.memory_space<vmem>>, vector<1x32x8xbf16>
    %14 = vector.shape_cast %13 : vector<1x32x8xbf16> to vector<32x8xbf16>
    %cst_8 = arith.constant dense<0.000000e+00> : vector<64x8xf32>
    %15 = tpu.matmul %12, %14, %cst_8 {dimension_numbers = #tpu.dot_dimension_numbers<[1], [0], [0], [1], [0, 0, 1, 1], [], []>} : vector<64x32xbf16>, vector<32x8xbf16>, vector<64x8xf32> -> vector<64x8xf32>
    %16 = arith.addf %10, %15 : vector<64x8xf32>
    %17 = vector.extract_strided_slice %3 {offsets = [1, 0, 0], sizes = [8, 8, 32], strides = [1, 1, 1]} : vector<9x9x32xbf16> to vector<8x8x32xbf16>
    %18 = vector.shape_cast %17 : vector<8x8x32xbf16> to vector<64x32xbf16>
    %c2 = arith.constant 2 : index
    %c0_9 = arith.constant 0 : index
    %c0_10 = arith.constant 0 : index
    %19 = vector.load %arg3[%c2, %c0_9, %c0_10] : memref<4x32x8xbf16, #tpu.memory_space<vmem>>, vector<1x32x8xbf16>
    %20 = vector.shape_cast %19 : vector<1x32x8xbf16> to vector<32x8xbf16>
    %cst_11 = arith.constant dense<0.000000e+00> : vector<64x8xf32>
    %21 = tpu.matmul %18, %20, %cst_11 {dimension_numbers = #tpu.dot_dimension_numbers<[1], [0], [0], [1], [0, 0, 1, 1], [], []>} : vector<64x32xbf16>, vector<32x8xbf16>, vector<64x8xf32> -> vector<64x8xf32>
    %22 = arith.addf %16, %21 : vector<64x8xf32>
    %23 = vector.extract_strided_slice %3 {offsets = [1, 1, 0], sizes = [8, 8, 32], strides = [1, 1, 1]} : vector<9x9x32xbf16> to vector<8x8x32xbf16>
    %24 = vector.shape_cast %23 : vector<8x8x32xbf16> to vector<64x32xbf16>
    %c3 = arith.constant 3 : index
    %c0_12 = arith.constant 0 : index
    %c0_13 = arith.constant 0 : index
    %25 = vector.load %arg3[%c3, %c0_12, %c0_13] : memref<4x32x8xbf16, #tpu.memory_space<vmem>>, vector<1x32x8xbf16>
    %26 = vector.shape_cast %25 : vector<1x32x8xbf16> to vector<32x8xbf16>
    %cst_14 = arith.constant dense<0.000000e+00> : vector<64x8xf32>
    %27 = tpu.matmul %24, %26, %cst_14 {dimension_numbers = #tpu.dot_dimension_numbers<[1], [0], [0], [1], [0, 0, 1, 1], [], []>} : vector<64x32xbf16>, vector<32x8xbf16>, vector<64x8xf32> -> vector<64x8xf32>
    %28 = arith.addf %22, %27 : vector<64x8xf32>
    %29 = vector.shape_cast %28 : vector<64x8xf32> to vector<1x8x8x8xf32>
    %30 = arith.truncf %29 : vector<1x8x8x8xf32> to vector<1x8x8x8xbf16>
    %c0_15 = arith.constant 0 : index
    %c0_16 = arith.constant 0 : index
    %c0_17 = arith.constant 0 : index
    %c0_18 = arith.constant 0 : index
    %31 = vector.load %arg4[%c0_15, %c0_16, %c0_17, %c0_18] : memref<1x8x8x8xbf16, #tpu.memory_space<vmem>>, vector<1x8x8x8xbf16>
    tpu.vector_store %arg4[%c0_15, %c0_16, %c0_17, %c0_18], %30 {strides = array<i32>} : memref<1x8x8x8xbf16, #tpu.memory_space<vmem>>, vector<1x8x8x8xbf16>,
    %cst_19 = arith.constant dense<0.000000e+00> : vector<8xf32>
    %32 = vector.multi_reduction <add>, %28, %cst_19 [0] : vector<64x8xf32> to vector<8xf32>
    %33 = vector.shape_cast %32 : vector<8xf32> to vector<1x8xf32>
    %c0_20 = arith.constant 0 : index
    %c0_21 = arith.constant 0 : index
    %c0_22 = arith.constant 0 : index
    %c0_23 = arith.constant 0 : index
    %34 = vector.load %arg5[%c0_20, %c0_21, %c0_22, %c0_23] : memref<1x1x2x8xf32, #tpu.memory_space<vmem>>, vector<1x1x1x8xf32>
    %35 = vector.shape_cast %34 : vector<1x1x1x8xf32> to vector<1x8xf32>
    %36 = vector.shape_cast %33 : vector<1x8xf32> to vector<1x1x1x8xf32>
    tpu.vector_store %arg5[%c0_20, %c0_21, %c0_22, %c0_23], %36 {strides = array<i32>} : memref<1x1x2x8xf32, #tpu.memory_space<vmem>>, vector<1x1x1x8xf32>,
    %37 = arith.mulf %28, %28 : vector<64x8xf32>
    %cst_24 = arith.constant dense<0.000000e+00> : vector<8xf32>
    %38 = vector.multi_reduction <add>, %37, %cst_24 [0] : vector<64x8xf32> to vector<8xf32>
    %39 = vector.shape_cast %38 : vector<8xf32> to vector<1x8xf32>
    %c0_25 = arith.constant 0 : index
    %c0_26 = arith.constant 0 : index
    %c1_27 = arith.constant 1 : index
    %c0_28 = arith.constant 0 : index
    %40 = vector.load %arg5[%c0_25, %c0_26, %c1_27, %c0_28] : memref<1x1x2x8xf32, #tpu.memory_space<vmem>>, vector<1x1x1x8xf32>
    %41 = vector.shape_cast %40 : vector<1x1x1x8xf32> to vector<1x8xf32>
    %42 = vector.shape_cast %39 : vector<1x8xf32> to vector<1x1x1x8xf32>
    tpu.vector_store %arg5[%c0_25, %c0_26, %c1_27, %c0_28], %42 {strides = array<i32>} : memref<1x1x2x8xf32, #tpu.memory_space<vmem>>, vector<1x1x1x8xf32>,
    return
  }
  func.func @transform_0(%arg0: i32, %arg1: i32) -> (i32, i32, i32, i32) {
    %c0_i32 = arith.constant 0 : i32
    %c0_i32_0 = arith.constant 0 : i32
    %c0_i32_1 = arith.constant 0 : i32
    %c0_i32_2 = arith.constant 0 : i32
    return %arg0, %c0_i32, %c0_i32_0, %c0_i32_1 : i32, i32, i32, i32
  }
  func.func @transform_1(%arg0: i32, %arg1: i32) -> (i32, i32, i32) {
    %c0_i32 = arith.constant 0 : i32
    %c0_i32_0 = arith.constant 0 : i32
    %c0_i32_1 = arith.constant 0 : i32
    %c0_i32_2 = arith.constant 0 : i32
    return %c0_i32, %c0_i32_0, %c0_i32_1 : i32, i32, i32
  }
  func.func @transform_2(%arg0: i32, %arg1: i32) -> (i32, i32, i32, i32) {
    %c0_i32 = arith.constant 0 : i32
    %c0_i32_0 = arith.constant 0 : i32
    %c0_i32_1 = arith.constant 0 : i32
    return %arg0, %arg1, %c0_i32, %c0_i32_0 : i32, i32, i32, i32
  }
  func.func @transform_3(%arg0: i32, %arg1: i32) -> (i32, i32, i32, i32) {
    %c0_i32 = arith.constant 0 : i32
    %c0_i32_0 = arith.constant 0 : i32
    %c0_i32_1 = arith.constant 0 : i32
    return %arg0, %arg1, %c0_i32, %c0_i32_0 : i32, i32, i32, i32
  }
}

</mosaic_0001>

<llo_original>
// kernel: dis_block_forward.5
$region0: #{dis_block_forward.5}
  #allocation0 [shape = 'u32[]', space=smem, size = 0x4, offset = 0x4, fixed_abs, tag = 'smem constant byte address 0x4 - core index']
  #allocation1 [shape = 'u32[144,128]{1,0:T(1,128)}', space=vmem, size = 0x12000, scoped, tag = 'internal scratch']
  %s0 = inlined_call_operand.vmem [shape: bf16[128,8], index: 0, kind: input, shape index: {}]
  %s1 = inlined_call_operand.vmem [shape: f32[1,8], index: 1, kind: input, shape index: {}]
  %s2 = inlined_call_operand.vmem [shape: f32[1,8], index: 2, kind: input, shape index: {}]
  %s3 = inlined_call_operand.vmem [shape: f32[128,8], index: 3, kind: output, shape index: {}]
  %s4 = sld [smem:[#allocation0]]
  $region22: #{dis_block_forward.5} parent=0
    _
  %s6 = ssub.s32 1, %s4
  %s7 = scalar_select 0, %s6, %s4
  // Predicated region
  $region2: #{dis_block_forward.5} parent=0 // pred_check
    _
  $region3: #{dis_block_forward.5} parent=0 // pred_check_branch
    %9 = sbr.rel (0) target = $region5
  $region4: #{dis_block_forward.5} parent=0 // pred_region
    _
  $region5: #{dis_block_forward.5} parent=0 // pred_fallthru
    _
  // Predicated region
  $region6: #{dis_block_forward.5} parent=0 // pred_check
    _
  $region7: #{dis_block_forward.5} parent=0 // pred_check_branch
    %11 = sbr.rel (0) target = $region9
  $region8: #{dis_block_forward.5} parent=0 // pred_region
    _
  $region9: #{dis_block_forward.5} parent=0 // pred_fallthru
    _
  // Predicated region
  $region10: #{dis_block_forward.5} parent=0 // pred_check
    _
  $region11: #{dis_block_forward.5} parent=0 // pred_check_branch
    %13 = sbr.rel (0) target = $region13
  $region12: #{dis_block_forward.5} parent=0 // pred_region
    _
  $region13: #{dis_block_forward.5} parent=0 // pred_fallthru
    _
  %v14 = vld [vmem:[%s0] sm:$0xf]
  %v15 = vld [vmem:[%s0 + $0x4] sm:$0xf]
  %v16 = vld [vmem:[%s0 + $0x8] sm:$0xf]
  %v17 = vld [vmem:[%s0 + $0xc] sm:$0xf]
  %v18 = vld [vmem:[%s0 + $0x10] sm:$0xf]
  %v19 = vld [vmem:[%s0 + $0x14] sm:$0xf]
  %v20 = vld [vmem:[%s0 + $0x18] sm:$0xf]
  %v21 = vld [vmem:[%s0 + $0x1c] sm:$0xf]
  %v22 = vld [vmem:[%s0 + $0x20] sm:$0xf]
  %v23 = vld [vmem:[%s0 + $0x24] sm:$0xf]
  %v24 = vld [vmem:[%s0 + $0x28] sm:$0xf]
  %v25 = vld [vmem:[%s0 + $0x2c] sm:$0xf]
  %v26 = vld [vmem:[%s0 + $0x30] sm:$0xf]
  %v27 = vld [vmem:[%s0 + $0x34] sm:$0xf]
  %v28 = vld [vmem:[%s0 + $0x38] sm:$0xf]
  %v29 = vld [vmem:[%s0 + $0x3c] sm:$0xf]
  %v30 = vunpack.c.l.bf16 %v14
  %v31 = vunpack.c.l.bf16 %v15
  %v32 = vunpack.c.l.bf16 %v16
  %v33 = vunpack.c.l.bf16 %v17
  %v34 = vunpack.c.l.bf16 %v18
  %v35 = vunpack.c.l.bf16 %v19
  %v36 = vunpack.c.l.bf16 %v20
  %v37 = vunpack.c.l.bf16 %v21
  %v38 = vunpack.c.l.bf16 %v22
  %v39 = vunpack.c.l.bf16 %v23
  %v40 = vunpack.c.l.bf16 %v24
  %v41 = vunpack.c.l.bf16 %v25
  %v42 = vunpack.c.l.bf16 %v26
  %v43 = vunpack.c.l.bf16 %v27
  %v44 = vunpack.c.l.bf16 %v28
  %v45 = vunpack.c.l.bf16 %v29
  %v46 = vld [vmem:[%s1] sm:$0x1]
  %v48 = vlaneseq
  %v49 = vshrl.u32 %v48, 7
  %v50 = vsub.s32 0, %v49
  %v51 = vrot.slane %v46, %v50
  %v53 = vmul.f32 %v30, %v51
  %v54 = vmul.f32 %v31, %v51
  %v55 = vmul.f32 %v32, %v51
  %v56 = vmul.f32 %v33, %v51
  %v57 = vmul.f32 %v34, %v51
  %v58 = vmul.f32 %v35, %v51
  %v59 = vmul.f32 %v36, %v51
  %v60 = vmul.f32 %v37, %v51
  %v61 = vmul.f32 %v38, %v51
  %v62 = vmul.f32 %v39, %v51
  %v63 = vmul.f32 %v40, %v51
  %v64 = vmul.f32 %v41, %v51
  %v65 = vmul.f32 %v42, %v51
  %v66 = vmul.f32 %v43, %v51
  %v67 = vmul.f32 %v44, %v51
  %v68 = vmul.f32 %v45, %v51
  %v69 = vld [vmem:[%s2] sm:$0x1]
  %v71 = vlaneseq
  %v72 = vshrl.u32 %v71, 7
  %v73 = vsub.s32 0, %v72
  %v74 = vrot.slane %v69, %v73
  %v76 = vadd.f32 %v53, %v74
  %v77 = vadd.f32 %v54, %v74
  %v78 = vadd.f32 %v55, %v74
  %v79 = vadd.f32 %v56, %v74
  %v80 = vadd.f32 %v57, %v74
  %v81 = vadd.f32 %v58, %v74
  %v82 = vadd.f32 %v59, %v74
  %v83 = vadd.f32 %v60, %v74
  %v84 = vadd.f32 %v61, %v74
  %v85 = vadd.f32 %v62, %v74
  %v86 = vadd.f32 %v63, %v74
  %v87 = vadd.f32 %v64, %v74
  %v88 = vadd.f32 %v65, %v74
  %v89 = vadd.f32 %v66, %v74
  %v90 = vadd.f32 %v67, %v74
  %v91 = vadd.f32 %v68, %v74
  %vm92 = vcmp.gt.f32.partialorder %v76, 0.0
  %vm93 = vcmp.gt.f32.partialorder %v77, 0.0
  %vm94 = vcmp.gt.f32.partialorder %v78, 0.0
  %vm95 = vcmp.gt.f32.partialorder %v79, 0.0
  %vm96 = vcmp.gt.f32.partialorder %v80, 0.0
  %vm97 = vcmp.gt.f32.partialorder %v81, 0.0
  %vm98 = vcmp.gt.f32.partialorder %v82, 0.0
  %vm99 = vcmp.gt.f32.partialorder %v83, 0.0
  %vm100 = vcmp.gt.f32.partialorder %v84, 0.0
  %vm101 = vcmp.gt.f32.partialorder %v85, 0.0
  %vm102 = vcmp.gt.f32.partialorder %v86, 0.0
  %vm103 = vcmp.gt.f32.partialorder %v87, 0.0
  %vm104 = vcmp.gt.f32.partialorder %v88, 0.0
  %vm105 = vcmp.gt.f32.partialorder %v89, 0.0
  %vm106 = vcmp.gt.f32.partialorder %v90, 0.0
  %vm107 = vcmp.gt.f32.partialorder %v91, 0.0
  %v108 = vmul.f32 %v76, 0.1
  %v109 = vmul.f32 %v77, 0.1
  %v110 = vmul.f32 %v78, 0.1
  %v111 = vmul.f32 %v79, 0.1
  %v112 = vmul.f32 %v80, 0.1
  %v113 = vmul.f32 %v81, 0.1
  %v114 = vmul.f32 %v82, 0.1
  %v115 = vmul.f32 %v83, 0.1
  %v116 = vmul.f32 %v84, 0.1
  %v117 = vmul.f32 %v85, 0.1
  %v118 = vmul.f32 %v86, 0.1
  %v119 = vmul.f32 %v87, 0.1
  %v120 = vmul.f32 %v88, 0.1
  %v121 = vmul.f32 %v89, 0.1
  %v122 = vmul.f32 %v90, 0.1
  %v123 = vmul.f32 %v91, 0.1
  %v124 = vsel %vm92, %v76, %v108
  %v125 = vsel %vm93, %v77, %v109
  %v126 = vsel %vm94, %v78, %v110
  %v127 = vsel %vm95, %v79, %v111
  %v128 = vsel %vm96, %v80, %v112
  %v129 = vsel %vm97, %v81, %v113
  %v130 = vsel %vm98, %v82, %v114
  %v131 = vsel %vm99, %v83, %v115
  %v132 = vsel %vm100, %v84, %v116
  %v133 = vsel %vm101, %v85, %v117
  %v134 = vsel %vm102, %v86, %v118
  %v135 = vsel %vm103, %v87, %v119
  %v136 = vsel %vm104, %v88, %v120
  %v137 = vsel %vm105, %v89, %v121
  %v138 = vsel %vm106, %v90, %v122
  %v139 = vsel %vm107, %v91, %v123
  %vm140 = vcmask 64512
  %141 = vst.msk [vmem:[%s3] sm:$0xff] %vm140, %v124
  %142 = vst.msk [vmem:[%s3 + $0x8] sm:$0xff] %vm140, %v125
  %143 = vst.msk [vmem:[%s3 + $0x10] sm:$0xff] %vm140, %v126
  %144 = vst.msk [vmem:[%s3 + $0x18] sm:$0xff] %vm140, %v127
  %145 = vst.msk [vmem:[%s3 + $0x20] sm:$0xff] %vm140, %v128
  %146 = vst.msk [vmem:[%s3 + $0x28] sm:$0xff] %vm140, %v129
  %147 = vst.msk [vmem:[%s3 + $0x30] sm:$0xff] %vm140, %v130
  %148 = vst.msk [vmem:[%s3 + $0x38] sm:$0xff] %vm140, %v131
  %149 = vst.msk [vmem:[%s3 + $0x40] sm:$0xff] %vm140, %v132
  %150 = vst.msk [vmem:[%s3 + $0x48] sm:$0xff] %vm140, %v133
  %151 = vst.msk [vmem:[%s3 + $0x50] sm:$0xff] %vm140, %v134
  %152 = vst.msk [vmem:[%s3 + $0x58] sm:$0xff] %vm140, %v135
  %153 = vst.msk [vmem:[%s3 + $0x60] sm:$0xff] %vm140, %v136
  %154 = vst.msk [vmem:[%s3 + $0x68] sm:$0xff] %vm140, %v137
  %155 = vst.msk [vmem:[%s3 + $0x70] sm:$0xff] %vm140, %v138
  %156 = vst.msk [vmem:[%s3 + $0x78] sm:$0xff] %vm140, %v139
  // Predicated region
  $region14: #{dis_block_forward.5} parent=0 // pred_check
    _
  $region15: #{dis_block_forward.5} parent=0 // pred_check_branch
    %158 = sbr.rel (0) target = $region17
  $region16: #{dis_block_forward.5} parent=0 // pred_region
    _
  $region17: #{dis_block_forward.5} parent=0 // pred_fallthru
    _
  // Predicated region
  $region18: #{dis_block_forward.5} parent=0 // pred_check
    _
  $region19: #{dis_block_forward.5} parent=0 // pred_check_branch
    %160 = sbr.rel (0) target = $region21
  $region20: #{dis_block_forward.5} parent=0 // pred_region
    _
  $region21: #{dis_block_forward.5} parent=0 // pred_fallthru
    _

// kernel: dis_block_forward.4
$region0: #{dis_block_forward.4}
  #allocation0 [shape = 'u32[]', space=smem, size = 0x4, offset = 0x4, fixed_abs, tag = 'smem constant byte address 0x4 - core index']
  #allocation1 [shape = 'u32[144,128]{1,0:T(1,128)}', space=vmem, size = 0x12000, scoped, tag = 'internal scratch']
  %s0 = inlined_call_operand.vmem [shape: bf16[2,9,9,32], index: 0, kind: input, shape index: {}]
  %s1 = inlined_call_operand.vmem [shape: bf16[4,32,8], index: 1, kind: input, shape index: {}]
  %s2 = inlined_call_operand.vmem [shape: bf16[2,8,8,8], index: 2, kind: output, shape index: {0}]
  %s3 = inlined_call_operand.vmem [shape: f32[2,1,2,8], index: 3, kind: output, shape index: {1}]
  %4 = xla_tuple %s2, %s3
  %s5 = sld [smem:[#allocation0]]
  $region49: #{dis_block_forward.4} parent=0
    _
  %s7 = ssub.s32 1, %s5
  %s8 = scalar_select 0, %s7, %s5
  loop: start=0, step=1, limit=4
  $region2: #{dis_block_forward.4} parent=0 // loop_pre_header
    _
  $region3: #{dis_block_forward.4} parent=0 // loop_header
    %s10 = sphi 0, %s14
    %p11 = scmp.ge.s32.totalorder %s10, 4
    %s17 = sphi 0, %s29
    %s18 = sphi 0, %s25
    %s19 = sphi 0, %s17
    %s20 = sphi 0, %s18
    %s21 = sphi 0, %s19
    %s22 = sphi 0, %s20
    %s32 = sphi 0, %s34
    %s35 = sphi 0, %s32
    %s36 = sphi 0, %s35
    %s52 = sphi 0, %s36
    %s56 = sphi 0, %s56
    %s58 = sphi 0, %s56
    %s59 = sphi 0, %s58
    %s73 = sphi 0, %s59
    %s81 = sphi 0, %s83
    %s84 = sphi 0, %s81
    %s85 = sphi 0, %s84
    %s101 = sphi 0, %s85
    %s109 = sphi 0, %s111
    %s112 = sphi 0, %s109
    %s113 = sphi 0, %s112
    %s129 = sphi 0, %s113
  $region4: #{dis_block_forward.4} parent=0 // loop_header_branch
    %13 = sbr.rel (%p11) target = $region8
  $region5: #{dis_block_forward.4} parent=0 // loop_body
    %s15 = ssub.s32 %s10, 1
    %s16 = ssub.s32 %s10, 2
    %s23 = sadd.s32 1, %s18
    %p24 = scmp.ge.s32.totalorder %s23, 1
    %s25 = scalar_select %p24, 0, %s23
    %s26 = sadd.s32 1, %s17
    %s27 = scalar_select %p24, %s26, %s17
    %p28 = scmp.ge.s32.totalorder %s27, 2
    %s29 = scalar_select %p28, 0, %s27
    %s30 = ssub.s32 %s17, %s29
    %p31 = scmp.eq.s32.totalorder %s30, 0
    %s33 = sadd.s32 %s32, 1
    %s34 = scalar_select %p31, %s32, %s33
    %p37 = pneg %p31
    %p38 = scmp.eq.s32.totalorder %s10, 1
    %p39 = por %p37, %p38
    %p40 = scmp.ne.s32.totalorder %s32, %s35
    %p41 = scmp.eq.s32.totalorder %s10, 0
    %p42 = por %p40, %p41
    %p43 = scmp.ne.s32.totalorder %s32, %s35
    %p44 = scmp.eq.s32.totalorder %s15, 1
    %p45 = por %p43, %p44
    %p46 = scmp.ne.s32.totalorder %s35, %s36
    %p47 = scmp.eq.s32.totalorder %s15, 0
    %p48 = por %p46, %p47
    %p49 = scmp.ne.s32.totalorder %s35, %s36
    %p50 = scmp.eq.s32.totalorder %s16, 1
    %p51 = por %p49, %p50
    %p53 = scmp.ne.s32.totalorder %s36, %s52
    %p54 = scmp.eq.s32.totalorder %s16, 0
    %p55 = por %p53, %p54
    %s57 = sadd.s32 %s56, 1
    %p60 = scmp.eq.s32.totalorder %s10, 1
    %p61 = scmp.ne.s32.totalorder %s56, %s58
    %p62 = scmp.eq.s32.totalorder %s10, 0
    %p63 = por %p61, %p62
    %p64 = scmp.ne.s32.totalorder %s56, %s58
    %p65 = scmp.eq.s32.totalorder %s15, 1
    %p66 = por %p64, %p65
    %p67 = scmp.ne.s32.totalorder %s58, %s59
    %p68 = scmp.eq.s32.totalorder %s15, 0
    %p69 = por %p67, %p68
    %p70 = scmp.ne.s32.totalorder %s58, %s59
    %p71 = scmp.eq.s32.totalorder %s16, 1
    %p72 = por %p70, %p71
    %p74 = scmp.ne.s32.totalorder %s59, %s73
    %p75 = scmp.eq.s32.totalorder %s16, 0
    %p76 = por %p74, %p75
    %s77 = ssub.s32 %s17, %s29
    %s78 = ssub.s32 %s18, %s25
    %s79 = sor.u32 %s77, %s78
    %p80 = scmp.eq.s32.totalorder %s79, 0
    %s82 = sadd.s32 %s81, 1
    %s83 = scalar_select %p80, %s81, %s82
    %p86 = pneg %p80
    %p87 = scmp.eq.s32.totalorder %s10, 1
    %p88 = por %p86, %p87
    %p89 = scmp.ne.s32.totalorder %s81, %s84
    %p90 = scmp.eq.s32.totalorder %s10, 0
    %p91 = por %p89, %p90
    %p92 = scmp.ne.s32.totalorder %s81, %s84
    %p93 = scmp.eq.s32.totalorder %s15, 1
    %p94 = por %p92, %p93
    %p95 = scmp.ne.s32.totalorder %s84, %s85
    %p96 = scmp.eq.s32.totalorder %s15, 0
    %p97 = por %p95, %p96
    %p98 = scmp.ne.s32.totalorder %s84, %s85
    %p99 = scmp.eq.s32.totalorder %s16, 1
    %p100 = por %p98, %p99
    %p102 = scmp.ne.s32.totalorder %s85, %s101
    %p103 = scmp.eq.s32.totalorder %s16, 0
    %p104 = por %p102, %p103
    %s105 = ssub.s32 %s17, %s29
    %s106 = ssub.s32 %s18, %s25
    %s107 = sor.u32 %s105, %s106
    %p108 = scmp.eq.s32.totalorder %s107, 0
    %s110 = sadd.s32 %s109, 1
    %s111 = scalar_select %p108, %s109, %s110
    %p114 = pneg %p108
    %p115 = scmp.eq.s32.totalorder %s10, 1
    %p116 = por %p114, %p115
    %p117 = scmp.ne.s32.totalorder %s109, %s112
    %p118 = scmp.eq.s32.totalorder %s10, 0
    %p119 = por %p117, %p118
    %p120 = scmp.ne.s32.totalorder %s109, %s112
    %p121 = scmp.eq.s32.totalorder %s15, 1
    %p122 = por %p120, %p121
    %p123 = scmp.ne.s32.totalorder %s112, %s113
    %p124 = scmp.eq.s32.totalorder %s15, 0
    %p125 = por %p123, %p124
    %p126 = scmp.ne.s32.totalorder %s112, %s113
    %p127 = scmp.eq.s32.totalorder %s16, 1
    %p128 = por %p126, %p127
    %p130 = scmp.ne.s32.totalorder %s113, %s129
    %p131 = scmp.eq.s32.totalorder %s16, 0
    %p132 = por %p130, %p131
    %p133 = scmp.le.s32.totalorder 1, %s10
    %p134 = scmp.lt.s32.totalorder %s10, 3
    %p135 = pnand %p133, %p134
    %p136 = pneg %p135
    // Predicated region
    $region9: #{dis_block_forward.4} parent=5 // pred_check
      _
    $region10: #{dis_block_forward.4} parent=5 // pred_check_branch
      %138 = sbr.rel (%p135) target = $region12
    $region11: #{dis_block_forward.4} parent=5 // pred_region
      %s139 = ssub.s32 %s10, 1
      // Predicated region
      $region13: #{dis_block_forward.4} parent=11 // pred_check
        %p140 = pneg %p69
      $region14: #{dis_block_forward.4} parent=11 // pred_check_branch
        %142 = sbr.rel (%p140) target = $region16
      $region15: #{dis_block_forward.4} parent=11 // pred_region
        _
      $region16: #{dis_block_forward.4} parent=11 // pred_fallthru
        _
    $region12: #{dis_block_forward.4} parent=5 // pred_fallthru
      _
    %p143 = scmp.lt.s32.totalorder %s10, 2
    // Predicated region
    $region17: #{dis_block_forward.4} parent=5 // pred_check
      %p144 = pneg %p143
    $region18: #{dis_block_forward.4} parent=5 // pred_check_branch
      %146 = sbr.rel (%p144) target = $region20
    $region19: #{dis_block_forward.4} parent=5 // pred_region
      // Predicated region
      $region21: #{dis_block_forward.4} parent=19 // pred_check
        %p147 = pneg %p42
      $region22: #{dis_block_forward.4} parent=19 // pred_check_branch
        %149 = sbr.rel (%p147) target = $region24
      $region23: #{dis_block_forward.4} parent=19 // pred_region
        %p150 = scmp.lt.s32.totalorder %s17, 1
        %s151 = scalar_select %p150, %s17, 1
        %s152 = smul.addr %s151, 18
        %s153 = smul.addr %s152, 4
        %s154 = scalar_lea.vmem %s0, %s153
      $region24: #{dis_block_forward.4} parent=19 // pred_fallthru
        _
    $region20: #{dis_block_forward.4} parent=5 // pred_fallthru
      _
    %p155 = scmp.le.s32.totalorder 1, %s10
    %p156 = scmp.lt.s32.totalorder %s10, 3
    %p157 = pnand %p155, %p156
    %p158 = pneg %p157
    // Predicated region
    $region25: #{dis_block_forward.4} parent=5 // pred_check
      _
    $region26: #{dis_block_forward.4} parent=5 // pred_check_branch
      %160 = sbr.rel (%p157) target = $region28
    $region27: #{dis_block_forward.4} parent=5 // pred_region
      %s161 = ssub.s32 %s10, 1
      %p162 = scmp.lt.s32.totalorder %s19, 1
      %s163 = scalar_select %p162, %s19, 1
      %s164 = smul.addr %s163, 18
      %s165 = smul.addr %s164, 4
      %s166 = scalar_lea.vmem %s0, %s165
      %p167 = pneg %p48
      %p168 = pneg %p45
      %p169 = pneg %p69
      %p170 = pneg %p66
      %p171 = pneg %p97
      %p172 = pneg %p94
      %s173 = smul.u32 8, %s20
      %p174 = scmp.lt.s32.totalorder %s19, 1
      %s175 = scalar_select %p174, %s19, 1
      %p176 = scmp.lt.s32.totalorder %s173, 7
      %s177 = scalar_select %p176, %s173, 7
      %s178 = smul.addr %s175, 8
      %s179 = sadd.s32 %s177, %s178
      %s180 = smul.addr %s179, 4
      %s181 = scalar_lea.vmem %s2, %s180
      %p182 = pneg %p125
      %p183 = pneg %p122
      %p184 = scmp.lt.s32.totalorder %s19, 1
      %s185 = scalar_select %p184, %s19, 1
      %p186 = scmp.lt.s32.totalorder %s20, 0
      %s187 = scalar_select %p186, %s20, 0
      %s188 = sadd.s32 %s187, %s185
      %s189 = smul.addr %s188, 2
      %s190 = scalar_lea.vmem %s3, %s189
      %p191 = scmp.lt.s32.totalorder %s19, 1
      %s192 = scalar_select %p191, %s19, 1
      %s193 = smul.addr %s192, 18
      %s194 = smul.addr %s193, 4
      %s195 = scalar_lea.vmem %s0, %s194
      %s196 = smul.u32 8, %s20
      %p197 = scmp.lt.s32.totalorder %s19, 1
      %s198 = scalar_select %p197, %s19, 1
      %p199 = scmp.lt.s32.totalorder %s196, 7
      %s200 = scalar_select %p199, %s196, 7
      %s201 = smul.addr %s198, 8
      %s202 = sadd.s32 %s200, %s201
      %s203 = smul.addr %s202, 4
      %s204 = scalar_lea.vmem %s2, %s203
      %s205 = smul.u32 8, %s20
      %p206 = scmp.lt.s32.totalorder %s19, 1
      %s207 = scalar_select %p206, %s19, 1
      %p208 = scmp.lt.s32.totalorder %s20, 0
      %s209 = scalar_select %p208, %s20, 0
      %s210 = sadd.s32 %s209, %s207
      %s211 = smul.addr %s210, 2
      %s212 = scalar_lea.vmem %s3, %s211
      %s214 = smul.u32 %s20, 8
      %s215 = smul.u32 %s214, 2
      %s216 = smul.addr %s215, 4
      %s217 = scalar_lea.vmem %s195, %s216
      %v218 = vld [vmem:[%s217] sm:$0xf]
      %v219 = vld [vmem:[%s217 + $0x4] sm:$0x1]
      %v220 = vld [vmem:[%s217 + $0x8] sm:$0xf]
      %v221 = vld [vmem:[%s217 + $0xc] sm:$0x1]
      %v222 = vld [vmem:[%s217 + $0x10] sm:$0xf]
      %v223 = vld [vmem:[%s217 + $0x14] sm:$0x1]
      %v224 = vld [vmem:[%s217 + $0x18] sm:$0xf]
      %v225 = vld [vmem:[%s217 + $0x1c] sm:$0x1]
      %v226 = vld [vmem:[%s217 + $0x20] sm:$0xf]
      %v227 = vld [vmem:[%s217 + $0x24] sm:$0x1]
      %v228 = vld [vmem:[%s217 + $0x28] sm:$0xf]
      %v229 = vld [vmem:[%s217 + $0x2c] sm:$0x1]
      %v230 = vld [vmem:[%s217 + $0x30] sm:$0xf]
      %v231 = vld [vmem:[%s217 + $0x34] sm:$0x1]
      %v232 = vld [vmem:[%s217 + $0x38] sm:$0xf]
      %v233 = vld [vmem:[%s217 + $0x3c] sm:$0x1]
      %v234 = vld [vmem:[%s217 + $0x40] sm:$0xf]
      %v235 = vld [vmem:[%s217 + $0x44] sm:$0x1]
      %v236 = vld [vmem:[%s1] sm:$0xf]
      %v237 = vld [vmem:[%s1 + $0x4] sm:$0xf]
      %v238 = vld [vmem:[%s1 + $0x8] sm:$0xf]
      %v239 = vld [vmem:[%s1 + $0xc] sm:$0xf]
      %vm240 = vsmask.f32 3328
      %vm241 = vsmask.f32 7440
      %vm242 = vmor %vm240, %vm241
      %v244 = vshrl.u32 %v218, 16
      %v246 = vrot.slane %v244, 4
      %v247 = vshll.u32 %v218, 16
      %v249 = vrot.slane %v247, 5
      %v250 = vor.u32 %v246, %v249
      %v251 = vrot.slane %v250, 4
      %v253 = vshll.u32 %v219, 16
      %v255 = vrot.slane %v253, 5
      %v256 = vsel %vm242, %v251, %v255
      %v258 = vshrl.u32 %v220, 16
      %v260 = vrot.slane %v258, 4
      %v261 = vshll.u32 %v220, 16
      %v263 = vrot.slane %v261, 5
      %v264 = vor.u32 %v260, %v263
      %v265 = vrot.slane %v264, 4
      %v267 = vshll.u32 %v221, 16
      %v269 = vrot.slane %v267, 5
      %v270 = vsel %vm242, %v265, %v269
      %v272 = vshrl.u32 %v222, 16
      %v274 = vrot.slane %v272, 4
      %v275 = vshll.u32 %v222, 16
      %v277 = vrot.slane %v275, 5
      %v278 = vor.u32 %v274, %v277
      %v279 = vrot.slane %v278, 4
      %v281 = vshll.u32 %v223, 16
      %v283 = vrot.slane %v281, 5
      %v284 = vsel %vm242, %v279, %v283
      %v286 = vshrl.u32 %v224, 16
      %v288 = vrot.slane %v286, 4
      %v289 = vshll.u32 %v224, 16
      %v291 = vrot.slane %v289, 5
      %v292 = vor.u32 %v288, %v291
      %v293 = vrot.slane %v292, 4
      %v295 = vshll.u32 %v225, 16
      %v297 = vrot.slane %v295, 5
      %v298 = vsel %vm242, %v293, %v297
      %v300 = vshrl.u32 %v226, 16
      %v302 = vrot.slane %v300, 4
      %v303 = vshll.u32 %v226, 16
      %v305 = vrot.slane %v303, 5
      %v306 = vor.u32 %v302, %v305
      %v307 = vrot.slane %v306, 4
      %v309 = vshll.u32 %v227, 16
      %v311 = vrot.slane %v309, 5
      %v312 = vsel %vm242, %v307, %v311
      %v314 = vshrl.u32 %v228, 16
      %v316 = vrot.slane %v314, 4
      %v317 = vshll.u32 %v228, 16
      %v319 = vrot.slane %v317, 5
      %v320 = vor.u32 %v316, %v319
      %v321 = vrot.slane %v320, 4
      %v323 = vshll.u32 %v229, 16
      %v325 = vrot.slane %v323, 5
      %v326 = vsel %vm242, %v321, %v325
      %v328 = vshrl.u32 %v230, 16
      %v330 = vrot.slane %v328, 4
      %v331 = vshll.u32 %v230, 16
      %v333 = vrot.slane %v331, 5
      %v334 = vor.u32 %v330, %v333
      %v335 = vrot.slane %v334, 4
      %v337 = vshll.u32 %v231, 16
      %v339 = vrot.slane %v337, 5
      %v340 = vsel %vm242, %v335, %v339
      %v342 = vshrl.u32 %v232, 16
      %v344 = vrot.slane %v342, 4
      %v345 = vshll.u32 %v232, 16
      %v347 = vrot.slane %v345, 5
      %v348 = vor.u32 %v344, %v347
      %v349 = vrot.slane %v348, 4
      %v351 = vshll.u32 %v233, 16
      %v353 = vrot.slane %v351, 5
      %v354 = vsel %vm242, %v349, %v353
      %s355 = scalar_lea.vmem %s1, 16
      %v356 = vld [vmem:[%s355] sm:$0xf]
      %v357 = vld [vmem:[%s355 + $0x4] sm:$0xf]
      %v358 = vld [vmem:[%s355 + $0x8] sm:$0xf]
      %v359 = vld [vmem:[%s355 + $0xc] sm:$0xf]
      %v360 = vunpack.c.l.b16 %v256
      %v361 = vunpack.c.l.b16 %v270
      %v362 = vunpack.c.l.b16 %v284
      %v363 = vunpack.c.l.b16 %v298
      %v364 = vunpack.c.l.b16 %v312
      %v365 = vunpack.c.l.b16 %v326
      %v366 = vunpack.c.l.b16 %v340
      %v367 = vunpack.c.l.b16 %v354
      %v368 = vpack.c.b16 %v361, %v360
      %v369 = vpack.c.b16 %v363, %v362
      %v370 = vpack.c.b16 %v365, %v364
      %v371 = vpack.c.b16 %v367, %v366
      %v376 = vunpack.c.l.b16 %v356
      %v377 = vunpack.c.l.b16 %v357
      %v378 = vunpack.c.l.b16 %v358
      %v379 = vunpack.c.l.b16 %v359
      %v380 = vpack.c.b16 %v377, %v376
      %v381 = vpack.c.b16 %v379, %v378
      %vm384 = vcmask 261120
      %v386 = vsel %vm384, %v368, 0
      %v389 = vsel %vm384, %v369, 0
      %v392 = vsel %vm384, %v370, 0
      %v395 = vsel %vm384, %v371, 0
      %397 = vmatprep.subr.bf16.mxu0 0
      %398 = vmatpush1.bf16.msra.mxu0 %v380
      %399 = vmatprep.subr.bf16.mxu0 0
      %400 = vmatpush1.bf16.msra.mxu0 %v381
      %401 = vmatprep.subr.bf16.mxu0 0
      %402 = vmatpush1.bf16.msra.mxu0 0
      %403 = vmatprep.subr.bf16.mxu0 0
      %404 = vmatpush1.bf16.msra.mxu0 0
      %405 = vmatprep.subr.bf16.mxu0 0
      %406 = vmatpush1.bf16.msra.mxu0 0
      %407 = vmatprep.subr.bf16.mxu0 0
      %408 = vmatpush1.bf16.msra.mxu0 0
      %409 = vmatprep.subr.bf16.mxu0 0
      %410 = vmatpush1.bf16.msra.mxu0 0
      %411 = vmatprep.subr.bf16.mxu0 0
      %412 = vmatpush1.bf16.msra.mxu0 0
      %413 = vmatprep.subr.bf16.mxu0 0
      %414 = vmatpush1.bf16.msra.mxu0 0
      %415 = vmatprep.subr.bf16.mxu0 0
      %416 = vmatpush1.bf16.msra.mxu0 0
      %417 = vmatprep.subr.bf16.mxu0 0
      %418 = vmatpush1.bf16.msra.mxu0 0
      %419 = vmatprep.subr.bf16.mxu0 0
      %420 = vmatpush1.bf16.msra.mxu0 0
      %421 = vmatprep.subr.bf16.mxu0 0
      %422 = vmatpush1.bf16.msra.mxu0 0
      %423 = vmatprep.subr.bf16.mxu0 0
      %424 = vmatpush1.bf16.msra.mxu0 0
      %425 = vmatprep.subr.bf16.mxu0 0
      %426 = vmatpush1.bf16.msra.mxu0 0
      %427 = vmatprep.subr.bf16.mxu0 0
      %428 = vmatpush1.bf16.msra.mxu0 0
      %429 = vmatprep.mubr.bf16.mxu0 0
      %430 = vmatmul.mubr.bf16.gmra.mrb[0].mxu0 %v386
      %v431 = vpop.f32.mrb[0].mxu0
      %v432 = vadd.f32 0.0, %v431
      %v433 = vpop.f32.mrb[0].mxu0
      %v434 = vpop.f32.mrb[0].mxu0
      %v435 = vadd.f32 0.0, %v434
      %v436 = vpop.f32.mrb[0].mxu0
      %437 = vmatprep.mubr.bf16.mxu0 0
      %438 = vmatmul.mubr.bf16.gmra.mrb[0].mxu0 %v389
      %v439 = vpop.f32.mrb[0].mxu0
      %v440 = vadd.f32 0.0, %v439
      %v441 = vpop.f32.mrb[0].mxu0
      %v442 = vpop.f32.mrb[0].mxu0
      %v443 = vadd.f32 0.0, %v442
      %v444 = vpop.f32.mrb[0].mxu0
      %445 = vmatprep.mubr.bf16.mxu0 0
      %446 = vmatmul.mubr.bf16.gmra.mrb[0].mxu0 %v392
      %v447 = vpop.f32.mrb[0].mxu0
      %v448 = vadd.f32 0.0, %v447
      %v449 = vpop.f32.mrb[0].mxu0
      %v450 = vpop.f32.mrb[0].mxu0
      %v451 = vadd.f32 0.0, %v450
      %v452 = vpop.f32.mrb[0].mxu0
      %453 = vmatprep.mubr.bf16.mxu0 0
      %454 = vmatmul.mubr.bf16.gmra.mrb[0].mxu0 %v395
      %v455 = vpop.f32.mrb[0].mxu0
      %v456 = vadd.f32 0.0, %v455
      %v457 = vpop.f32.mrb[0].mxu0
      %v458 = vpop.f32.mrb[0].mxu0
      %v459 = vadd.f32 0.0, %v458
      %v460 = vpop.f32.mrb[0].mxu0
      %461 = vdwg.mxu0
      %v470 = vunpack.c.l.b16 %v218
      %v471 = vunpack.c.l.b16 %v220
      %v472 = vunpack.c.l.b16 %v222
      %v473 = vunpack.c.l.b16 %v224
      %v474 = vunpack.c.l.b16 %v226
      %v475 = vunpack.c.l.b16 %v228
      %v476 = vunpack.c.l.b16 %v230
      %v477 = vunpack.c.l.b16 %v232
      %v478 = vpack.c.b16 %v471, %v470
      %v479 = vpack.c.b16 %v473, %v472
      %v480 = vpack.c.b16 %v475, %v474
      %v481 = vpack.c.b16 %v477, %v476
      %v486 = vunpack.c.l.b16 %v236
      %v487 = vunpack.c.l.b16 %v237
      %v488 = vunpack.c.l.b16 %v238
      %v489 = vunpack.c.l.b16 %v239
      %v490 = vpack.c.b16 %v487, %v486
      %v491 = vpack.c.b16 %v489, %v488
      %v495 = vsel %vm384, %v478, 0
      %v498 = vsel %vm384, %v479, 0
      %v501 = vsel %vm384, %v480, 0
      %v504 = vsel %vm384, %v481, 0
      %506 = vmatprep.subr.bf16.mxu0 0
      %507 = vmatpush1.bf16.msra.mxu0 %v490
      %508 = vmatprep.subr.bf16.mxu0 0
      %509 = vmatpush1.bf16.msra.mxu0 %v491
      %510 = vmatprep.subr.bf16.mxu0 0
      %511 = vmatpush1.bf16.msra.mxu0 0
      %512 = vmatprep.subr.bf16.mxu0 0
      %513 = vmatpush1.bf16.msra.mxu0 0
      %514 = vmatprep.subr.bf16.mxu0 0
      %515 = vmatpush1.bf16.msra.mxu0 0
      %516 = vmatprep.subr.bf16.mxu0 0
      %517 = vmatpush1.bf16.msra.mxu0 0
      %518 = vmatprep.subr.bf16.mxu0 0
      %519 = vmatpush1.bf16.msra.mxu0 0
      %520 = vmatprep.subr.bf16.mxu0 0
      %521 = vmatpush1.bf16.msra.mxu0 0
      %522 = vmatprep.subr.bf16.mxu0 0
      %523 = vmatpush1.bf16.msra.mxu0 0
      %524 = vmatprep.subr.bf16.mxu0 0
      %525 = vmatpush1.bf16.msra.mxu0 0
      %526 = vmatprep.subr.bf16.mxu0 0
      %527 = vmatpush1.bf16.msra.mxu0 0
      %528 = vmatprep.subr.bf16.mxu0 0
      %529 = vmatpush1.bf16.msra.mxu0 0
      %530 = vmatprep.subr.bf16.mxu0 0
      %531 = vmatpush1.bf16.msra.mxu0 0
      %532 = vmatprep.subr.bf16.mxu0 0
      %533 = vmatpush1.bf16.msra.mxu0 0
      %534 = vmatprep.subr.bf16.mxu0 0
      %535 = vmatpush1.bf16.msra.mxu0 0
      %536 = vmatprep.subr.bf16.mxu0 0
      %537 = vmatpush1.bf16.msra.mxu0 0
      %538 = vmatprep.mubr.bf16.mxu0 0
      %539 = vmatmul.mubr.bf16.gmra.mrb[0].mxu0 %v495
      %v540 = vpop.f32.mrb[0].mxu0
      %v541 = vadd.f32 %v432, %v540
      %v542 = vpop.f32.mrb[0].mxu0
      %v543 = vpop.f32.mrb[0].mxu0
      %v544 = vadd.f32 %v435, %v543
      %v545 = vpop.f32.mrb[0].mxu0
      %546 = vmatprep.mubr.bf16.mxu0 0
      %547 = vmatmul.mubr.bf16.gmra.mrb[0].mxu0 %v498
      %v548 = vpop.f32.mrb[0].mxu0
      %v549 = vadd.f32 %v440, %v548
      %v550 = vpop.f32.mrb[0].mxu0
      %v551 = vpop.f32.mrb[0].mxu0
      %v552 = vadd.f32 %v443, %v551
      %v553 = vpop.f32.mrb[0].mxu0
      %554 = vmatprep.mubr.bf16.mxu0 0
      %555 = vmatmul.mubr.bf16.gmra.mrb[0].mxu0 %v501
      %v556 = vpop.f32.mrb[0].mxu0
      %v557 = vadd.f32 %v448, %v556
      %v558 = vpop.f32.mrb[0].mxu0
      %v559 = vpop.f32.mrb[0].mxu0
      %v560 = vadd.f32 %v451, %v559
      %v561 = vpop.f32.mrb[0].mxu0
      %562 = vmatprep.mubr.bf16.mxu0 0
      %563 = vmatmul.mubr.bf16.gmra.mrb[0].mxu0 %v504
      %v564 = vpop.f32.mrb[0].mxu0
      %v565 = vadd.f32 %v456, %v564
      %v566 = vpop.f32.mrb[0].mxu0
      %v567 = vpop.f32.mrb[0].mxu0
      %v568 = vadd.f32 %v459, %v567
      %v569 = vpop.f32.mrb[0].mxu0
      %570 = vdwg.mxu0
      %s571 = scalar_lea.vmem %s1, 32
      %v572 = vld [vmem:[%s571] sm:$0xf]
      %v573 = vld [vmem:[%s571 + $0x4] sm:$0xf]
      %v574 = vld [vmem:[%s571 + $0x8] sm:$0xf]
      %v575 = vld [vmem:[%s571 + $0xc] sm:$0xf]
      %v577 = vunpack.c.l.b16 %v234
      %v578 = vpack.c.b16 %v472, %v471
      %v579 = vpack.c.b16 %v474, %v473
      %v580 = vpack.c.b16 %v476, %v475
      %v581 = vpack.c.b16 %v577, %v477
      %v586 = vunpack.c.l.b16 %v572
      %v587 = vunpack.c.l.b16 %v573
      %v588 = vunpack.c.l.b16 %v574
      %v589 = vunpack.c.l.b16 %v575
      %v590 = vpack.c.b16 %v587, %v586
      %v591 = vpack.c.b16 %v589, %v588
      %v595 = vsel %vm384, %v578, 0
      %v598 = vsel %vm384, %v579, 0
      %v601 = vsel %vm384, %v580, 0
      %v604 = vsel %vm384, %v581, 0
      %606 = vmatprep.subr.bf16.mxu0 0
      %607 = vmatpush1.bf16.msra.mxu0 %v590
      %608 = vmatprep.subr.bf16.mxu0 0
      %609 = vmatpush1.bf16.msra.mxu0 %v591
      %610 = vmatprep.subr.bf16.mxu0 0
      %611 = vmatpush1.bf16.msra.mxu0 0
      %612 = vmatprep.subr.bf16.mxu0 0
      %613 = vmatpush1.bf16.msra.mxu0 0
      %614 = vmatprep.subr.bf16.mxu0 0
      %615 = vmatpush1.bf16.msra.mxu0 0
      %616 = vmatprep.subr.bf16.mxu0 0
      %617 = vmatpush1.bf16.msra.mxu0 0
      %618 = vmatprep.subr.bf16.mxu0 0
      %619 = vmatpush1.bf16.msra.mxu0 0
      %620 = vmatprep.subr.bf16.mxu0 0
      %621 = vmatpush1.bf16.msra.mxu0 0
      %622 = vmatprep.subr.bf16.mxu0 0
      %623 = vmatpush1.bf16.msra.mxu0 0
      %624 = vmatprep.subr.bf16.mxu0 0
      %625 = vmatpush1.bf16.msra.mxu0 0
      %626 = vmatprep.subr.bf16.mxu0 0
      %627 = vmatpush1.bf16.msra.mxu0 0
      %628 = vmatprep.subr.bf16.mxu0 0
      %629 = vmatpush1.bf16.msra.mxu0 0
      %630 = vmatprep.subr.bf16.mxu0 0
      %631 = vmatpush1.bf16.msra.mxu0 0
      %632 = vmatprep.subr.bf16.mxu0 0
      %633 = vmatpush1.bf16.msra.mxu0 0
      %634 = vmatprep.subr.bf16.mxu0 0
      %635 = vmatpush1.bf16.msra.mxu0 0
      %636 = vmatprep.subr.bf16.mxu0 0
      %637 = vmatpush1.bf16.msra.mxu0 0
      %638 = vmatprep.mubr.bf16.mxu0 0
      %639 = vmatmul.mubr.bf16.gmra.mrb[0].mxu0 %v595
      %v640 = vpop.f32.mrb[0].mxu0
      %v641 = vadd.f32 0.0, %v640
      %v642 = vpop.f32.mrb[0].mxu0
      %v643 = vpop.f32.mrb[0].mxu0
      %v644 = vadd.f32 0.0, %v643
      %v645 = vpop.f32.mrb[0].mxu0
      %646 = vmatprep.mubr.bf16.mxu0 0
      %647 = vmatmul.mubr.bf16.gmra.mrb[0].mxu0 %v598
      %v648 = vpop.f32.mrb[0].mxu0
      %v649 = vadd.f32 0.0, %v648
      %v650 = vpop.f32.mrb[0].mxu0
      %v651 = vpop.f32.mrb[0].mxu0
      %v652 = vadd.f32 0.0, %v651
      %v653 = vpop.f32.mrb[0].mxu0
      %654 = vmatprep.mubr.bf16.mxu0 0
      %655 = vmatmul.mubr.bf16.gmra.mrb[0].mxu0 %v601
      %v656 = vpop.f32.mrb[0].mxu0
      %v657 = vadd.f32 0.0, %v656
      %v658 = vpop.f32.mrb[0].mxu0
      %v659 = vpop.f32.mrb[0].mxu0
      %v660 = vadd.f32 0.0, %v659
      %v661 = vpop.f32.mrb[0].mxu0
      %662 = vmatprep.mubr.bf16.mxu0 0
      %663 = vmatmul.mubr.bf16.gmra.mrb[0].mxu0 %v604
      %v664 = vpop.f32.mrb[0].mxu0
      %v665 = vadd.f32 0.0, %v664
      %v666 = vpop.f32.mrb[0].mxu0
      %v667 = vpop.f32.mrb[0].mxu0
      %v668 = vadd.f32 0.0, %v667
      %v669 = vpop.f32.mrb[0].mxu0
      %670 = vdwg.mxu0
      %v671 = vadd.f32 %v541, %v641
      %v672 = vadd.f32 %v544, %v644
      %v673 = vadd.f32 %v549, %v649
      %v674 = vadd.f32 %v552, %v652
      %v675 = vadd.f32 %v557, %v657
      %v676 = vadd.f32 %v560, %v660
      %v677 = vadd.f32 %v565, %v665
      %v678 = vadd.f32 %v568, %v668
      %v680 = vshrl.u32 %v234, 16
      %v682 = vrot.slane %v680, 4
      %v683 = vshll.u32 %v234, 16
      %v685 = vrot.slane %v683, 5
      %v686 = vor.u32 %v682, %v685
      %v687 = vrot.slane %v686, 4
      %v689 = vshll.u32 %v235, 16
      %v691 = vrot.slane %v689, 5
      %v692 = vsel %vm242, %v687, %v691
      %s693 = scalar_lea.vmem %s1, 48
      %v694 = vld [vmem:[%s693] sm:$0xf]
      %v695 = vld [vmem:[%s693 + $0x4] sm:$0xf]
      %v696 = vld [vmem:[%s693 + $0x8] sm:$0xf]
      %v697 = vld [vmem:[%s693 + $0xc] sm:$0xf]
      %v698 = vunpack.c.l.b16 %v692
      %v699 = vpack.c.b16 %v362, %v361
      %v700 = vpack.c.b16 %v364, %v363
      %v701 = vpack.c.b16 %v366, %v365
      %v702 = vpack.c.b16 %v698, %v367
      %v707 = vunpack.c.l.b16 %v694
      %v708 = vunpack.c.l.b16 %v695
      %v709 = vunpack.c.l.b16 %v696
      %v710 = vunpack.c.l.b16 %v697
      %v711 = vpack.c.b16 %v708, %v707
      %v712 = vpack.c.b16 %v710, %v709
      %v716 = vsel %vm384, %v699, 0
      %v719 = vsel %vm384, %v700, 0
      %v722 = vsel %vm384, %v701, 0
      %v725 = vsel %vm384, %v702, 0
      %727 = vmatprep.subr.bf16.mxu0 0
      %728 = vmatpush1.bf16.msra.mxu0 %v711
      %729 = vmatprep.subr.bf16.mxu0 0
      %730 = vmatpush1.bf16.msra.mxu0 %v712
      %731 = vmatprep.subr.bf16.mxu0 0
      %732 = vmatpush1.bf16.msra.mxu0 0
      %733 = vmatprep.subr.bf16.mxu0 0
      %734 = vmatpush1.bf16.msra.mxu0 0
      %735 = vmatprep.subr.bf16.mxu0 0
      %736 = vmatpush1.bf16.msra.mxu0 0
      %737 = vmatprep.subr.bf16.mxu0 0
      %738 = vmatpush1.bf16.msra.mxu0 0
      %739 = vmatprep.subr.bf16.mxu0 0
      %740 = vmatpush1.bf16.msra.mxu0 0
      %741 = vmatprep.subr.bf16.mxu0 0
      %742 = vmatpush1.bf16.msra.mxu0 0
      %743 = vmatprep.subr.bf16.mxu0 0
      %744 = vmatpush1.bf16.msra.mxu0 0
      %745 = vmatprep.subr.bf16.mxu0 0
      %746 = vmatpush1.bf16.msra.mxu0 0
      %747 = vmatprep.subr.bf16.mxu0 0
      %748 = vmatpush1.bf16.msra.mxu0 0
      %749 = vmatprep.subr.bf16.mxu0 0
      %750 = vmatpush1.bf16.msra.mxu0 0
      %751 = vmatprep.subr.bf16.mxu0 0
      %752 = vmatpush1.bf16.msra.mxu0 0
      %753 = vmatprep.subr.bf16.mxu0 0
      %754 = vmatpush1.bf16.msra.mxu0 0
      %755 = vmatprep.subr.bf16.mxu0 0
      %756 = vmatpush1.bf16.msra.mxu0 0
      %757 = vmatprep.subr.bf16.mxu0 0
      %758 = vmatpush1.bf16.msra.mxu0 0
      %759 = vmatprep.mubr.bf16.mxu0 0
      %760 = vmatmul.mubr.bf16.gmra.mrb[0].mxu0 %v716
      %v761 = vpop.f32.mrb[0].mxu0
      %v762 = vadd.f32 0.0, %v761
      %v763 = vpop.f32.mrb[0].mxu0
      %v764 = vpop.f32.mrb[0].mxu0
      %v765 = vadd.f32 0.0, %v764
      %v766 = vpop.f32.mrb[0].mxu0
      %767 = vmatprep.mubr.bf16.mxu0 0
      %768 = vmatmul.mubr.bf16.gmra.mrb[0].mxu0 %v719
      %v769 = vpop.f32.mrb[0].mxu0
      %v770 = vadd.f32 0.0, %v769
      %v771 = vpop.f32.mrb[0].mxu0
      %v772 = vpop.f32.mrb[0].mxu0
      %v773 = vadd.f32 0.0, %v772
      %v774 = vpop.f32.mrb[0].mxu0
      %775 = vmatprep.mubr.bf16.mxu0 0
      %776 = vmatmul.mubr.bf16.gmra.mrb[0].mxu0 %v722
      %v777 = vpop.f32.mrb[0].mxu0
      %v778 = vadd.f32 0.0, %v777
      %v779 = vpop.f32.mrb[0].mxu0
      %v780 = vpop.f32.mrb[0].mxu0
      %v781 = vadd.f32 0.0, %v780
      %v782 = vpop.f32.mrb[0].mxu0
      %783 = vmatprep.mubr.bf16.mxu0 0
      %784 = vmatmul.mubr.bf16.gmra.mrb[0].mxu0 %v725
      %v785 = vpop.f32.mrb[0].mxu0
      %v786 = vadd.f32 0.0, %v785
      %v787 = vpop.f32.mrb[0].mxu0
      %v788 = vpop.f32.mrb[0].mxu0
      %v789 = vadd.f32 0.0, %v788
      %v790 = vpop.f32.mrb[0].mxu0
      %791 = vdwg.mxu0
      %v792 = vadd.f32 %v671, %v762
      %v793 = vadd.f32 %v672, %v765
      %v794 = vadd.f32 %v673, %v770
      %v795 = vadd.f32 %v674, %v773
      %v796 = vadd.f32 %v675, %v778
      %v797 = vadd.f32 %v676, %v781
      %v798 = vadd.f32 %v677, %v786
      %v799 = vadd.f32 %v678, %v789
      %v800 = vpack.c.bf16 %v792, %v792
      %v801 = vpack.c.bf16 %v793, %v793
      %v802 = vpack.c.bf16 %v794, %v794
      %v803 = vpack.c.bf16 %v795, %v795
      %v804 = vpack.c.bf16 %v796, %v796
      %v805 = vpack.c.bf16 %v797, %v797
      %v806 = vpack.c.bf16 %v798, %v798
      %v807 = vpack.c.bf16 %v799, %v799
      %vm808 = vcmask 60416
      %809 = vst.msk [vmem:[%s204] sm:$0xf] %vm808, %v800
      %810 = vst.msk [vmem:[%s204 + $0x4] sm:$0xf] %vm808, %v801
      %811 = vst.msk [vmem:[%s204 + $0x8] sm:$0xf] %vm808, %v802
      %812 = vst.msk [vmem:[%s204 + $0xc] sm:$0xf] %vm808, %v803
      %813 = vst.msk [vmem:[%s204 + $0x10] sm:$0xf] %vm808, %v804
      %814 = vst.msk [vmem:[%s204 + $0x14] sm:$0xf] %vm808, %v805
      %815 = vst.msk [vmem:[%s204 + $0x18] sm:$0xf] %vm808, %v806
      %816 = vst.msk [vmem:[%s204 + $0x1c] sm:$0xf] %vm808, %v807
      %vm817 = vcmask 64512
      %v818 = vsel %vm817, %v792, 0.0
      %v819 = vsel %vm817, %v793, 0.0
      %v820 = vadd.f32 %v818, %v819
      %v821 = vsel %vm817, %v794, 0.0
      %v822 = vadd.f32 %v820, %v821
      %v823 = vsel %vm817, %v795, 0.0
      %v824 = vadd.f32 %v822, %v823
      %v825 = vsel %vm817, %v796, 0.0
      %v826 = vadd.f32 %v824, %v825
      %v827 = vsel %vm817, %v797, 0.0
      %v828 = vadd.f32 %v826, %v827
      %v829 = vsel %vm817, %v798, 0.0
      %v830 = vadd.f32 %v828, %v829
      %v831 = vsel %vm817, %v799, 0.0
      %v832 = vadd.f32 %v830, %v831
      %v833 = vrot.slane %v832, 4
      %v834 = vadd.f32 %v832, %v833
      %v835 = vrot.slane %v834, 2
      %v836 = vadd.f32 %v834, %v835
      %v837 = vrot.slane %v836, 1
      %v838 = vadd.f32 %v836, %v837
      %vm839 = vcmask 57344
      %840 = vst.msk [vmem:[%s212] sm:$0x1] %vm839, %v838
      %v841 = vmul.f32 %v792, %v792
      %v842 = vmul.f32 %v793, %v793
      %v843 = vmul.f32 %v794, %v794
      %v844 = vmul.f32 %v795, %v795
      %v845 = vmul.f32 %v796, %v796
      %v846 = vmul.f32 %v797, %v797
      %v847 = vmul.f32 %v798, %v798
      %v848 = vmul.f32 %v799, %v799
      %v849 = vsel %vm817, %v841, 0.0
      %v850 = vsel %vm817, %v842, 0.0
      %v851 = vadd.f32 %v849, %v850
      %v852 = vsel %vm817, %v843, 0.0
      %v853 = vadd.f32 %v851, %v852
      %v854 = vsel %vm817, %v844, 0.0
      %v855 = vadd.f32 %v853, %v854
      %v856 = vsel %vm817, %v845, 0.0
      %v857 = vadd.f32 %v855, %v856
      %v858 = vsel %vm817, %v846, 0.0
      %v859 = vadd.f32 %v857, %v858
      %v860 = vsel %vm817, %v847, 0.0
      %v861 = vadd.f32 %v859, %v860
      %v862 = vsel %vm817, %v848, 0.0
      %v863 = vadd.f32 %v861, %v862
      %v864 = vrot.slane %v863, 4
      %v865 = vadd.f32 %v863, %v864
      %v866 = vrot.slane %v865, 2
      %v867 = vadd.f32 %v865, %v866
      %v868 = vrot.slane %v867, 1
      %v869 = vadd.f32 %v867, %v868
      %870 = vst.msk [vmem:[%s212 + $0x1] sm:$0x1] %vm839, %v869
      %s871 = smul.u32 8, %s20
      %p872 = scmp.lt.s32.totalorder %s19, 1
      %s873 = scalar_select %p872, %s19, 1
      %p874 = scmp.lt.s32.totalorder %s871, 7
      %s875 = scalar_select %p874, %s871, 7
      %s876 = smul.addr %s873, 8
      %s877 = sadd.s32 %s875, %s876
      %s878 = smul.addr %s877, 4
      %s879 = scalar_lea.vmem %s2, %s878
      %p880 = scmp.lt.s32.totalorder %s19, 1
      %s881 = scalar_select %p880, %s19, 1
      %p882 = scmp.lt.s32.totalorder %s20, 0
      %s883 = scalar_select %p882, %s20, 0
      %s884 = sadd.s32 %s883, %s881
      %s885 = smul.addr %s884, 2
      %s886 = scalar_lea.vmem %s3, %s885
      // Predicated region
      $region29: #{dis_block_forward.4} parent=27 // pred_check
        %p887 = pneg %p94
      $region30: #{dis_block_forward.4} parent=27 // pred_check_branch
        %889 = sbr.rel (%p887) target = $region32
      $region31: #{dis_block_forward.4} parent=27 // pred_region
        %s890 = smul.u32 8, %s20
      $region32: #{dis_block_forward.4} parent=27 // pred_fallthru
        _
      // Predicated region
      $region33: #{dis_block_forward.4} parent=27 // pred_check
        %p891 = pneg %p122
      $region34: #{dis_block_forward.4} parent=27 // pred_check_branch
        %893 = sbr.rel (%p891) target = $region36
      $region35: #{dis_block_forward.4} parent=27 // pred_region
        _
      $region36: #{dis_block_forward.4} parent=27 // pred_fallthru
        _
    $region28: #{dis_block_forward.4} parent=5 // pred_fallthru
      _
    %p894 = scmp.le.s32.totalorder 2, %s10
    // Predicated region
    $region37: #{dis_block_forward.4} parent=5 // pred_check
      %p895 = pneg %p894
    $region38: #{dis_block_forward.4} parent=5 // pred_check_branch
      %897 = sbr.rel (%p895) target = $region40
    $region39: #{dis_block_forward.4} parent=5 // pred_region
      %s898 = ssub.s32 %s10, 2
      // Predicated region
      $region41: #{dis_block_forward.4} parent=39 // pred_check
        %p899 = pneg %p100
      $region42: #{dis_block_forward.4} parent=39 // pred_check_branch
        %901 = sbr.rel (%p899) target = $region44
      $region43: #{dis_block_forward.4} parent=39 // pred_region
        %s902 = smul.u32 8, %s22
        %p903 = scmp.lt.s32.totalorder %s21, 1
        %s904 = scalar_select %p903, %s21, 1
        %p905 = scmp.lt.s32.totalorder %s902, 7
        %s906 = scalar_select %p905, %s902, 7
        %s907 = smul.addr %s904, 8
        %s908 = sadd.s32 %s906, %s907
        %s909 = smul.addr %s908, 4
        %s910 = scalar_lea.vmem %s2, %s909
      $region44: #{dis_block_forward.4} parent=39 // pred_fallthru
        _
      // Predicated region
      $region45: #{dis_block_forward.4} parent=39 // pred_check
        %p911 = pneg %p128
      $region46: #{dis_block_forward.4} parent=39 // pred_check_branch
        %913 = sbr.rel (%p911) target = $region48
      $region47: #{dis_block_forward.4} parent=39 // pred_region
        %p914 = scmp.lt.s32.totalorder %s21, 1
        %s915 = scalar_select %p914, %s21, 1
        %p916 = scmp.lt.s32.totalorder %s22, 0
        %s917 = scalar_select %p916, %s22, 0
        %s918 = sadd.s32 %s917, %s915
        %s919 = smul.addr %s918, 2
        %s920 = scalar_lea.vmem %s3, %s919
      $region48: #{dis_block_forward.4} parent=39 // pred_fallthru
        _
    $region40: #{dis_block_forward.4} parent=5 // pred_fallthru
      _
  $region6: #{dis_block_forward.4} parent=0 // loop_footer
    %s14 = sadd.s32 1, %s10
  $region7: #{dis_block_forward.4} parent=0 // loop_footer_branch
    %9 = sbr.rel target = $region3
  $region8: #{dis_block_forward.4} parent=0 // loop_exit
    _

// kernel: dis_block_forward.3
$region0: #{dis_block_forward.3}
  #allocation0 [shape = 'u32[]', space=smem, size = 0x4, offset = 0x4, fixed_abs, tag = 'smem constant byte address 0x4 - core index']
  #allocation1 [shape = 'u32[144,128]{1,0:T(1,128)}', space=vmem, size = 0x12000, scoped, tag = 'internal scratch']
  %s0 = inlined_call_operand.vmem [shape: bf16[2,18,18,8], index: 0, kind: input, shape index: {}]
  %s1 = inlined_call_operand.vmem [shape: bf16[9,8,8], index: 1, kind: input, shape index: {}]
  %s2 = inlined_call_operand.vmem [shape: bf16[2,16,16,8], index: 2, kind: output, shape index: {0}]
  %s3 = inlined_call_operand.vmem [shape: f32[2,1,2,8], index: 3, kind: output, shape index: {1}]
  %4 = xla_tuple %s2, %s3
  %s5 = sld [smem:[#allocation0]]
  $region49: #{dis_block_forward.3} parent=0
    _
  %s7 = ssub.s32 1, %s5
  %s8 = scalar_select 0, %s7, %s5
  loop: start=0, step=1, limit=4
  $region2: #{dis_block_forward.3} parent=0 // loop_pre_header
    _
  $region3: #{dis_block_forward.3} parent=0 // loop_header
    %s10 = sphi 0, %s14
    %p11 = scmp.ge.s32.totalorder %s10, 4
    %s17 = sphi 0, %s29
    %s18 = sphi 0, %s25
    %s19 = sphi 0, %s17
    %s20 = sphi 0, %s18
    %s21 = sphi 0, %s19
    %s22 = sphi 0, %s20
    %s32 = sphi 0, %s34
    %s35 = sphi 0, %s32
    %s36 = sphi 0, %s35
    %s52 = sphi 0, %s36
    %s56 = sphi 0, %s56
    %s58 = sphi 0, %s56
    %s59 = sphi 0, %s58
    %s73 = sphi 0, %s59
    %s81 = sphi 0, %s83
    %s84 = sphi 0, %s81
    %s85 = sphi 0, %s84
    %s101 = sphi 0, %s85
    %s109 = sphi 0, %s111
    %s112 = sphi 0, %s109
    %s113 = sphi 0, %s112
    %s129 = sphi 0, %s113
  $region4: #{dis_block_forward.3} parent=0 // loop_header_branch
    %13 = sbr.rel (%p11) target = $region8
  $region5: #{dis_block_forward.3} parent=0 // loop_body
    %s15 = ssub.s32 %s10, 1
    %s16 = ssub.s32 %s10, 2
    %s23 = sadd.s32 1, %s18
    %p24 = scmp.ge.s32.totalorder %s23, 1
    %s25 = scalar_select %p24, 0, %s23
    %s26 = sadd.s32 1, %s17
    %s27 = scalar_select %p24, %s26, %s17
    %p28 = scmp.ge.s32.totalorder %s27, 2
    %s29 = scalar_select %p28, 0, %s27
    %s30 = ssub.s32 %s17, %s29
    %p31 = scmp.eq.s32.totalorder %s30, 0
    %s33 = sadd.s32 %s32, 1
    %s34 = scalar_select %p31, %s32, %s33
    %p37 = pneg %p31
    %p38 = scmp.eq.s32.totalorder %s10, 1
    %p39 = por %p37, %p38
    %p40 = scmp.ne.s32.totalorder %s32, %s35
    %p41 = scmp.eq.s32.totalorder %s10, 0
    %p42 = por %p40, %p41
    %p43 = scmp.ne.s32.totalorder %s32, %s35
    %p44 = scmp.eq.s32.totalorder %s15, 1
    %p45 = por %p43, %p44
    %p46 = scmp.ne.s32.totalorder %s35, %s36
    %p47 = scmp.eq.s32.totalorder %s15, 0
    %p48 = por %p46, %p47
    %p49 = scmp.ne.s32.totalorder %s35, %s36
    %p50 = scmp.eq.s32.totalorder %s16, 1
    %p51 = por %p49, %p50
    %p53 = scmp.ne.s32.totalorder %s36, %s52
    %p54 = scmp.eq.s32.totalorder %s16, 0
    %p55 = por %p53, %p54
    %s57 = sadd.s32 %s56, 1
    %p60 = scmp.eq.s32.totalorder %s10, 1
    %p61 = scmp.ne.s32.totalorder %s56, %s58
    %p62 = scmp.eq.s32.totalorder %s10, 0
    %p63 = por %p61, %p62
    %p64 = scmp.ne.s32.totalorder %s56, %s58
    %p65 = scmp.eq.s32.totalorder %s15, 1
    %p66 = por %p64, %p65
    %p67 = scmp.ne.s32.totalorder %s58, %s59
    %p68 = scmp.eq.s32.totalorder %s15, 0
    %p69 = por %p67, %p68
    %p70 = scmp.ne.s32.totalorder %s58, %s59
    %p71 = scmp.eq.s32.totalorder %s16, 1
    %p72 = por %p70, %p71
    %p74 = scmp.ne.s32.totalorder %s59, %s73
    %p75 = scmp.eq.s32.totalorder %s16, 0
    %p76 = por %p74, %p75
    %s77 = ssub.s32 %s17, %s29
    %s78 = ssub.s32 %s18, %s25
    %s79 = sor.u32 %s77, %s78
    %p80 = scmp.eq.s32.totalorder %s79, 0
    %s82 = sadd.s32 %s81, 1
    %s83 = scalar_select %p80, %s81, %s82
    %p86 = pneg %p80
    %p87 = scmp.eq.s32.totalorder %s10, 1
    %p88 = por %p86, %p87
    %p89 = scmp.ne.s32.totalorder %s81, %s84
    %p90 = scmp.eq.s32.totalorder %s10, 0
    %p91 = por %p89, %p90
    %p92 = scmp.ne.s32.totalorder %s81, %s84
    %p93 = scmp.eq.s32.totalorder %s15, 1
    %p94 = por %p92, %p93
    %p95 = scmp.ne.s32.totalorder %s84, %s85
    %p96 = scmp.eq.s32.totalorder %s15, 0
    %p97 = por %p95, %p96
    %p98 = scmp.ne.s32.totalorder %s84, %s85
    %p99 = scmp.eq.s32.totalorder %s16, 1
    %p100 = por %p98, %p99
    %p102 = scmp.ne.s32.totalorder %s85, %s101
    %p103 = scmp.eq.s32.totalorder %s16, 0
    %p104 = por %p102, %p103
    %s105 = ssub.s32 %s17, %s29
    %s106 = ssub.s32 %s18, %s25
    %s107 = sor.u32 %s105, %s106
    %p108 = scmp.eq.s32.totalorder %s107, 0
    %s110 = sadd.s32 %s109, 1
    %s111 = scalar_select %p108, %s109, %s110
    %p114 = pneg %p108
    %p115 = scmp.eq.s32.totalorder %s10, 1
    %p116 = por %p114, %p115
    %p117 = scmp.ne.s32.totalorder %s109, %s112
    %p118 = scmp.eq.s32.totalorder %s10, 0
    %p119 = por %p117, %p118
    %p120 = scmp.ne.s32.totalorder %s109, %s112
    %p121 = scmp.eq.s32.totalorder %s15, 1
    %p122 = por %p120, %p121
    %p123 = scmp.ne.s32.totalorder %s112, %s113
    %p124 = scmp.eq.s32.totalorder %s15, 0
    %p125 = por %p123, %p124
    %p126 = scmp.ne.s32.totalorder %s112, %s113
    %p127 = scmp.eq.s32.totalorder %s16, 1
    %p128 = por %p126, %p127
    %p130 = scmp.ne.s32.totalorder %s113, %s129
    %p131 = scmp.eq.s32.totalorder %s16, 0
    %p132 = por %p130, %p131
    %p133 = scmp.le.s32.totalorder 1, %s10
    %p134 = scmp.lt.s32.totalorder %s10, 3
    %p135 = pnand %p133, %p134
    %p136 = pneg %p135
    // Predicated region
    $region9: #{dis_block_forward.3} parent=5 // pred_check
      _
    $region10: #{dis_block_forward.3} parent=5 // pred_check_branch
      %138 = sbr.rel (%p135) target = $region12
    $region11: #{dis_block_forward.3} parent=5 // pred_region
      %s139 = ssub.s32 %s10, 1
      // Predicated region
      $region13: #{dis_block_forward.3} parent=11 // pred_check
        %p140 = pneg %p69
      $region14: #{dis_block_forward.3} parent=11 // pred_check_branch
        %142 = sbr.rel (%p140) target = $region16
      $region15: #{dis_block_forward.3} parent=11 // pred_region
        _
      $region16: #{dis_block_forward.3} parent=11 // pred_fallthru
        _
    $region12: #{dis_block_forward.3} parent=5 // pred_fallthru
      _
    %p143 = scmp.lt.s32.totalorder %s10, 2
    // Predicated region
    $region17: #{dis_block_forward.3} parent=5 // pred_check
      %p144 = pneg %p143
    $region18: #{dis_block_forward.3} parent=5 // pred_check_branch
      %146 = sbr.rel (%p144) target = $region20
    $region19: #{dis_block_forward.3} parent=5 // pred_region
      // Predicated region
      $region21: #{dis_block_forward.3} parent=19 // pred_check
        %p147 = pneg %p42
      $region22: #{dis_block_forward.3} parent=19 // pred_check_branch
        %149 = sbr.rel (%p147) target = $region24
      $region23: #{dis_block_forward.3} parent=19 // pred_region
        %p150 = scmp.lt.s32.totalorder %s17, 1
        %s151 = scalar_select %p150, %s17, 1
        %s152 = smul.addr %s151, 54
        %s153 = smul.addr %s152, 4
        %s154 = scalar_lea.vmem %s0, %s153
      $region24: #{dis_block_forward.3} parent=19 // pred_fallthru
        _
    $region20: #{dis_block_forward.3} parent=5 // pred_fallthru
      _
    %p155 = scmp.le.s32.totalorder 1, %s10
    %p156 = scmp.lt.s32.totalorder %s10, 3
    %p157 = pnand %p155, %p156
    %p158 = pneg %p157
    // Predicated region
    $region25: #{dis_block_forward.3} parent=5 // pred_check
      _
    $region26: #{dis_block_forward.3} parent=5 // pred_check_branch
      %160 = sbr.rel (%p157) target = $region28
    $region27: #{dis_block_forward.3} parent=5 // pred_region
      %s161 = ssub.s32 %s10, 1
      %p162 = scmp.lt.s32.totalorder %s19, 1
      %s163 = scalar_select %p162, %s19, 1
      %s164 = smul.addr %s163, 54
      %s165 = smul.addr %s164, 4
      %s166 = scalar_lea.vmem %s0, %s165
      %p167 = pneg %p48
      %p168 = pneg %p45
      %p169 = pneg %p69
      %p170 = pneg %p66
      %p171 = pneg %p97
      %p172 = pneg %p94
      %s173 = smul.u32 16, %s20
      %p174 = scmp.lt.s32.totalorder %s19, 1
      %s175 = scalar_select %p174, %s19, 1
      %p176 = scmp.lt.s32.totalorder %s173, 15
      %s177 = scalar_select %p176, %s173, 15
      %s178 = smul.addr %s177, 2
      %s179 = smul.addr %s175, 32
      %s180 = sadd.s32 %s178, %s179
      %s181 = smul.addr %s180, 4
      %s182 = scalar_lea.vmem %s2, %s181
      %p183 = pneg %p125
      %p184 = pneg %p122
      %p185 = scmp.lt.s32.totalorder %s19, 1
      %s186 = scalar_select %p185, %s19, 1
      %p187 = scmp.lt.s32.totalorder %s20, 0
      %s188 = scalar_select %p187, %s20, 0
      %s189 = sadd.s32 %s188, %s186
      %s190 = smul.addr %s189, 2
      %s191 = scalar_lea.vmem %s3, %s190
      %p192 = scmp.lt.s32.totalorder %s19, 1
      %s193 = scalar_select %p192, %s19, 1
      %s194 = smul.addr %s193, 54
      %s195 = smul.addr %s194, 4
      %s196 = scalar_lea.vmem %s0, %s195
      %s197 = smul.u32 16, %s20
      %p198 = scmp.lt.s32.totalorder %s19, 1
      %s199 = scalar_select %p198, %s19, 1
      %p200 = scmp.lt.s32.totalorder %s197, 15
      %s201 = scalar_select %p200, %s197, 15
      %s202 = smul.addr %s201, 2
      %s203 = smul.addr %s199, 32
      %s204 = sadd.s32 %s202, %s203
      %s205 = smul.addr %s204, 4
      %s206 = scalar_lea.vmem %s2, %s205
      %s207 = smul.u32 16, %s20
      %p208 = scmp.lt.s32.totalorder %s19, 1
      %s209 = scalar_select %p208, %s19, 1
      %p210 = scmp.lt.s32.totalorder %s20, 0
      %s211 = scalar_select %p210, %s20, 0
      %s212 = sadd.s32 %s211, %s209
      %s213 = smul.addr %s212, 2
      %s214 = scalar_lea.vmem %s3, %s213
      %s216 = smul.u32 %s20, 16
      %s217 = smul.u32 %s216, 3
      %s218 = smul.addr %s217, 4
      %s219 = scalar_lea.vmem %s196, %s218
      %v220 = vld [vmem:[%s219] sm:$0xf]
      %v221 = vld [vmem:[%s219 + $0x4] sm:$0xf]
      %v222 = vld [vmem:[%s219 + $0x8] sm:$0x1]
      %v223 = vld [vmem:[%s219 + $0xc] sm:$0xf]
      %v224 = vld [vmem:[%s219 + $0x10] sm:$0xf]
      %v225 = vld [vmem:[%s219 + $0x14] sm:$0x1]
      %v226 = vld [vmem:[%s219 + $0x18] sm:$0xf]
      %v227 = vld [vmem:[%s219 + $0x1c] sm:$0xf]
      %v228 = vld [vmem:[%s219 + $0x20] sm:$0x1]
      %v229 = vld [vmem:[%s219 + $0x24] sm:$0xf]
      %v230 = vld [vmem:[%s219 + $0x28] sm:$0xf]
      %v231 = vld [vmem:[%s219 + $0x2c] sm:$0x1]
      %v232 = vld [vmem:[%s219 + $0x30] sm:$0xf]
      %v233 = vld [vmem:[%s219 + $0x34] sm:$0xf]
      %v234 = vld [vmem:[%s219 + $0x38] sm:$0x1]
      %v235 = vld [vmem:[%s219 + $0x3c] sm:$0xf]
      %v236 = vld [vmem:[%s219 + $0x40] sm:$0xf]
      %v237 = vld [vmem:[%s219 + $0x44] sm:$0x1]
      %v238 = vld [vmem:[%s219 + $0x48] sm:$0xf]
      %v239 = vld [vmem:[%s219 + $0x4c] sm:$0xf]
      %v240 = vld [vmem:[%s219 + $0x50] sm:$0x1]
      %v241 = vld [vmem:[%s219 + $0x54] sm:$0xf]
      %v242 = vld [vmem:[%s219 + $0x58] sm:$0xf]
      %v243 = vld [vmem:[%s219 + $0x5c] sm:$0x1]
      %v244 = vld [vmem:[%s219 + $0x60] sm:$0xf]
      %v245 = vld [vmem:[%s219 + $0x64] sm:$0xf]
      %v246 = vld [vmem:[%s219 + $0x68] sm:$0x1]
      %v247 = vld [vmem:[%s219 + $0x6c] sm:$0xf]
      %v248 = vld [vmem:[%s219 + $0x70] sm:$0xf]
      %v249 = vld [vmem:[%s219 + $0x74] sm:$0x1]
      %v250 = vld [vmem:[%s219 + $0x78] sm:$0xf]
      %v251 = vld [vmem:[%s219 + $0x7c] sm:$0xf]
      %v252 = vld [vmem:[%s219 + $0x80] sm:$0x1]
      %v253 = vld [vmem:[%s219 + $0x84] sm:$0xf]
      %v254 = vld [vmem:[%s219 + $0x88] sm:$0xf]
      %v255 = vld [vmem:[%s219 + $0x8c] sm:$0x1]
      %v256 = vld [vmem:[%s219 + $0x90] sm:$0xf]
      %v257 = vld [vmem:[%s219 + $0x94] sm:$0xf]
      %v258 = vld [vmem:[%s219 + $0x98] sm:$0x1]
      %v259 = vld [vmem:[%s219 + $0x9c] sm:$0xf]
      %v260 = vld [vmem:[%s219 + $0xa0] sm:$0xf]
      %v261 = vld [vmem:[%s219 + $0xa4] sm:$0x1]
      %v262 = vld [vmem:[%s219 + $0xa8] sm:$0xf]
      %v263 = vld [vmem:[%s219 + $0xac] sm:$0xf]
      %v264 = vld [vmem:[%s219 + $0xb0] sm:$0x1]
      %v265 = vld [vmem:[%s219 + $0xb4] sm:$0xf]
      %v266 = vld [vmem:[%s219 + $0xb8] sm:$0xf]
      %v267 = vld [vmem:[%s219 + $0xbc] sm:$0x1]
      %v268 = vld [vmem:[%s219 + $0xc0] sm:$0xf]
      %v269 = vld [vmem:[%s219 + $0xc4] sm:$0xf]
      %v270 = vld [vmem:[%s219 + $0xc8] sm:$0x1]
      %v271 = vld [vmem:[%s219 + $0xcc] sm:$0xf]
      %v272 = vld [vmem:[%s219 + $0xd0] sm:$0xf]
      %v273 = vld [vmem:[%s219 + $0xd4] sm:$0x1]
      %v274 = vld [vmem:[%s1] sm:$0xf]
      %vm275 = vsmask.f32 3328
      %vm276 = vsmask.f32 7440
      %vm277 = vmor %vm275, %vm276
      %v279 = vshrl.u32 %v220, 16
      %v281 = vrot.slane %v279, 4
      %v282 = vshll.u32 %v220, 16
      %v284 = vrot.slane %v282, 5
      %v285 = vor.u32 %v281, %v284
      %v286 = vrot.slane %v285, 4
      %v288 = vshll.u32 %v221, 16
      %v290 = vrot.slane %v288, 5
      %v291 = vsel %vm277, %v286, %v290
      %v292 = vshrl.u32 %v221, 16
      %v294 = vrot.slane %v292, 4
      %v295 = vor.u32 %v294, %v290
      %v296 = vrot.slane %v295, 4
      %v298 = vshll.u32 %v222, 16
      %v300 = vrot.slane %v298, 5
      %v301 = vsel %vm277, %v296, %v300
      %v303 = vshrl.u32 %v223, 16
      %v305 = vrot.slane %v303, 4
      %v306 = vshll.u32 %v223, 16
      %v308 = vrot.slane %v306, 5
      %v309 = vor.u32 %v305, %v308
      %v310 = vrot.slane %v309, 4
      %v312 = vshll.u32 %v224, 16
      %v314 = vrot.slane %v312, 5
      %v315 = vsel %vm277, %v310, %v314
      %v316 = vshrl.u32 %v224, 16
      %v318 = vrot.slane %v316, 4
      %v319 = vor.u32 %v318, %v314
      %v320 = vrot.slane %v319, 4
      %v322 = vshll.u32 %v225, 16
      %v324 = vrot.slane %v322, 5
      %v325 = vsel %vm277, %v320, %v324
      %v327 = vshrl.u32 %v226, 16
      %v329 = vrot.slane %v327, 4
      %v330 = vshll.u32 %v226, 16
      %v332 = vrot.slane %v330, 5
      %v333 = vor.u32 %v329, %v332
      %v334 = vrot.slane %v333, 4
      %v336 = vshll.u32 %v227, 16
      %v338 = vrot.slane %v336, 5
      %v339 = vsel %vm277, %v334, %v338
      %v340 = vshrl.u32 %v227, 16
      %v342 = vrot.slane %v340, 4
      %v343 = vor.u32 %v342, %v338
      %v344 = vrot.slane %v343, 4
      %v346 = vshll.u32 %v228, 16
      %v348 = vrot.slane %v346, 5
      %v349 = vsel %vm277, %v344, %v348
      %v351 = vshrl.u32 %v229, 16
      %v353 = vrot.slane %v351, 4
      %v354 = vshll.u32 %v229, 16
      %v356 = vrot.slane %v354, 5
      %v357 = vor.u32 %v353, %v356
      %v358 = vrot.slane %v357, 4
      %v360 = vshll.u32 %v230, 16
      %v362 = vrot.slane %v360, 5
      %v363 = vsel %vm277, %v358, %v362
      %v364 = vshrl.u32 %v230, 16
      %v366 = vrot.slane %v364, 4
      %v367 = vor.u32 %v366, %v362
      %v368 = vrot.slane %v367, 4
      %v370 = vshll.u32 %v231, 16
      %v372 = vrot.slane %v370, 5
      %v373 = vsel %vm277, %v368, %v372
      %v375 = vshrl.u32 %v232, 16
      %v377 = vrot.slane %v375, 4
      %v378 = vshll.u32 %v232, 16
      %v380 = vrot.slane %v378, 5
      %v381 = vor.u32 %v377, %v380
      %v382 = vrot.slane %v381, 4
      %v384 = vshll.u32 %v233, 16
      %v386 = vrot.slane %v384, 5
      %v387 = vsel %vm277, %v382, %v386
      %v388 = vshrl.u32 %v233, 16
      %v390 = vrot.slane %v388, 4
      %v391 = vor.u32 %v390, %v386
      %v392 = vrot.slane %v391, 4
      %v394 = vshll.u32 %v234, 16
      %v396 = vrot.slane %v394, 5
      %v397 = vsel %vm277, %v392, %v396
      %v399 = vshrl.u32 %v235, 16
      %v401 = vrot.slane %v399, 4
      %v402 = vshll.u32 %v235, 16
      %v404 = vrot.slane %v402, 5
      %v405 = vor.u32 %v401, %v404
      %v406 = vrot.slane %v405, 4
      %v408 = vshll.u32 %v236, 16
      %v410 = vrot.slane %v408, 5
      %v411 = vsel %vm277, %v406, %v410
      %v412 = vshrl.u32 %v236, 16
      %v414 = vrot.slane %v412, 4
      %v415 = vor.u32 %v414, %v410
      %v416 = vrot.slane %v415, 4
      %v418 = vshll.u32 %v237, 16
      %v420 = vrot.slane %v418, 5
      %v421 = vsel %vm277, %v416, %v420
      %v423 = vshrl.u32 %v238, 16
      %v425 = vrot.slane %v423, 4
      %v426 = vshll.u32 %v238, 16
      %v428 = vrot.slane %v426, 5
      %v429 = vor.u32 %v425, %v428
      %v430 = vrot.slane %v429, 4
      %v432 = vshll.u32 %v239, 16
      %v434 = vrot.slane %v432, 5
      %v435 = vsel %vm277, %v430, %v434
      %v436 = vshrl.u32 %v239, 16
      %v438 = vrot.slane %v436, 4
      %v439 = vor.u32 %v438, %v434
      %v440 = vrot.slane %v439, 4
      %v442 = vshll.u32 %v240, 16
      %v444 = vrot.slane %v442, 5
      %v445 = vsel %vm277, %v440, %v444
      %v447 = vshrl.u32 %v241, 16
      %v449 = vrot.slane %v447, 4
      %v450 = vshll.u32 %v241, 16
      %v452 = vrot.slane %v450, 5
      %v453 = vor.u32 %v449, %v452
      %v454 = vrot.slane %v453, 4
      %v456 = vshll.u32 %v242, 16
      %v458 = vrot.slane %v456, 5
      %v459 = vsel %vm277, %v454, %v458
      %v460 = vshrl.u32 %v242, 16
      %v462 = vrot.slane %v460, 4
      %v463 = vor.u32 %v462, %v458
      %v464 = vrot.slane %v463, 4
      %v466 = vshll.u32 %v243, 16
      %v468 = vrot.slane %v466, 5
      %v469 = vsel %vm277, %v464, %v468
      %v471 = vshrl.u32 %v244, 16
      %v473 = vrot.slane %v471, 4
      %v474 = vshll.u32 %v244, 16
      %v476 = vrot.slane %v474, 5
      %v477 = vor.u32 %v473, %v476
      %v478 = vrot.slane %v477, 4
      %v480 = vshll.u32 %v245, 16
      %v482 = vrot.slane %v480, 5
      %v483 = vsel %vm277, %v478, %v482
      %v484 = vshrl.u32 %v245, 16
      %v486 = vrot.slane %v484, 4
      %v487 = vor.u32 %v486, %v482
      %v488 = vrot.slane %v487, 4
      %v490 = vshll.u32 %v246, 16
      %v492 = vrot.slane %v490, 5
      %v493 = vsel %vm277, %v488, %v492
      %v495 = vshrl.u32 %v247, 16
      %v497 = vrot.slane %v495, 4
      %v498 = vshll.u32 %v247, 16
      %v500 = vrot.slane %v498, 5
      %v501 = vor.u32 %v497, %v500
      %v502 = vrot.slane %v501, 4
      %v504 = vshll.u32 %v248, 16
      %v506 = vrot.slane %v504, 5
      %v507 = vsel %vm277, %v502, %v506
      %v508 = vshrl.u32 %v248, 16
      %v510 = vrot.slane %v508, 4
      %v511 = vor.u32 %v510, %v506
      %v512 = vrot.slane %v511, 4
      %v514 = vshll.u32 %v249, 16
      %v516 = vrot.slane %v514, 5
      %v517 = vsel %vm277, %v512, %v516
      %v519 = vshrl.u32 %v250, 16
      %v521 = vrot.slane %v519, 4
      %v522 = vshll.u32 %v250, 16
      %v524 = vrot.slane %v522, 5
      %v525 = vor.u32 %v521, %v524
      %v526 = vrot.slane %v525, 4
      %v528 = vshll.u32 %v251, 16
      %v530 = vrot.slane %v528, 5
      %v531 = vsel %vm277, %v526, %v530
      %v532 = vshrl.u32 %v251, 16
      %v534 = vrot.slane %v532, 4
      %v535 = vor.u32 %v534, %v530
      %v536 = vrot.slane %v535, 4
      %v538 = vshll.u32 %v252, 16
      %v540 = vrot.slane %v538, 5
      %v541 = vsel %vm277, %v536, %v540
      %v543 = vshrl.u32 %v253, 16
      %v545 = vrot.slane %v543, 4
      %v546 = vshll.u32 %v253, 16
      %v548 = vrot.slane %v546, 5
      %v549 = vor.u32 %v545, %v548
      %v550 = vrot.slane %v549, 4
      %v552 = vshll.u32 %v254, 16
      %v554 = vrot.slane %v552, 5
      %v555 = vsel %vm277, %v550, %v554
      %v556 = vshrl.u32 %v254, 16
      %v558 = vrot.slane %v556, 4
      %v559 = vor.u32 %v558, %v554
      %v560 = vrot.slane %v559, 4
      %v562 = vshll.u32 %v255, 16
      %v564 = vrot.slane %v562, 5
      %v565 = vsel %vm277, %v560, %v564
      %v567 = vshrl.u32 %v256, 16
      %v569 = vrot.slane %v567, 4
      %v570 = vshll.u32 %v256, 16
      %v572 = vrot.slane %v570, 5
      %v573 = vor.u32 %v569, %v572
      %v574 = vrot.slane %v573, 4
      %v576 = vshll.u32 %v257, 16
      %v578 = vrot.slane %v576, 5
      %v579 = vsel %vm277, %v574, %v578
      %v580 = vshrl.u32 %v257, 16
      %v582 = vrot.slane %v580, 4
      %v583 = vor.u32 %v582, %v578
      %v584 = vrot.slane %v583, 4
      %v586 = vshll.u32 %v258, 16
      %v588 = vrot.slane %v586, 5
      %v589 = vsel %vm277, %v584, %v588
      %v591 = vshrl.u32 %v259, 16
      %v593 = vrot.slane %v591, 4
      %v594 = vshll.u32 %v259, 16
      %v596 = vrot.slane %v594, 5
      %v597 = vor.u32 %v593, %v596
      %v598 = vrot.slane %v597, 4
      %v600 = vshll.u32 %v260, 16
      %v602 = vrot.slane %v600, 5
      %v603 = vsel %vm277, %v598, %v602
      %v604 = vshrl.u32 %v260, 16
      %v606 = vrot.slane %v604, 4
      %v607 = vor.u32 %v606, %v602
      %v608 = vrot.slane %v607, 4
      %v610 = vshll.u32 %v261, 16
      %v612 = vrot.slane %v610, 5
      %v613 = vsel %vm277, %v608, %v612
      %v615 = vshrl.u32 %v262, 16
      %v617 = vrot.slane %v615, 4
      %v618 = vshll.u32 %v262, 16
      %v620 = vrot.slane %v618, 5
      %v621 = vor.u32 %v617, %v620
      %v622 = vrot.slane %v621, 4
      %v624 = vshll.u32 %v263, 16
      %v626 = vrot.slane %v624, 5
      %v627 = vsel %vm277, %v622, %v626
      %v628 = vshrl.u32 %v263, 16
      %v630 = vrot.slane %v628, 4
      %v631 = vor.u32 %v630, %v626
      %v632 = vrot.slane %v631, 4
      %v634 = vshll.u32 %v264, 16
      %v636 = vrot.slane %v634, 5
      %v637 = vsel %vm277, %v632, %v636
      %v639 = vshrl.u32 %v265, 16
      %v641 = vrot.slane %v639, 4
      %v642 = vshll.u32 %v265, 16
      %v644 = vrot.slane %v642, 5
      %v645 = vor.u32 %v641, %v644
      %v646 = vrot.slane %v645, 4
      %v648 = vshll.u32 %v266, 16
      %v650 = vrot.slane %v648, 5
      %v651 = vsel %vm277, %v646, %v650
      %v652 = vshrl.u32 %v266, 16
      %v654 = vrot.slane %v652, 4
      %v655 = vor.u32 %v654, %v650
      %v656 = vrot.slane %v655, 4
      %v658 = vshll.u32 %v267, 16
      %v660 = vrot.slane %v658, 5
      %v661 = vsel %vm277, %v656, %v660
      %s662 = scalar_lea.vmem %s1, 4
      %v663 = vld [vmem:[%s662] sm:$0xf]
      %v664 = vunpack.c.l.b16 %v291
      %v665 = vunpack.c.l.b16 %v301
      %v666 = vunpack.c.l.b16 %v315
      %v667 = vunpack.c.l.b16 %v325
      %v668 = vunpack.c.l.b16 %v339
      %v669 = vunpack.c.l.b16 %v349
      %v670 = vunpack.c.l.b16 %v363
      %v671 = vunpack.c.l.b16 %v373
      %v672 = vunpack.c.l.b16 %v387
      %v673 = vunpack.c.l.b16 %v397
      %v674 = vunpack.c.l.b16 %v411
      %v675 = vunpack.c.l.b16 %v421
      %v676 = vunpack.c.l.b16 %v435
      %v677 = vunpack.c.l.b16 %v445
      %v678 = vunpack.c.l.b16 %v459
      %v679 = vunpack.c.l.b16 %v469
      %v680 = vunpack.c.l.b16 %v483
      %v681 = vunpack.c.l.b16 %v493
      %v682 = vunpack.c.l.b16 %v507
      %v683 = vunpack.c.l.b16 %v517
      %v684 = vunpack.c.l.b16 %v531
      %v685 = vunpack.c.l.b16 %v541
      %v686 = vunpack.c.l.b16 %v555
      %v687 = vunpack.c.l.b16 %v565
      %v688 = vunpack.c.l.b16 %v579
      %v689 = vunpack.c.l.b16 %v589
      %v690 = vunpack.c.l.b16 %v603
      %v691 = vunpack.c.l.b16 %v613
      %v692 = vunpack.c.l.b16 %v627
      %v693 = vunpack.c.l.b16 %v637
      %v694 = vunpack.c.l.b16 %v651
      %v695 = vunpack.c.l.b16 %v661
      %v696 = vpack.c.b16 %v665, %v664
      %v697 = vpack.c.b16 %v667, %v666
      %v698 = vpack.c.b16 %v669, %v668
      %v699 = vpack.c.b16 %v671, %v670
      %v700 = vpack.c.b16 %v673, %v672
      %v701 = vpack.c.b16 %v675, %v674
      %v702 = vpack.c.b16 %v677, %v676
      %v703 = vpack.c.b16 %v679, %v678
      %v704 = vpack.c.b16 %v681, %v680
      %v705 = vpack.c.b16 %v683, %v682
      %v706 = vpack.c.b16 %v685, %v684
      %v707 = vpack.c.b16 %v687, %v686
      %v708 = vpack.c.b16 %v689, %v688
      %v709 = vpack.c.b16 %v691, %v690
      %v710 = vpack.c.b16 %v693, %v692
      %v711 = vpack.c.b16 %v695, %v694
      %vm712 = vcmask 64512
      %v714 = vsel %vm712, %v696, 0
      %v717 = vsel %vm712, %v697, 0
      %v720 = vsel %vm712, %v698, 0
      %v723 = vsel %vm712, %v699, 0
      %v726 = vsel %vm712, %v700, 0
      %v729 = vsel %vm712, %v701, 0
      %v732 = vsel %vm712, %v702, 0
      %v735 = vsel %vm712, %v703, 0
      %v738 = vsel %vm712, %v704, 0
      %v741 = vsel %vm712, %v705, 0
      %v744 = vsel %vm712, %v706, 0
      %v747 = vsel %vm712, %v707, 0
      %v750 = vsel %vm712, %v708, 0
      %v753 = vsel %vm712, %v709, 0
      %v756 = vsel %vm712, %v710, 0
      %v759 = vsel %vm712, %v711, 0
      %vm761 = vcmask 1043456
      %v763 = vsel %vm761, %v663, 0
      %765 = vmatprep.subr.bf16.mxu0 0
      %766 = vmatpush1.bf16.msra.mxu0 %v763
      %767 = vmatprep.subr.bf16.mxu0 0
      %768 = vmatpush1.bf16.msra.mxu0 0
      %769 = vmatprep.subr.bf16.mxu0 0
      %770 = vmatpush1.bf16.msra.mxu0 0
      %771 = vmatprep.subr.bf16.mxu0 0
      %772 = vmatpush1.bf16.msra.mxu0 0
      %773 = vmatprep.subr.bf16.mxu0 0
      %774 = vmatpush1.bf16.msra.mxu0 0
      %775 = vmatprep.subr.bf16.mxu0 0
      %776 = vmatpush1.bf16.msra.mxu0 0
      %777 = vmatprep.subr.bf16.mxu0 0
      %778 = vmatpush1.bf16.msra.mxu0 0
      %779 = vmatprep.subr.bf16.mxu0 0
      %780 = vmatpush1.bf16.msra.mxu0 0
      %781 = vmatprep.subr.bf16.mxu0 0
      %782 = vmatpush1.bf16.msra.mxu0 0
      %783 = vmatprep.subr.bf16.mxu0 0
      %784 = vmatpush1.bf16.msra.mxu0 0
      %785 = vmatprep.subr.bf16.mxu0 0
      %786 = vmatpush1.bf16.msra.mxu0 0
      %787 = vmatprep.subr.bf16.mxu0 0
      %788 = vmatpush1.bf16.msra.mxu0 0
      %789 = vmatprep.subr.bf16.mxu0 0
      %790 = vmatpush1.bf16.msra.mxu0 0
      %791 = vmatprep.subr.bf16.mxu0 0
      %792 = vmatpush1.bf16.msra.mxu0 0
      %793 = vmatprep.subr.bf16.mxu0 0
      %794 = vmatpush1.bf16.msra.mxu0 0
      %795 = vmatprep.subr.bf16.mxu0 0
      %796 = vmatpush1.bf16.msra.mxu0 0
      %797 = vmatprep.mubr.bf16.mxu0 0
      %798 = vmatmul.mubr.bf16.gmra.mrb[0].mxu0 %v714
      %v799 = vpop.f32.mrb[0].mxu0
      %v800 = vadd.f32 0.0, %v799
      %v801 = vpop.f32.mrb[0].mxu0
      %v802 = vpop.f32.mrb[0].mxu0
      %v803 = vadd.f32 0.0, %v802
      %v804 = vpop.f32.mrb[0].mxu0
      %805 = vmatprep.mubr.bf16.mxu0 0
      %806 = vmatmul.mubr.bf16.gmra.mrb[0].mxu0 %v717
      %v807 = vpop.f32.mrb[0].mxu0
      %v808 = vadd.f32 0.0, %v807
      %v809 = vpop.f32.mrb[0].mxu0
      %v810 = vpop.f32.mrb[0].mxu0
      %v811 = vadd.f32 0.0, %v810
      %v812 = vpop.f32.mrb[0].mxu0
      %813 = vmatprep.mubr.bf16.mxu0 0
      %814 = vmatmul.mubr.bf16.gmra.mrb[0].mxu0 %v720
      %v815 = vpop.f32.mrb[0].mxu0
      %v816 = vadd.f32 0.0, %v815
      %v817 = vpop.f32.mrb[0].mxu0
      %v818 = vpop.f32.mrb[0].mxu0
      %v819 = vadd.f32 0.0, %v818
      %v820 = vpop.f32.mrb[0].mxu0
      %821 = vmatprep.mubr.bf16.mxu0 0
      %822 = vmatmul.mubr.bf16.gmra.mrb[0].mxu0 %v723
      %v823 = vpop.f32.mrb[0].mxu0
      %v824 = vadd.f32 0.0, %v823
      %v825 = vpop.f32.mrb[0].mxu0
      %v826 = vpop.f32.mrb[0].mxu0
      %v827 = vadd.f32 0.0, %v826
      %v828 = vpop.f32.mrb[0].mxu0
      %829 = vmatprep.mubr.bf16.mxu0 0
      %830 = vmatmul.mubr.bf16.gmra.mrb[0].mxu0 %v726
      %v831 = vpop.f32.mrb[0].mxu0
      %v832 = vadd.f32 0.0, %v831
      %v833 = vpop.f32.mrb[0].mxu0
      %v834 = vpop.f32.mrb[0].mxu0
      %v835 = vadd.f32 0.0, %v834
      %v836 = vpop.f32.mrb[0].mxu0
      %837 = vmatprep.mubr.bf16.mxu0 0
      %838 = vmatmul.mubr.bf16.gmra.mrb[0].mxu0 %v729
      %v839 = vpop.f32.mrb[0].mxu0
      %v840 = vadd.f32 0.0, %v839
      %v841 = vpop.f32.mrb[0].mxu0
      %v842 = vpop.f32.mrb[0].mxu0
      %v843 = vadd.f32 0.0, %v842
      %v844 = vpop.f32.mrb[0].mxu0
      %845 = vmatprep.mubr.bf16.mxu0 0
      %846 = vmatmul.mubr.bf16.gmra.mrb[0].mxu0 %v732
      %v847 = vpop.f32.mrb[0].mxu0
      %v848 = vadd.f32 0.0, %v847
      %v849 = vpop.f32.mrb[0].mxu0
      %v850 = vpop.f32.mrb[0].mxu0
      %v851 = vadd.f32 0.0, %v850
      %v852 = vpop.f32.mrb[0].mxu0
      %853 = vmatprep.mubr.bf16.mxu0 0
      %854 = vmatmul.mubr.bf16.gmra.mrb[0].mxu0 %v735
      %v855 = vpop.f32.mrb[0].mxu0
      %v856 = vadd.f32 0.0, %v855
      %v857 = vpop.f32.mrb[0].mxu0
      %v858 = vpop.f32.mrb[0].mxu0
      %v859 = vadd.f32 0.0, %v858
      %v860 = vpop.f32.mrb[0].mxu0
      %861 = vmatprep.mubr.bf16.mxu0 0
      %862 = vmatmul.mubr.bf16.gmra.mrb[0].mxu0 %v738
      %v863 = vpop.f32.mrb[0].mxu0
      %v864 = vadd.f32 0.0, %v863
      %v865 = vpop.f32.mrb[0].mxu0
      %v866 = vpop.f32.mrb[0].mxu0
      %v867 = vadd.f32 0.0, %v866
      %v868 = vpop.f32.mrb[0].mxu0
      %869 = vmatprep.mubr.bf16.mxu0 0
      %870 = vmatmul.mubr.bf16.gmra.mrb[0].mxu0 %v741
      %v871 = vpop.f32.mrb[0].mxu0
      %v872 = vadd.f32 0.0, %v871
      %v873 = vpop.f32.mrb[0].mxu0
      %v874 = vpop.f32.mrb[0].mxu0
      %v875 = vadd.f32 0.0, %v874
      %v876 = vpop.f32.mrb[0].mxu0
      %877 = vmatprep.mubr.bf16.mxu0 0
      %878 = vmatmul.mubr.bf16.gmra.mrb[0].mxu0 %v744
      %v879 = vpop.f32.mrb[0].mxu0
      %v880 = vadd.f32 0.0, %v879
      %v881 = vpop.f32.mrb[0].mxu0
      %v882 = vpop.f32.mrb[0].mxu0
      %v883 = vadd.f32 0.0, %v882
      %v884 = vpop.f32.mrb[0].mxu0
      %885 = vmatprep.mubr.bf16.mxu0 0
      %886 = vmatmul.mubr.bf16.gmra.mrb[0].mxu0 %v747
      %v887 = vpop.f32.mrb[0].mxu0
      %v888 = vadd.f32 0.0, %v887
      %v889 = vpop.f32.mrb[0].mxu0
      %v890 = vpop.f32.mrb[0].mxu0
      %v891 = vadd.f32 0.0, %v890
      %v892 = vpop.f32.mrb[0].mxu0
      %893 = vmatprep.mubr.bf16.mxu0 0
      %894 = vmatmul.mubr.bf16.gmra.mrb[0].mxu0 %v750
      %v895 = vpop.f32.mrb[0].mxu0
      %v896 = vadd.f32 0.0, %v895
      %v897 = vpop.f32.mrb[0].mxu0
      %v898 = vpop.f32.mrb[0].mxu0
      %v899 = vadd.f32 0.0, %v898
      %v900 = vpop.f32.mrb[0].mxu0
      %901 = vmatprep.mubr.bf16.mxu0 0
      %902 = vmatmul.mubr.bf16.gmra.mrb[0].mxu0 %v753
      %v903 = vpop.f32.mrb[0].mxu0
      %v904 = vadd.f32 0.0, %v903
      %v905 = vpop.f32.mrb[0].mxu0
      %v906 = vpop.f32.mrb[0].mxu0
      %v907 = vadd.f32 0.0, %v906
      %v908 = vpop.f32.mrb[0].mxu0
      %909 = vmatprep.mubr.bf16.mxu0 0
      %910 = vmatmul.mubr.bf16.gmra.mrb[0].mxu0 %v756
      %v911 = vpop.f32.mrb[0].mxu0
      %v912 = vadd.f32 0.0, %v911
      %v913 = vpop.f32.mrb[0].mxu0
      %v914 = vpop.f32.mrb[0].mxu0
      %v915 = vadd.f32 0.0, %v914
      %v916 = vpop.f32.mrb[0].mxu0
      %917 = vmatprep.mubr.bf16.mxu0 0
      %918 = vmatmul.mubr.bf16.gmra.mrb[0].mxu0 %v759
      %v919 = vpop.f32.mrb[0].mxu0
      %v920 = vadd.f32 0.0, %v919
      %v921 = vpop.f32.mrb[0].mxu0
      %v922 = vpop.f32.mrb[0].mxu0
      %v923 = vadd.f32 0.0, %v922
      %v924 = vpop.f32.mrb[0].mxu0
      %925 = vdwg.mxu0
      %v958 = vunpack.c.l.b16 %v220
      %v959 = vunpack.c.l.b16 %v221
      %v960 = vunpack.c.l.b16 %v223
      %v961 = vunpack.c.l.b16 %v224
      %v962 = vunpack.c.l.b16 %v226
      %v963 = vunpack.c.l.b16 %v227
      %v964 = vunpack.c.l.b16 %v229
      %v965 = vunpack.c.l.b16 %v230
      %v966 = vunpack.c.l.b16 %v232
      %v967 = vunpack.c.l.b16 %v233
      %v968 = vunpack.c.l.b16 %v235
      %v969 = vunpack.c.l.b16 %v236
      %v970 = vunpack.c.l.b16 %v238
      %v971 = vunpack.c.l.b16 %v239
      %v972 = vunpack.c.l.b16 %v241
      %v973 = vunpack.c.l.b16 %v242
      %v974 = vunpack.c.l.b16 %v244
      %v975 = vunpack.c.l.b16 %v245
      %v976 = vunpack.c.l.b16 %v247
      %v977 = vunpack.c.l.b16 %v248
      %v978 = vunpack.c.l.b16 %v250
      %v979 = vunpack.c.l.b16 %v251
      %v980 = vunpack.c.l.b16 %v253
      %v981 = vunpack.c.l.b16 %v254
      %v982 = vunpack.c.l.b16 %v256
      %v983 = vunpack.c.l.b16 %v257
      %v984 = vunpack.c.l.b16 %v259
      %v985 = vunpack.c.l.b16 %v260
      %v986 = vunpack.c.l.b16 %v262
      %v987 = vunpack.c.l.b16 %v263
      %v988 = vunpack.c.l.b16 %v265
      %v989 = vunpack.c.l.b16 %v266
      %v990 = vpack.c.b16 %v959, %v958
      %v991 = vpack.c.b16 %v961, %v960
      %v992 = vpack.c.b16 %v963, %v962
      %v993 = vpack.c.b16 %v965, %v964
      %v994 = vpack.c.b16 %v967, %v966
      %v995 = vpack.c.b16 %v969, %v968
      %v996 = vpack.c.b16 %v971, %v970
      %v997 = vpack.c.b16 %v973, %v972
      %v998 = vpack.c.b16 %v975, %v974
      %v999 = vpack.c.b16 %v977, %v976
      %v1000 = vpack.c.b16 %v979, %v978
      %v1001 = vpack.c.b16 %v981, %v980
      %v1002 = vpack.c.b16 %v983, %v982
      %v1003 = vpack.c.b16 %v985, %v984
      %v1004 = vpack.c.b16 %v987, %v986
      %v1005 = vpack.c.b16 %v989, %v988
      %v1007 = vsel %vm712, %v990, 0
      %v1010 = vsel %vm712, %v991, 0
      %v1013 = vsel %vm712, %v992, 0
      %v1016 = vsel %vm712, %v993, 0
      %v1019 = vsel %vm712, %v994, 0
      %v1022 = vsel %vm712, %v995, 0
      %v1025 = vsel %vm712, %v996, 0
      %v1028 = vsel %vm712, %v997, 0
      %v1031 = vsel %vm712, %v998, 0
      %v1034 = vsel %vm712, %v999, 0
      %v1037 = vsel %vm712, %v1000, 0
      %v1040 = vsel %vm712, %v1001, 0
      %v1043 = vsel %vm712, %v1002, 0
      %v1046 = vsel %vm712, %v1003, 0
      %v1049 = vsel %vm712, %v1004, 0
      %v1052 = vsel %vm712, %v1005, 0
      %v1055 = vsel %vm761, %v274, 0
      %1057 = vmatprep.subr.bf16.mxu0 0
      %1058 = vmatpush1.bf16.msra.mxu0 %v1055
      %1059 = vmatprep.subr.bf16.mxu0 0
      %1060 = vmatpush1.bf16.msra.mxu0 0
      %1061 = vmatprep.subr.bf16.mxu0 0
      %1062 = vmatpush1.bf16.msra.mxu0 0
      %1063 = vmatprep.subr.bf16.mxu0 0
      %1064 = vmatpush1.bf16.msra.mxu0 0
      %1065 = vmatprep.subr.bf16.mxu0 0
      %1066 = vmatpush1.bf16.msra.mxu0 0
      %1067 = vmatprep.subr.bf16.mxu0 0
      %1068 = vmatpush1.bf16.msra.mxu0 0
      %1069 = vmatprep.subr.bf16.mxu0 0
      %1070 = vmatpush1.bf16.msra.mxu0 0
      %1071 = vmatprep.subr.bf16.mxu0 0
      %1072 = vmatpush1.bf16.msra.mxu0 0
      %1073 = vmatprep.subr.bf16.mxu0 0
      %1074 = vmatpush1.bf16.msra.mxu0 0
      %1075 = vmatprep.subr.bf16.mxu0 0
      %1076 = vmatpush1.bf16.msra.mxu0 0
      %1077 = vmatprep.subr.bf16.mxu0 0
      %1078 = vmatpush1.bf16.msra.mxu0 0
      %1079 = vmatprep.subr.bf16.mxu0 0
      %1080 = vmatpush1.bf16.msra.mxu0 0
      %1081 = vmatprep.subr.bf16.mxu0 0
      %1082 = vmatpush1.bf16.msra.mxu0 0
      %1083 = vmatprep.subr.bf16.mxu0 0
      %1084 = vmatpush1.bf16.msra.mxu0 0
      %1085 = vmatprep.subr.bf16.mxu0 0
      %1086 = vmatpush1.bf16.msra.mxu0 0
      %1087 = vmatprep.subr.bf16.mxu0 0
      %1088 = vmatpush1.bf16.msra.mxu0 0
      %1089 = vmatprep.mubr.bf16.mxu0 0
      %1090 = vmatmul.mubr.bf16.gmra.mrb[0].mxu0 %v1007
      %v1091 = vpop.f32.mrb[0].mxu0
      %v1092 = vadd.f32 %v800, %v1091
      %v1093 = vpop.f32.mrb[0].mxu0
      %v1094 = vpop.f32.mrb[0].mxu0
      %v1095 = vadd.f32 %v803, %v1094
      %v1096 = vpop.f32.mrb[0].mxu0
      %1097 = vmatprep.mubr.bf16.mxu0 0
      %1098 = vmatmul.mubr.bf16.gmra.mrb[0].mxu0 %v1010
      %v1099 = vpop.f32.mrb[0].mxu0
      %v1100 = vadd.f32 %v808, %v1099
      %v1101 = vpop.f32.mrb[0].mxu0
      %v1102 = vpop.f32.mrb[0].mxu0
      %v1103 = vadd.f32 %v811, %v1102
      %v1104 = vpop.f32.mrb[0].mxu0
      %1105 = vmatprep.mubr.bf16.mxu0 0
      %1106 = vmatmul.mubr.bf16.gmra.mrb[0].mxu0 %v1013
      %v1107 = vpop.f32.mrb[0].mxu0
      %v1108 = vadd.f32 %v816, %v1107
      %v1109 = vpop.f32.mrb[0].mxu0
      %v1110 = vpop.f32.mrb[0].mxu0
      %v1111 = vadd.f32 %v819, %v1110
      %v1112 = vpop.f32.mrb[0].mxu0
      %1113 = vmatprep.mubr.bf16.mxu0 0
      %1114 = vmatmul.mubr.bf16.gmra.mrb[0].mxu0 %v1016
      %v1115 = vpop.f32.mrb[0].mxu0
      %v1116 = vadd.f32 %v824, %v1115
      %v1117 = vpop.f32.mrb[0].mxu0
      %v1118 = vpop.f32.mrb[0].mxu0
      %v1119 = vadd.f32 %v827, %v1118
      %v1120 = vpop.f32.mrb[0].mxu0
      %1121 = vmatprep.mubr.bf16.mxu0 0
      %1122 = vmatmul.mubr.bf16.gmra.mrb[0].mxu0 %v1019
      %v1123 = vpop.f32.mrb[0].mxu0
      %v1124 = vadd.f32 %v832, %v1123
      %v1125 = vpop.f32.mrb[0].mxu0
      %v1126 = vpop.f32.mrb[0].mxu0
      %v1127 = vadd.f32 %v835, %v1126
      %v1128 = vpop.f32.mrb[0].mxu0
      %1129 = vmatprep.mubr.bf16.mxu0 0
      %1130 = vmatmul.mubr.bf16.gmra.mrb[0].mxu0 %v1022
      %v1131 = vpop.f32.mrb[0].mxu0
      %v1132 = vadd.f32 %v840, %v1131
      %v1133 = vpop.f32.mrb[0].mxu0
      %v1134 = vpop.f32.mrb[0].mxu0
      %v1135 = vadd.f32 %v843, %v1134
      %v1136 = vpop.f32.mrb[0].mxu0
      %1137 = vmatprep.mubr.bf16.mxu0 0
      %1138 = vmatmul.mubr.bf16.gmra.mrb[0].mxu0 %v1025
      %v1139 = vpop.f32.mrb[0].mxu0
      %v1140 = vadd.f32 %v848, %v1139
      %v1141 = vpop.f32.mrb[0].mxu0
      %v1142 = vpop.f32.mrb[0].mxu0
      %v1143 = vadd.f32 %v851, %v1142
      %v1144 = vpop.f32.mrb[0].mxu0
      %1145 = vmatprep.mubr.bf16.mxu0 0
      %1146 = vmatmul.mubr.bf16.gmra.mrb[0].mxu0 %v1028
      %v1147 = vpop.f32.mrb[0].mxu0
      %v1148 = vadd.f32 %v856, %v1147
      %v1149 = vpop.f32.mrb[0].mxu0
      %v1150 = vpop.f32.mrb[0].mxu0
      %v1151 = vadd.f32 %v859, %v1150
      %v1152 = vpop.f32.mrb[0].mxu0
      %1153 = vmatprep.mubr.bf16.mxu0 0
      %1154 = vmatmul.mubr.bf16.gmra.mrb[0].mxu0 %v1031
      %v1155 = vpop.f32.mrb[0].mxu0
      %v1156 = vadd.f32 %v864, %v1155
      %v1157 = vpop.f32.mrb[0].mxu0
      %v1158 = vpop.f32.mrb[0].mxu0
      %v1159 = vadd.f32 %v867, %v1158
      %v1160 = vpop.f32.mrb[0].mxu0
      %1161 = vmatprep.mubr.bf16.mxu0 0
      %1162 = vmatmul.mubr.bf16.gmra.mrb[0].mxu0 %v1034
      %v1163 = vpop.f32.mrb[0].mxu0
      %v1164 = vadd.f32 %v872, %v1163
      %v1165 = vpop.f32.mrb[0].mxu0
      %v1166 = vpop.f32.mrb[0].mxu0
      %v1167 = vadd.f32 %v875, %v1166
      %v1168 = vpop.f32.mrb[0].mxu0
      %1169 = vmatprep.mubr.bf16.mxu0 0
      %1170 = vmatmul.mubr.bf16.gmra.mrb[0].mxu0 %v1037
      %v1171 = vpop.f32.mrb[0].mxu0
      %v1172 = vadd.f32 %v880, %v1171
      %v1173 = vpop.f32.mrb[0].mxu0
      %v1174 = vpop.f32.mrb[0].mxu0
      %v1175 = vadd.f32 %v883, %v1174
      %v1176 = vpop.f32.mrb[0].mxu0
      %1177 = vmatprep.mubr.bf16.mxu0 0
      %1178 = vmatmul.mubr.bf16.gmra.mrb[0].mxu0 %v1040
      %v1179 = vpop.f32.mrb[0].mxu0
      %v1180 = vadd.f32 %v888, %v1179
      %v1181 = vpop.f32.mrb[0].mxu0
      %v1182 = vpop.f32.mrb[0].mxu0
      %v1183 = vadd.f32 %v891, %v1182
      %v1184 = vpop.f32.mrb[0].mxu0
      %1185 = vmatprep.mubr.bf16.mxu0 0
      %1186 = vmatmul.mubr.bf16.gmra.mrb[0].mxu0 %v1043
      %v1187 = vpop.f32.mrb[0].mxu0
      %v1188 = vadd.f32 %v896, %v1187
      %v1189 = vpop.f32.mrb[0].mxu0
      %v1190 = vpop.f32.mrb[0].mxu0
      %v1191 = vadd.f32 %v899, %v1190
      %v1192 = vpop.f32.mrb[0].mxu0
      %1193 = vmatprep.mubr.bf16.mxu0 0
      %1194 = vmatmul.mubr.bf16.gmra.mrb[0].mxu0 %v1046
      %v1195 = vpop.f32.mrb[0].mxu0
      %v1196 = vadd.f32 %v904, %v1195
      %v1197 = vpop.f32.mrb[0].mxu0
      %v1198 = vpop.f32.mrb[0].mxu0
      %v1199 = vadd.f32 %v907, %v1198
      %v1200 = vpop.f32.mrb[0].mxu0
      %1201 = vmatprep.mubr.bf16.mxu0 0
      %1202 = vmatmul.mubr.bf16.gmra.mrb[0].mxu0 %v1049
      %v1203 = vpop.f32.mrb[0].mxu0
      %v1204 = vadd.f32 %v912, %v1203
      %v1205 = vpop.f32.mrb[0].mxu0
      %v1206 = vpop.f32.mrb[0].mxu0
      %v1207 = vadd.f32 %v915, %v1206
      %v1208 = vpop.f32.mrb[0].mxu0
      %1209 = vmatprep.mubr.bf16.mxu0 0
      %1210 = vmatmul.mubr.bf16.gmra.mrb[0].mxu0 %v1052
      %v1211 = vpop.f32.mrb[0].mxu0
      %v1212 = vadd.f32 %v920, %v1211
      %v1213 = vpop.f32.mrb[0].mxu0
      %v1214 = vpop.f32.mrb[0].mxu0
      %v1215 = vadd.f32 %v923, %v1214
      %v1216 = vpop.f32.mrb[0].mxu0
      %1217 = vdwg.mxu0
      %vm1234 = vcmask 1042432
      %vm1235 = vcmask 1046532
      %vm1236 = vmor %vm1234, %vm1235
      %v1237 = vrot.slane %v220, 5
      %v1238 = vrot.slane %v1237, 4
      %v1239 = vrot.slane %v221, 5
      %v1240 = vsel %vm1236, %v1238, %v1239
      %v1241 = vrot.slane %v1239, 4
      %v1242 = vrot.slane %v222, 5
      %v1243 = vsel %vm1236, %v1241, %v1242
      %v1244 = vrot.slane %v223, 5
      %v1245 = vrot.slane %v1244, 4
      %v1246 = vrot.slane %v224, 5
      %v1247 = vsel %vm1236, %v1245, %v1246
      %v1248 = vrot.slane %v1246, 4
      %v1249 = vrot.slane %v225, 5
      %v1250 = vsel %vm1236, %v1248, %v1249
      %v1251 = vrot.slane %v226, 5
      %v1252 = vrot.slane %v1251, 4
      %v1253 = vrot.slane %v227, 5
      %v1254 = vsel %vm1236, %v1252, %v1253
      %v1255 = vrot.slane %v1253, 4
      %v1256 = vrot.slane %v228, 5
      %v1257 = vsel %vm1236, %v1255, %v1256
      %v1258 = vrot.slane %v229, 5
      %v1259 = vrot.slane %v1258, 4
      %v1260 = vrot.slane %v230, 5
      %v1261 = vsel %vm1236, %v1259, %v1260
      %v1262 = vrot.slane %v1260, 4
      %v1263 = vrot.slane %v231, 5
      %v1264 = vsel %vm1236, %v1262, %v1263
      %v1265 = vrot.slane %v232, 5
      %v1266 = vrot.slane %v1265, 4
      %v1267 = vrot.slane %v233, 5
      %v1268 = vsel %vm1236, %v1266, %v1267
      %v1269 = vrot.slane %v1267, 4
      %v1270 = vrot.slane %v234, 5
      %v1271 = vsel %vm1236, %v1269, %v1270
      %v1272 = vrot.slane %v235, 5
      %v1273 = vrot.slane %v1272, 4
      %v1274 = vrot.slane %v236, 5
      %v1275 = vsel %vm1236, %v1273, %v1274
      %v1276 = vrot.slane %v1274, 4
      %v1277 = vrot.slane %v237, 5
      %v1278 = vsel %vm1236, %v1276, %v1277
      %v1279 = vrot.slane %v238, 5
      %v1280 = vrot.slane %v1279, 4
      %v1281 = vrot.slane %v239, 5
      %v1282 = vsel %vm1236, %v1280, %v1281
      %v1283 = vrot.slane %v1281, 4
      %v1284 = vrot.slane %v240, 5
      %v1285 = vsel %vm1236, %v1283, %v1284
      %v1286 = vrot.slane %v241, 5
      %v1287 = vrot.slane %v1286, 4
      %v1288 = vrot.slane %v242, 5
      %v1289 = vsel %vm1236, %v1287, %v1288
      %v1290 = vrot.slane %v1288, 4
      %v1291 = vrot.slane %v243, 5
      %v1292 = vsel %vm1236, %v1290, %v1291
      %v1293 = vrot.slane %v244, 5
      %v1294 = vrot.slane %v1293, 4
      %v1295 = vrot.slane %v245, 5
      %v1296 = vsel %vm1236, %v1294, %v1295
      %v1297 = vrot.slane %v1295, 4
      %v1298 = vrot.slane %v246, 5
      %v1299 = vsel %vm1236, %v1297, %v1298
      %v1300 = vrot.slane %v247, 5
      %v1301 = vrot.slane %v1300, 4
      %v1302 = vrot.slane %v248, 5
      %v1303 = vsel %vm1236, %v1301, %v1302
      %v1304 = vrot.slane %v1302, 4
      %v1305 = vrot.slane %v249, 5
      %v1306 = vsel %vm1236, %v1304, %v1305
      %v1307 = vrot.slane %v250, 5
      %v1308 = vrot.slane %v1307, 4
      %v1309 = vrot.slane %v251, 5
      %v1310 = vsel %vm1236, %v1308, %v1309
      %v1311 = vrot.slane %v1309, 4
      %v1312 = vrot.slane %v252, 5
      %v1313 = vsel %vm1236, %v1311, %v1312
      %v1314 = vrot.slane %v253, 5
      %v1315 = vrot.slane %v1314, 4
      %v1316 = vrot.slane %v254, 5
      %v1317 = vsel %vm1236, %v1315, %v1316
      %v1318 = vrot.slane %v1316, 4
      %v1319 = vrot.slane %v255, 5
      %v1320 = vsel %vm1236, %v1318, %v1319
      %v1321 = vrot.slane %v256, 5
      %v1322 = vrot.slane %v1321, 4
      %v1323 = vrot.slane %v257, 5
      %v1324 = vsel %vm1236, %v1322, %v1323
      %v1325 = vrot.slane %v1323, 4
      %v1326 = vrot.slane %v258, 5
      %v1327 = vsel %vm1236, %v1325, %v1326
      %v1328 = vrot.slane %v259, 5
      %v1329 = vrot.slane %v1328, 4
      %v1330 = vrot.slane %v260, 5
      %v1331 = vsel %vm1236, %v1329, %v1330
      %v1332 = vrot.slane %v1330, 4
      %v1333 = vrot.slane %v261, 5
      %v1334 = vsel %vm1236, %v1332, %v1333
      %v1335 = vrot.slane %v262, 5
      %v1336 = vrot.slane %v1335, 4
      %v1337 = vrot.slane %v263, 5
      %v1338 = vsel %vm1236, %v1336, %v1337
      %v1339 = vrot.slane %v1337, 4
      %v1340 = vrot.slane %v264, 5
      %v1341 = vsel %vm1236, %v1339, %v1340
      %v1342 = vrot.slane %v265, 5
      %v1343 = vrot.slane %v1342, 4
      %v1344 = vrot.slane %v266, 5
      %v1345 = vsel %vm1236, %v1343, %v1344
      %v1346 = vrot.slane %v1344, 4
      %v1347 = vrot.slane %v267, 5
      %v1348 = vsel %vm1236, %v1346, %v1347
      %s1349 = scalar_lea.vmem %s1, 8
      %v1350 = vld [vmem:[%s1349] sm:$0xf]
      %v1351 = vunpack.c.l.b16 %v1240
      %v1352 = vunpack.c.l.b16 %v1243
      %v1353 = vunpack.c.l.b16 %v1247
      %v1354 = vunpack.c.l.b16 %v1250
      %v1355 = vunpack.c.l.b16 %v1254
      %v1356 = vunpack.c.l.b16 %v1257
      %v1357 = vunpack.c.l.b16 %v1261
      %v1358 = vunpack.c.l.b16 %v1264
      %v1359 = vunpack.c.l.b16 %v1268
      %v1360 = vunpack.c.l.b16 %v1271
      %v1361 = vunpack.c.l.b16 %v1275
      %v1362 = vunpack.c.l.b16 %v1278
      %v1363 = vunpack.c.l.b16 %v1282
      %v1364 = vunpack.c.l.b16 %v1285
      %v1365 = vunpack.c.l.b16 %v1289
      %v1366 = vunpack.c.l.b16 %v1292
      %v1367 = vunpack.c.l.b16 %v1296
      %v1368 = vunpack.c.l.b16 %v1299
      %v1369 = vunpack.c.l.b16 %v1303
      %v1370 = vunpack.c.l.b16 %v1306
      %v1371 = vunpack.c.l.b16 %v1310
      %v1372 = vunpack.c.l.b16 %v1313
      %v1373 = vunpack.c.l.b16 %v1317
      %v1374 = vunpack.c.l.b16 %v1320
      %v1375 = vunpack.c.l.b16 %v1324
      %v1376 = vunpack.c.l.b16 %v1327
      %v1377 = vunpack.c.l.b16 %v1331
      %v1378 = vunpack.c.l.b16 %v1334
      %v1379 = vunpack.c.l.b16 %v1338
      %v1380 = vunpack.c.l.b16 %v1341
      %v1381 = vunpack.c.l.b16 %v1345
      %v1382 = vunpack.c.l.b16 %v1348
      %v1383 = vpack.c.b16 %v1352, %v1351
      %v1384 = vpack.c.b16 %v1354, %v1353
      %v1385 = vpack.c.b16 %v1356, %v1355
      %v1386 = vpack.c.b16 %v1358, %v1357
      %v1387 = vpack.c.b16 %v1360, %v1359
      %v1388 = vpack.c.b16 %v1362, %v1361
      %v1389 = vpack.c.b16 %v1364, %v1363
      %v1390 = vpack.c.b16 %v1366, %v1365
      %v1391 = vpack.c.b16 %v1368, %v1367
      %v1392 = vpack.c.b16 %v1370, %v1369
      %v1393 = vpack.c.b16 %v1372, %v1371
      %v1394 = vpack.c.b16 %v1374, %v1373
      %v1395 = vpack.c.b16 %v1376, %v1375
      %v1396 = vpack.c.b16 %v1378, %v1377
      %v1397 = vpack.c.b16 %v1380, %v1379
      %v1398 = vpack.c.b16 %v1382, %v1381
      %v1400 = vsel %vm712, %v1383, 0
      %v1403 = vsel %vm712, %v1384, 0
      %v1406 = vsel %vm712, %v1385, 0
      %v1409 = vsel %vm712, %v1386, 0
      %v1412 = vsel %vm712, %v1387, 0
      %v1415 = vsel %vm712, %v1388, 0
      %v1418 = vsel %vm712, %v1389, 0
      %v1421 = vsel %vm712, %v1390, 0
      %v1424 = vsel %vm712, %v1391, 0
      %v1427 = vsel %vm712, %v1392, 0
      %v1430 = vsel %vm712, %v1393, 0
      %v1433 = vsel %vm712, %v1394, 0
      %v1436 = vsel %vm712, %v1395, 0
      %v1439 = vsel %vm712, %v1396, 0
      %v1442 = vsel %vm712, %v1397, 0
      %v1445 = vsel %vm712, %v1398, 0
      %v1448 = vsel %vm761, %v1350, 0
      %1450 = vmatprep.subr.bf16.mxu0 0
      %1451 = vmatpush1.bf16.msra.mxu0 %v1448
      %1452 = vmatprep.subr.bf16.mxu0 0
      %1453 = vmatpush1.bf16.msra.mxu0 0
      %1454 = vmatprep.subr.bf16.mxu0 0
      %1455 = vmatpush1.bf16.msra.mxu0 0
      %1456 = vmatprep.subr.bf16.mxu0 0
      %1457 = vmatpush1.bf16.msra.mxu0 0
      %1458 = vmatprep.subr.bf16.mxu0 0
      %1459 = vmatpush1.bf16.msra.mxu0 0
      %1460 = vmatprep.subr.bf16.mxu0 0
      %1461 = vmatpush1.bf16.msra.mxu0 0
      %1462 = vmatprep.subr.bf16.mxu0 0
      %1463 = vmatpush1.bf16.msra.mxu0 0
      %1464 = vmatprep.subr.bf16.mxu0 0
      %1465 = vmatpush1.bf16.msra.mxu0 0
      %1466 = vmatprep.subr.bf16.mxu0 0
      %1467 = vmatpush1.bf16.msra.mxu0 0
      %1468 = vmatprep.subr.bf16.mxu0 0
      %1469 = vmatpush1.bf16.msra.mxu0 0
      %1470 = vmatprep.subr.bf16.mxu0 0
      %1471 = vmatpush1.bf16.msra.mxu0 0
      %1472 = vmatprep.subr.bf16.mxu0 0
      %1473 = vmatpush1.bf16.msra.mxu0 0
      %1474 = vmatprep.subr.bf16.mxu0 0
      %1475 = vmatpush1.bf16.msra.mxu0 0
      %1476 = vmatprep.subr.bf16.mxu0 0
      %1477 = vmatpush1.bf16.msra.mxu0 0
      %1478 = vmatprep.subr.bf16.mxu0 0
      %1479 = vmatpush1.bf16.msra.mxu0 0
      %1480 = vmatprep.subr.bf16.mxu0 0
      %1481 = vmatpush1.bf16.msra.mxu0 0
      %1482 = vmatprep.mubr.bf16.mxu0 0
      %1483 = vmatmul.mubr.bf16.gmra.mrb[0].mxu0 %v1400
      %v1484 = vpop.f32.mrb[0].mxu0
      %v1485 = vadd.f32 0.0, %v1484
      %v1486 = vpop.f32.mrb[0].mxu0
      %v1487 = vpop.f32.mrb[0].mxu0
      %v1488 = vadd.f32 0.0, %v1487
      %v1489 = vpop.f32.mrb[0].mxu0
      %1490 = vmatprep.mubr.bf16.mxu0 0
      %1491 = vmatmul.mubr.bf16.gmra.mrb[0].mxu0 %v1403
      %v1492 = vpop.f32.mrb[0].mxu0
      %v1493 = vadd.f32 0.0, %v1492
      %v1494 = vpop.f32.mrb[0].mxu0
      %v1495 = vpop.f32.mrb[0].mxu0
      %v1496 = vadd.f32 0.0, %v1495
      %v1497 = vpop.f32.mrb[0].mxu0
      %1498 = vmatprep.mubr.bf16.mxu0 0
      %1499 = vmatmul.mubr.bf16.gmra.mrb[0].mxu0 %v1406
      %v1500 = vpop.f32.mrb[0].mxu0
      %v1501 = vadd.f32 0.0, %v1500
      %v1502 = vpop.f32.mrb[0].mxu0
      %v1503 = vpop.f32.mrb[0].mxu0
      %v1504 = vadd.f32 0.0, %v1503
      %v1505 = vpop.f32.mrb[0].mxu0
      %1506 = vmatprep.mubr.bf16.mxu0 0
      %1507 = vmatmul.mubr.bf16.gmra.mrb[0].mxu0 %v1409
      %v1508 = vpop.f32.mrb[0].mxu0
      %v1509 = vadd.f32 0.0, %v1508
      %v1510 = vpop.f32.mrb[0].mxu0
      %v1511 = vpop.f32.mrb[0].mxu0
      %v1512 = vadd.f32 0.0, %v1511
      %v1513 = vpop.f32.mrb[0].mxu0
      %1514 = vmatprep.mubr.bf16.mxu0 0
      %1515 = vmatmul.mubr.bf16.gmra.mrb[0].mxu0 %v1412
      %v1516 = vpop.f32.mrb[0].mxu0
      %v1517 = vadd.f32 0.0, %v1516
      %v1518 = vpop.f32.mrb[0].mxu0
      %v1519 = vpop.f32.mrb[0].mxu0
      %v1520 = vadd.f32 0.0, %v1519
      %v1521 = vpop.f32.mrb[0].mxu0
      %1522 = vmatprep.mubr.bf16.mxu0 0
      %1523 = vmatmul.mubr.bf16.gmra.mrb[0].mxu0 %v1415
      %v1524 = vpop.f32.mrb[0].mxu0
      %v1525 = vadd.f32 0.0, %v1524
      %v1526 = vpop.f32.mrb[0].mxu0
      %v1527 = vpop.f32.mrb[0].mxu0
      %v1528 = vadd.f32 0.0, %v1527
      %v1529 = vpop.f32.mrb[0].mxu0
      %1530 = vmatprep.mubr.bf16.mxu0 0
      %1531 = vmatmul.mubr.bf16.gmra.mrb[0].mxu0 %v1418
      %v1532 = vpop.f32.mrb[0].mxu0
      %v1533 = vadd.f32 0.0, %v1532
      %v1534 = vpop.f32.mrb[0].mxu0
      %v1535 = vpop.f32.mrb[0].mxu0
      %v1536 = vadd.f32 0.0, %v1535
      %v1537 = vpop.f32.mrb[0].mxu0
      %1538 = vmatprep.mubr.bf16.mxu0 0
      %1539 = vmatmul.mubr.bf16.gmra.mrb[0].mxu0 %v1421
      %v1540 = vpop.f32.mrb[0].mxu0
      %v1541 = vadd.f32 0.0, %v1540
      %v1542 = vpop.f32.mrb[0].mxu0
      %v1543 = vpop.f32.mrb[0].mxu0
      %v1544 = vadd.f32 0.0, %v1543
      %v1545 = vpop.f32.mrb[0].mxu0
      %1546 = vmatprep.mubr.bf16.mxu0 0
      %1547 = vmatmul.mubr.bf16.gmra.mrb[0].mxu0 %v1424
      %v1548 = vpop.f32.mrb[0].mxu0
      %v1549 = vadd.f32 0.0, %v1548
      %v1550 = vpop.f32.mrb[0].mxu0
      %v1551 = vpop.f32.mrb[0].mxu0
      %v1552 = vadd.f32 0.0, %v1551
      %v1553 = vpop.f32.mrb[0].mxu0
      %1554 = vmatprep.mubr.bf16.mxu0 0
      %1555 = vmatmul.mubr.bf16.gmra.mrb[0].mxu0 %v1427
      %v1556 = vpop.f32.mrb[0].mxu0
      %v1557 = vadd.f32 0.0, %v1556
      %v1558 = vpop.f32.mrb[0].mxu0
      %v1559 = vpop.f32.mrb[0].mxu0
      %v1560 = vadd.f32 0.0, %v1559
      %v1561 = vpop.f32.mrb[0].mxu0
      %1562 = vmatprep.mubr.bf16.mxu0 0
      %1563 = vmatmul.mubr.bf16.gmra.mrb[0].mxu0 %v1430
      %v1564 = vpop.f32.mrb[0].mxu0
      %v1565 = vadd.f32 0.0, %v1564
      %v1566 = vpop.f32.mrb[0].mxu0
      %v1567 = vpop.f32.mrb[0].mxu0
      %v1568 = vadd.f32 0.0, %v1567
      %v1569 = vpop.f32.mrb[0].mxu0
      %1570 = vmatprep.mubr.bf16.mxu0 0
      %1571 = vmatmul.mubr.bf16.gmra.mrb[0].mxu0 %v1433
      %v1572 = vpop.f32.mrb[0].mxu0
      %v1573 = vadd.f32 0.0, %v1572
      %v1574 = vpop.f32.mrb[0].mxu0
      %v1575 = vpop.f32.mrb[0].mxu0
      %v1576 = vadd.f32 0.0, %v1575
      %v1577 = vpop.f32.mrb[0].mxu0
      %1578 = vmatprep.mubr.bf16.mxu0 0
      %1579 = vmatmul.mubr.bf16.gmra.mrb[0].mxu0 %v1436
      %v1580 = vpop.f32.mrb[0].mxu0
      %v1581 = vadd.f32 0.0, %v1580
      %v1582 = vpop.f32.mrb[0].mxu0
      %v1583 = vpop.f32.mrb[0].mxu0
      %v1584 = vadd.f32 0.0, %v1583
      %v1585 = vpop.f32.mrb[0].mxu0
      %1586 = vmatprep.mubr.bf16.mxu0 0
      %1587 = vmatmul.mubr.bf16.gmra.mrb[0].mxu0 %v1439
      %v1588 = vpop.f32.mrb[0].mxu0
      %v1589 = vadd.f32 0.0, %v1588
      %v1590 = vpop.f32.mrb[0].mxu0
      %v1591 = vpop.f32.mrb[0].mxu0
      %v1592 = vadd.f32 0.0, %v1591
      %v1593 = vpop.f32.mrb[0].mxu0
      %1594 = vmatprep.mubr.bf16.mxu0 0
      %1595 = vmatmul.mubr.bf16.gmra.mrb[0].mxu0 %v1442
      %v1596 = vpop.f32.mrb[0].mxu0
      %v1597 = vadd.f32 0.0, %v1596
      %v1598 = vpop.f32.mrb[0].mxu0
      %v1599 = vpop.f32.mrb[0].mxu0
      %v1600 = vadd.f32 0.0, %v1599
      %v1601 = vpop.f32.mrb[0].mxu0
      %1602 = vmatprep.mubr.bf16.mxu0 0
      %1603 = vmatmul.mubr.bf16.gmra.mrb[0].mxu0 %v1445
      %v1604 = vpop.f32.mrb[0].mxu0
      %v1605 = vadd.f32 0.0, %v1604
      %v1606 = vpop.f32.mrb[0].mxu0
      %v1607 = vpop.f32.mrb[0].mxu0
      %v1608 = vadd.f32 0.0, %v1607
      %v1609 = vpop.f32.mrb[0].mxu0
      %1610 = vdwg.mxu0
      %v1611 = vadd.f32 %v1092, %v1485
      %v1612 = vadd.f32 %v1095, %v1488
      %v1613 = vadd.f32 %v1100, %v1493
      %v1614 = vadd.f32 %v1103, %v1496
      %v1615 = vadd.f32 %v1108, %v1501
      %v1616 = vadd.f32 %v1111, %v1504
      %v1617 = vadd.f32 %v1116, %v1509
      %v1618 = vadd.f32 %v1119, %v1512
      %v1619 = vadd.f32 %v1124, %v1517
      %v1620 = vadd.f32 %v1127, %v1520
      %v1621 = vadd.f32 %v1132, %v1525
      %v1622 = vadd.f32 %v1135, %v1528
      %v1623 = vadd.f32 %v1140, %v1533
      %v1624 = vadd.f32 %v1143, %v1536
      %v1625 = vadd.f32 %v1148, %v1541
      %v1626 = vadd.f32 %v1151, %v1544
      %v1627 = vadd.f32 %v1156, %v1549
      %v1628 = vadd.f32 %v1159, %v1552
      %v1629 = vadd.f32 %v1164, %v1557
      %v1630 = vadd.f32 %v1167, %v1560
      %v1631 = vadd.f32 %v1172, %v1565
      %v1632 = vadd.f32 %v1175, %v1568
      %v1633 = vadd.f32 %v1180, %v1573
      %v1634 = vadd.f32 %v1183, %v1576
      %v1635 = vadd.f32 %v1188, %v1581
      %v1636 = vadd.f32 %v1191, %v1584
      %v1637 = vadd.f32 %v1196, %v1589
      %v1638 = vadd.f32 %v1199, %v1592
      %v1639 = vadd.f32 %v1204, %v1597
      %v1640 = vadd.f32 %v1207, %v1600
      %v1641 = vadd.f32 %v1212, %v1605
      %v1642 = vadd.f32 %v1215, %v1608
      %s1643 = scalar_lea.vmem %s1, 12
      %v1644 = vld [vmem:[%s1643] sm:$0xf]
      %v1647 = vunpack.c.l.b16 %v268
      %v1648 = vunpack.c.l.b16 %v269
      %v1649 = vpack.c.b16 %v1648, %v1647
      %v1651 = vsel %vm712, %v1649, 0
      %v1654 = vsel %vm761, %v1644, 0
      %1656 = vmatprep.subr.bf16.mxu0 0
      %1657 = vmatpush1.bf16.msra.mxu0 %v1654
      %1658 = vmatprep.subr.bf16.mxu0 0
      %1659 = vmatpush1.bf16.msra.mxu0 0
      %1660 = vmatprep.subr.bf16.mxu0 0
      %1661 = vmatpush1.bf16.msra.mxu0 0
      %1662 = vmatprep.subr.bf16.mxu0 0
      %1663 = vmatpush1.bf16.msra.mxu0 0
      %1664 = vmatprep.subr.bf16.mxu0 0
      %1665 = vmatpush1.bf16.msra.mxu0 0
      %1666 = vmatprep.subr.bf16.mxu0 0
      %1667 = vmatpush1.bf16.msra.mxu0 0
      %1668 = vmatprep.subr.bf16.mxu0 0
      %1669 = vmatpush1.bf16.msra.mxu0 0
      %1670 = vmatprep.subr.bf16.mxu0 0
      %1671 = vmatpush1.bf16.msra.mxu0 0
      %1672 = vmatprep.subr.bf16.mxu0 0
      %1673 = vmatpush1.bf16.msra.mxu0 0
      %1674 = vmatprep.subr.bf16.mxu0 0
      %1675 = vmatpush1.bf16.msra.mxu0 0
      %1676 = vmatprep.subr.bf16.mxu0 0
      %1677 = vmatpush1.bf16.msra.mxu0 0
      %1678 = vmatprep.subr.bf16.mxu0 0
      %1679 = vmatpush1.bf16.msra.mxu0 0
      %1680 = vmatprep.subr.bf16.mxu0 0
      %1681 = vmatpush1.bf16.msra.mxu0 0
      %1682 = vmatprep.subr.bf16.mxu0 0
      %1683 = vmatpush1.bf16.msra.mxu0 0
      %1684 = vmatprep.subr.bf16.mxu0 0
      %1685 = vmatpush1.bf16.msra.mxu0 0
      %1686 = vmatprep.subr.bf16.mxu0 0
      %1687 = vmatpush1.bf16.msra.mxu0 0
      %1688 = vmatprep.mubr.bf16.mxu0 0
      %1689 = vmatmul.mubr.bf16.gmra.mrb[0].mxu0 %v1010
      %v1690 = vpop.f32.mrb[0].mxu0
      %v1691 = vadd.f32 0.0, %v1690
      %v1692 = vpop.f32.mrb[0].mxu0
      %v1693 = vpop.f32.mrb[0].mxu0
      %v1694 = vadd.f32 0.0, %v1693
      %v1695 = vpop.f32.mrb[0].mxu0
      %1696 = vmatprep.mubr.bf16.mxu0 0
      %1697 = vmatmul.mubr.bf16.gmra.mrb[0].mxu0 %v1013
      %v1698 = vpop.f32.mrb[0].mxu0
      %v1699 = vadd.f32 0.0, %v1698
      %v1700 = vpop.f32.mrb[0].mxu0
      %v1701 = vpop.f32.mrb[0].mxu0
      %v1702 = vadd.f32 0.0, %v1701
      %v1703 = vpop.f32.mrb[0].mxu0
      %1704 = vmatprep.mubr.bf16.mxu0 0
      %1705 = vmatmul.mubr.bf16.gmra.mrb[0].mxu0 %v1016
      %v1706 = vpop.f32.mrb[0].mxu0
      %v1707 = vadd.f32 0.0, %v1706
      %v1708 = vpop.f32.mrb[0].mxu0
      %v1709 = vpop.f32.mrb[0].mxu0
      %v1710 = vadd.f32 0.0, %v1709
      %v1711 = vpop.f32.mrb[0].mxu0
      %1712 = vmatprep.mubr.bf16.mxu0 0
      %1713 = vmatmul.mubr.bf16.gmra.mrb[0].mxu0 %v1019
      %v1714 = vpop.f32.mrb[0].mxu0
      %v1715 = vadd.f32 0.0, %v1714
      %v1716 = vpop.f32.mrb[0].mxu0
      %v1717 = vpop.f32.mrb[0].mxu0
      %v1718 = vadd.f32 0.0, %v1717
      %v1719 = vpop.f32.mrb[0].mxu0
      %1720 = vmatprep.mubr.bf16.mxu0 0
      %1721 = vmatmul.mubr.bf16.gmra.mrb[0].mxu0 %v1022
      %v1722 = vpop.f32.mrb[0].mxu0
      %v1723 = vadd.f32 0.0, %v1722
      %v1724 = vpop.f32.mrb[0].mxu0
      %v1725 = vpop.f32.mrb[0].mxu0
      %v1726 = vadd.f32 0.0, %v1725
      %v1727 = vpop.f32.mrb[0].mxu0
      %1728 = vmatprep.mubr.bf16.mxu0 0
      %1729 = vmatmul.mubr.bf16.gmra.mrb[0].mxu0 %v1025
      %v1730 = vpop.f32.mrb[0].mxu0
      %v1731 = vadd.f32 0.0, %v1730
      %v1732 = vpop.f32.mrb[0].mxu0
      %v1733 = vpop.f32.mrb[0].mxu0
      %v1734 = vadd.f32 0.0, %v1733
      %v1735 = vpop.f32.mrb[0].mxu0
      %1736 = vmatprep.mubr.bf16.mxu0 0
      %1737 = vmatmul.mubr.bf16.gmra.mrb[0].mxu0 %v1028
      %v1738 = vpop.f32.mrb[0].mxu0
      %v1739 = vadd.f32 0.0, %v1738
      %v1740 = vpop.f32.mrb[0].mxu0
      %v1741 = vpop.f32.mrb[0].mxu0
      %v1742 = vadd.f32 0.0, %v1741
      %v1743 = vpop.f32.mrb[0].mxu0
      %1744 = vmatprep.mubr.bf16.mxu0 0
      %1745 = vmatmul.mubr.bf16.gmra.mrb[0].mxu0 %v1031
      %v1746 = vpop.f32.mrb[0].mxu0
      %v1747 = vadd.f32 0.0, %v1746
      %v1748 = vpop.f32.mrb[0].mxu0
      %v1749 = vpop.f32.mrb[0].mxu0
      %v1750 = vadd.f32 0.0, %v1749
      %v1751 = vpop.f32.mrb[0].mxu0
      %1752 = vmatprep.mubr.bf16.mxu0 0
      %1753 = vmatmul.mubr.bf16.gmra.mrb[0].mxu0 %v1034
      %v1754 = vpop.f32.mrb[0].mxu0
      %v1755 = vadd.f32 0.0, %v1754
      %v1756 = vpop.f32.mrb[0].mxu0
      %v1757 = vpop.f32.mrb[0].mxu0
      %v1758 = vadd.f32 0.0, %v1757
      %v1759 = vpop.f32.mrb[0].mxu0
      %1760 = vmatprep.mubr.bf16.mxu0 0
      %1761 = vmatmul.mubr.bf16.gmra.mrb[0].mxu0 %v1037
      %v1762 = vpop.f32.mrb[0].mxu0
      %v1763 = vadd.f32 0.0, %v1762
      %v1764 = vpop.f32.mrb[0].mxu0
      %v1765 = vpop.f32.mrb[0].mxu0
      %v1766 = vadd.f32 0.0, %v1765
      %v1767 = vpop.f32.mrb[0].mxu0
      %1768 = vmatprep.mubr.bf16.mxu0 0
      %1769 = vmatmul.mubr.bf16.gmra.mrb[0].mxu0 %v1040
      %v1770 = vpop.f32.mrb[0].mxu0
      %v1771 = vadd.f32 0.0, %v1770
      %v1772 = vpop.f32.mrb[0].mxu0
      %v1773 = vpop.f32.mrb[0].mxu0
      %v1774 = vadd.f32 0.0, %v1773
      %v1775 = vpop.f32.mrb[0].mxu0
      %1776 = vmatprep.mubr.bf16.mxu0 0
      %1777 = vmatmul.mubr.bf16.gmra.mrb[0].mxu0 %v1043
      %v1778 = vpop.f32.mrb[0].mxu0
      %v1779 = vadd.f32 0.0, %v1778
      %v1780 = vpop.f32.mrb[0].mxu0
      %v1781 = vpop.f32.mrb[0].mxu0
      %v1782 = vadd.f32 0.0, %v1781
      %v1783 = vpop.f32.mrb[0].mxu0
      %1784 = vmatprep.mubr.bf16.mxu0 0
      %1785 = vmatmul.mubr.bf16.gmra.mrb[0].mxu0 %v1046
      %v1786 = vpop.f32.mrb[0].mxu0
      %v1787 = vadd.f32 0.0, %v1786
      %v1788 = vpop.f32.mrb[0].mxu0
      %v1789 = vpop.f32.mrb[0].mxu0
      %v1790 = vadd.f32 0.0, %v1789
      %v1791 = vpop.f32.mrb[0].mxu0
      %1792 = vmatprep.mubr.bf16.mxu0 0
      %1793 = vmatmul.mubr.bf16.gmra.mrb[0].mxu0 %v1049
      %v1794 = vpop.f32.mrb[0].mxu0
      %v1795 = vadd.f32 0.0, %v1794
      %v1796 = vpop.f32.mrb[0].mxu0
      %v1797 = vpop.f32.mrb[0].mxu0
      %v1798 = vadd.f32 0.0, %v1797
      %v1799 = vpop.f32.mrb[0].mxu0
      %1800 = vmatprep.mubr.bf16.mxu0 0
      %1801 = vmatmul.mubr.bf16.gmra.mrb[0].mxu0 %v1052
      %v1802 = vpop.f32.mrb[0].mxu0
      %v1803 = vadd.f32 0.0, %v1802
      %v1804 = vpop.f32.mrb[0].mxu0
      %v1805 = vpop.f32.mrb[0].mxu0
      %v1806 = vadd.f32 0.0, %v1805
      %v1807 = vpop.f32.mrb[0].mxu0
      %1808 = vmatprep.mubr.bf16.mxu0 0
      %1809 = vmatmul.mubr.bf16.gmra.mrb[0].mxu0 %v1651
      %v1810 = vpop.f32.mrb[0].mxu0
      %v1811 = vadd.f32 0.0, %v1810
      %v1812 = vpop.f32.mrb[0].mxu0
      %v1813 = vpop.f32.mrb[0].mxu0
      %v1814 = vadd.f32 0.0, %v1813
      %v1815 = vpop.f32.mrb[0].mxu0
      %1816 = vdwg.mxu0
      %v1817 = vadd.f32 %v1611, %v1691
      %v1818 = vadd.f32 %v1612, %v1694
      %v1819 = vadd.f32 %v1613, %v1699
      %v1820 = vadd.f32 %v1614, %v1702
      %v1821 = vadd.f32 %v1615, %v1707
      %v1822 = vadd.f32 %v1616, %v1710
      %v1823 = vadd.f32 %v1617, %v1715
      %v1824 = vadd.f32 %v1618, %v1718
      %v1825 = vadd.f32 %v1619, %v1723
      %v1826 = vadd.f32 %v1620, %v1726
      %v1827 = vadd.f32 %v1621, %v1731
      %v1828 = vadd.f32 %v1622, %v1734
      %v1829 = vadd.f32 %v1623, %v1739
      %v1830 = vadd.f32 %v1624, %v1742
      %v1831 = vadd.f32 %v1625, %v1747
      %v1832 = vadd.f32 %v1626, %v1750
      %v1833 = vadd.f32 %v1627, %v1755
      %v1834 = vadd.f32 %v1628, %v1758
      %v1835 = vadd.f32 %v1629, %v1763
      %v1836 = vadd.f32 %v1630, %v1766
      %v1837 = vadd.f32 %v1631, %v1771
      %v1838 = vadd.f32 %v1632, %v1774
      %v1839 = vadd.f32 %v1633, %v1779
      %v1840 = vadd.f32 %v1634, %v1782
      %v1841 = vadd.f32 %v1635, %v1787
      %v1842 = vadd.f32 %v1636, %v1790
      %v1843 = vadd.f32 %v1637, %v1795
      %v1844 = vadd.f32 %v1638, %v1798
      %v1845 = vadd.f32 %v1639, %v1803
      %v1846 = vadd.f32 %v1640, %v1806
      %v1847 = vadd.f32 %v1641, %v1811
      %v1848 = vadd.f32 %v1642, %v1814
      %v1850 = vshrl.u32 %v268, 16
      %v1852 = vrot.slane %v1850, 4
      %v1853 = vshll.u32 %v268, 16
      %v1855 = vrot.slane %v1853, 5
      %v1856 = vor.u32 %v1852, %v1855
      %v1857 = vrot.slane %v1856, 4
      %v1859 = vshll.u32 %v269, 16
      %v1861 = vrot.slane %v1859, 5
      %v1862 = vsel %vm277, %v1857, %v1861
      %v1863 = vshrl.u32 %v269, 16
      %v1865 = vrot.slane %v1863, 4
      %v1866 = vor.u32 %v1865, %v1861
      %v1867 = vrot.slane %v1866, 4
      %v1869 = vshll.u32 %v270, 16
      %v1871 = vrot.slane %v1869, 5
      %v1872 = vsel %vm277, %v1867, %v1871
      %s1873 = scalar_lea.vmem %s1, 16
      %v1874 = vld [vmem:[%s1873] sm:$0xf]
      %v1875 = vunpack.c.l.b16 %v1862
      %v1876 = vunpack.c.l.b16 %v1872
      %v1877 = vpack.c.b16 %v1876, %v1875
      %v1879 = vsel %vm712, %v1877, 0
      %v1882 = vsel %vm761, %v1874, 0
      %1884 = vmatprep.subr.bf16.mxu0 0
      %1885 = vmatpush1.bf16.msra.mxu0 %v1882
      %1886 = vmatprep.subr.bf16.mxu0 0
      %1887 = vmatpush1.bf16.msra.mxu0 0
      %1888 = vmatprep.subr.bf16.mxu0 0
      %1889 = vmatpush1.bf16.msra.mxu0 0
      %1890 = vmatprep.subr.bf16.mxu0 0
      %1891 = vmatpush1.bf16.msra.mxu0 0
      %1892 = vmatprep.subr.bf16.mxu0 0
      %1893 = vmatpush1.bf16.msra.mxu0 0
      %1894 = vmatprep.subr.bf16.mxu0 0
      %1895 = vmatpush1.bf16.msra.mxu0 0
      %1896 = vmatprep.subr.bf16.mxu0 0
      %1897 = vmatpush1.bf16.msra.mxu0 0
      %1898 = vmatprep.subr.bf16.mxu0 0
      %1899 = vmatpush1.bf16.msra.mxu0 0
      %1900 = vmatprep.subr.bf16.mxu0 0
      %1901 = vmatpush1.bf16.msra.mxu0 0
      %1902 = vmatprep.subr.bf16.mxu0 0
      %1903 = vmatpush1.bf16.msra.mxu0 0
      %1904 = vmatprep.subr.bf16.mxu0 0
      %1905 = vmatpush1.bf16.msra.mxu0 0
      %1906 = vmatprep.subr.bf16.mxu0 0
      %1907 = vmatpush1.bf16.msra.mxu0 0
      %1908 = vmatprep.subr.bf16.mxu0 0
      %1909 = vmatpush1.bf16.msra.mxu0 0
      %1910 = vmatprep.subr.bf16.mxu0 0
      %1911 = vmatpush1.bf16.msra.mxu0 0
      %1912 = vmatprep.subr.bf16.mxu0 0
      %1913 = vmatpush1.bf16.msra.mxu0 0
      %1914 = vmatprep.subr.bf16.mxu0 0
      %1915 = vmatpush1.bf16.msra.mxu0 0
      %1916 = vmatprep.mubr.bf16.mxu0 0
      %1917 = vmatmul.mubr.bf16.gmra.mrb[0].mxu0 %v717
      %v1918 = vpop.f32.mrb[0].mxu0
      %v1919 = vadd.f32 0.0, %v1918
      %v1920 = vpop.f32.mrb[0].mxu0
      %v1921 = vpop.f32.mrb[0].mxu0
      %v1922 = vadd.f32 0.0, %v1921
      %v1923 = vpop.f32.mrb[0].mxu0
      %1924 = vmatprep.mubr.bf16.mxu0 0
      %1925 = vmatmul.mubr.bf16.gmra.mrb[0].mxu0 %v720
      %v1926 = vpop.f32.mrb[0].mxu0
      %v1927 = vadd.f32 0.0, %v1926
      %v1928 = vpop.f32.mrb[0].mxu0
      %v1929 = vpop.f32.mrb[0].mxu0
      %v1930 = vadd.f32 0.0, %v1929
      %v1931 = vpop.f32.mrb[0].mxu0
      %1932 = vmatprep.mubr.bf16.mxu0 0
      %1933 = vmatmul.mubr.bf16.gmra.mrb[0].mxu0 %v723
      %v1934 = vpop.f32.mrb[0].mxu0
      %v1935 = vadd.f32 0.0, %v1934
      %v1936 = vpop.f32.mrb[0].mxu0
      %v1937 = vpop.f32.mrb[0].mxu0
      %v1938 = vadd.f32 0.0, %v1937
      %v1939 = vpop.f32.mrb[0].mxu0
      %1940 = vmatprep.mubr.bf16.mxu0 0
      %1941 = vmatmul.mubr.bf16.gmra.mrb[0].mxu0 %v726
      %v1942 = vpop.f32.mrb[0].mxu0
      %v1943 = vadd.f32 0.0, %v1942
      %v1944 = vpop.f32.mrb[0].mxu0
      %v1945 = vpop.f32.mrb[0].mxu0
      %v1946 = vadd.f32 0.0, %v1945
      %v1947 = vpop.f32.mrb[0].mxu0
      %1948 = vmatprep.mubr.bf16.mxu0 0
      %1949 = vmatmul.mubr.bf16.gmra.mrb[0].mxu0 %v729
      %v1950 = vpop.f32.mrb[0].mxu0
      %v1951 = vadd.f32 0.0, %v1950
      %v1952 = vpop.f32.mrb[0].mxu0
      %v1953 = vpop.f32.mrb[0].mxu0
      %v1954 = vadd.f32 0.0, %v1953
      %v1955 = vpop.f32.mrb[0].mxu0
      %1956 = vmatprep.mubr.bf16.mxu0 0
      %1957 = vmatmul.mubr.bf16.gmra.mrb[0].mxu0 %v732
      %v1958 = vpop.f32.mrb[0].mxu0
      %v1959 = vadd.f32 0.0, %v1958
      %v1960 = vpop.f32.mrb[0].mxu0
      %v1961 = vpop.f32.mrb[0].mxu0
      %v1962 = vadd.f32 0.0, %v1961
      %v1963 = vpop.f32.mrb[0].mxu0
      %1964 = vmatprep.mubr.bf16.mxu0 0
      %1965 = vmatmul.mubr.bf16.gmra.mrb[0].mxu0 %v735
      %v1966 = vpop.f32.mrb[0].mxu0
      %v1967 = vadd.f32 0.0, %v1966
      %v1968 = vpop.f32.mrb[0].mxu0
      %v1969 = vpop.f32.mrb[0].mxu0
      %v1970 = vadd.f32 0.0, %v1969
      %v1971 = vpop.f32.mrb[0].mxu0
      %1972 = vmatprep.mubr.bf16.mxu0 0
      %1973 = vmatmul.mubr.bf16.gmra.mrb[0].mxu0 %v738
      %v1974 = vpop.f32.mrb[0].mxu0
      %v1975 = vadd.f32 0.0, %v1974
      %v1976 = vpop.f32.mrb[0].mxu0
      %v1977 = vpop.f32.mrb[0].mxu0
      %v1978 = vadd.f32 0.0, %v1977
      %v1979 = vpop.f32.mrb[0].mxu0
      %1980 = vmatprep.mubr.bf16.mxu0 0
      %1981 = vmatmul.mubr.bf16.gmra.mrb[0].mxu0 %v741
      %v1982 = vpop.f32.mrb[0].mxu0
      %v1983 = vadd.f32 0.0, %v1982
      %v1984 = vpop.f32.mrb[0].mxu0
      %v1985 = vpop.f32.mrb[0].mxu0
      %v1986 = vadd.f32 0.0, %v1985
      %v1987 = vpop.f32.mrb[0].mxu0
      %1988 = vmatprep.mubr.bf16.mxu0 0
      %1989 = vmatmul.mubr.bf16.gmra.mrb[0].mxu0 %v744
      %v1990 = vpop.f32.mrb[0].mxu0
      %v1991 = vadd.f32 0.0, %v1990
      %v1992 = vpop.f32.mrb[0].mxu0
      %v1993 = vpop.f32.mrb[0].mxu0
      %v1994 = vadd.f32 0.0, %v1993
      %v1995 = vpop.f32.mrb[0].mxu0
      %1996 = vmatprep.mubr.bf16.mxu0 0
      %1997 = vmatmul.mubr.bf16.gmra.mrb[0].mxu0 %v747
      %v1998 = vpop.f32.mrb[0].mxu0
      %v1999 = vadd.f32 0.0, %v1998
      %v2000 = vpop.f32.mrb[0].mxu0
      %v2001 = vpop.f32.mrb[0].mxu0
      %v2002 = vadd.f32 0.0, %v2001
      %v2003 = vpop.f32.mrb[0].mxu0
      %2004 = vmatprep.mubr.bf16.mxu0 0
      %2005 = vmatmul.mubr.bf16.gmra.mrb[0].mxu0 %v750
      %v2006 = vpop.f32.mrb[0].mxu0
      %v2007 = vadd.f32 0.0, %v2006
      %v2008 = vpop.f32.mrb[0].mxu0
      %v2009 = vpop.f32.mrb[0].mxu0
      %v2010 = vadd.f32 0.0, %v2009
      %v2011 = vpop.f32.mrb[0].mxu0
      %2012 = vmatprep.mubr.bf16.mxu0 0
      %2013 = vmatmul.mubr.bf16.gmra.mrb[0].mxu0 %v753
      %v2014 = vpop.f32.mrb[0].mxu0
      %v2015 = vadd.f32 0.0, %v2014
      %v2016 = vpop.f32.mrb[0].mxu0
      %v2017 = vpop.f32.mrb[0].mxu0
      %v2018 = vadd.f32 0.0, %v2017
      %v2019 = vpop.f32.mrb[0].mxu0
      %2020 = vmatprep.mubr.bf16.mxu0 0
      %2021 = vmatmul.mubr.bf16.gmra.mrb[0].mxu0 %v756
      %v2022 = vpop.f32.mrb[0].mxu0
      %v2023 = vadd.f32 0.0, %v2022
      %v2024 = vpop.f32.mrb[0].mxu0
      %v2025 = vpop.f32.mrb[0].mxu0
      %v2026 = vadd.f32 0.0, %v2025
      %v2027 = vpop.f32.mrb[0].mxu0
      %2028 = vmatprep.mubr.bf16.mxu0 0
      %2029 = vmatmul.mubr.bf16.gmra.mrb[0].mxu0 %v759
      %v2030 = vpop.f32.mrb[0].mxu0
      %v2031 = vadd.f32 0.0, %v2030
      %v2032 = vpop.f32.mrb[0].mxu0
      %v2033 = vpop.f32.mrb[0].mxu0
      %v2034 = vadd.f32 0.0, %v2033
      %v2035 = vpop.f32.mrb[0].mxu0
      %2036 = vmatprep.mubr.bf16.mxu0 0
      %2037 = vmatmul.mubr.bf16.gmra.mrb[0].mxu0 %v1879
      %v2038 = vpop.f32.mrb[0].mxu0
      %v2039 = vadd.f32 0.0, %v2038
      %v2040 = vpop.f32.mrb[0].mxu0
      %v2041 = vpop.f32.mrb[0].mxu0
      %v2042 = vadd.f32 0.0, %v2041
      %v2043 = vpop.f32.mrb[0].mxu0
      %2044 = vdwg.mxu0
      %v2045 = vadd.f32 %v1817, %v1919
      %v2046 = vadd.f32 %v1818, %v1922
      %v2047 = vadd.f32 %v1819, %v1927
      %v2048 = vadd.f32 %v1820, %v1930
      %v2049 = vadd.f32 %v1821, %v1935
      %v2050 = vadd.f32 %v1822, %v1938
      %v2051 = vadd.f32 %v1823, %v1943
      %v2052 = vadd.f32 %v1824, %v1946
      %v2053 = vadd.f32 %v1825, %v1951
      %v2054 = vadd.f32 %v1826, %v1954
      %v2055 = vadd.f32 %v1827, %v1959
      %v2056 = vadd.f32 %v1828, %v1962
      %v2057 = vadd.f32 %v1829, %v1967
      %v2058 = vadd.f32 %v1830, %v1970
      %v2059 = vadd.f32 %v1831, %v1975
      %v2060 = vadd.f32 %v1832, %v1978
      %v2061 = vadd.f32 %v1833, %v1983
      %v2062 = vadd.f32 %v1834, %v1986
      %v2063 = vadd.f32 %v1835, %v1991
      %v2064 = vadd.f32 %v1836, %v1994
      %v2065 = vadd.f32 %v1837, %v1999
      %v2066 = vadd.f32 %v1838, %v2002
      %v2067 = vadd.f32 %v1839, %v2007
      %v2068 = vadd.f32 %v1840, %v2010
      %v2069 = vadd.f32 %v1841, %v2015
      %v2070 = vadd.f32 %v1842, %v2018
      %v2071 = vadd.f32 %v1843, %v2023
      %v2072 = vadd.f32 %v1844, %v2026
      %v2073 = vadd.f32 %v1845, %v2031
      %v2074 = vadd.f32 %v1846, %v2034
      %v2075 = vadd.f32 %v1847, %v2039
      %v2076 = vadd.f32 %v1848, %v2042
      %v2078 = vrot.slane %v268, 5
      %v2079 = vrot.slane %v2078, 4
      %v2080 = vrot.slane %v269, 5
      %v2081 = vsel %vm1236, %v2079, %v2080
      %v2082 = vrot.slane %v2080, 4
      %v2083 = vrot.slane %v270, 5
      %v2084 = vsel %vm1236, %v2082, %v2083
      %s2085 = scalar_lea.vmem %s1, 20
      %v2086 = vld [vmem:[%s2085] sm:$0xf]
      %v2087 = vunpack.c.l.b16 %v2081
      %v2088 = vunpack.c.l.b16 %v2084
      %v2089 = vpack.c.b16 %v2088, %v2087
      %v2091 = vsel %vm712, %v2089, 0
      %v2094 = vsel %vm761, %v2086, 0
      %2096 = vmatprep.subr.bf16.mxu0 0
      %2097 = vmatpush1.bf16.msra.mxu0 %v2094
      %2098 = vmatprep.subr.bf16.mxu0 0
      %2099 = vmatpush1.bf16.msra.mxu0 0
      %2100 = vmatprep.subr.bf16.mxu0 0
      %2101 = vmatpush1.bf16.msra.mxu0 0
      %2102 = vmatprep.subr.bf16.mxu0 0
      %2103 = vmatpush1.bf16.msra.mxu0 0
      %2104 = vmatprep.subr.bf16.mxu0 0
      %2105 = vmatpush1.bf16.msra.mxu0 0
      %2106 = vmatprep.subr.bf16.mxu0 0
      %2107 = vmatpush1.bf16.msra.mxu0 0
      %2108 = vmatprep.subr.bf16.mxu0 0
      %2109 = vmatpush1.bf16.msra.mxu0 0
      %2110 = vmatprep.subr.bf16.mxu0 0
      %2111 = vmatpush1.bf16.msra.mxu0 0
      %2112 = vmatprep.subr.bf16.mxu0 0
      %2113 = vmatpush1.bf16.msra.mxu0 0
      %2114 = vmatprep.subr.bf16.mxu0 0
      %2115 = vmatpush1.bf16.msra.mxu0 0
      %2116 = vmatprep.subr.bf16.mxu0 0
      %2117 = vmatpush1.bf16.msra.mxu0 0
      %2118 = vmatprep.subr.bf16.mxu0 0
      %2119 = vmatpush1.bf16.msra.mxu0 0
      %2120 = vmatprep.subr.bf16.mxu0 0
      %2121 = vmatpush1.bf16.msra.mxu0 0
      %2122 = vmatprep.subr.bf16.mxu0 0
      %2123 = vmatpush1.bf16.msra.mxu0 0
      %2124 = vmatprep.subr.bf16.mxu0 0
      %2125 = vmatpush1.bf16.msra.mxu0 0
      %2126 = vmatprep.subr.bf16.mxu0 0
      %2127 = vmatpush1.bf16.msra.mxu0 0
      %2128 = vmatprep.mubr.bf16.mxu0 0
      %2129 = vmatmul.mubr.bf16.gmra.mrb[0].mxu0 %v1403
      %v2130 = vpop.f32.mrb[0].mxu0
      %v2131 = vadd.f32 0.0, %v2130
      %v2132 = vpop.f32.mrb[0].mxu0
      %v2133 = vpop.f32.mrb[0].mxu0
      %v2134 = vadd.f32 0.0, %v2133
      %v2135 = vpop.f32.mrb[0].mxu0
      %2136 = vmatprep.mubr.bf16.mxu0 0
      %2137 = vmatmul.mubr.bf16.gmra.mrb[0].mxu0 %v1406
      %v2138 = vpop.f32.mrb[0].mxu0
      %v2139 = vadd.f32 0.0, %v2138
      %v2140 = vpop.f32.mrb[0].mxu0
      %v2141 = vpop.f32.mrb[0].mxu0
      %v2142 = vadd.f32 0.0, %v2141
      %v2143 = vpop.f32.mrb[0].mxu0
      %2144 = vmatprep.mubr.bf16.mxu0 0
      %2145 = vmatmul.mubr.bf16.gmra.mrb[0].mxu0 %v1409
      %v2146 = vpop.f32.mrb[0].mxu0
      %v2147 = vadd.f32 0.0, %v2146
      %v2148 = vpop.f32.mrb[0].mxu0
      %v2149 = vpop.f32.mrb[0].mxu0
      %v2150 = vadd.f32 0.0, %v2149
      %v2151 = vpop.f32.mrb[0].mxu0
      %2152 = vmatprep.mubr.bf16.mxu0 0
      %2153 = vmatmul.mubr.bf16.gmra.mrb[0].mxu0 %v1412
      %v2154 = vpop.f32.mrb[0].mxu0
      %v2155 = vadd.f32 0.0, %v2154
      %v2156 = vpop.f32.mrb[0].mxu0
      %v2157 = vpop.f32.mrb[0].mxu0
      %v2158 = vadd.f32 0.0, %v2157
      %v2159 = vpop.f32.mrb[0].mxu0
      %2160 = vmatprep.mubr.bf16.mxu0 0
      %2161 = vmatmul.mubr.bf16.gmra.mrb[0].mxu0 %v1415
      %v2162 = vpop.f32.mrb[0].mxu0
      %v2163 = vadd.f32 0.0, %v2162
      %v2164 = vpop.f32.mrb[0].mxu0
      %v2165 = vpop.f32.mrb[0].mxu0
      %v2166 = vadd.f32 0.0, %v2165
      %v2167 = vpop.f32.mrb[0].mxu0
      %2168 = vmatprep.mubr.bf16.mxu0 0
      %2169 = vmatmul.mubr.bf16.gmra.mrb[0].mxu0 %v1418
      %v2170 = vpop.f32.mrb[0].mxu0
      %v2171 = vadd.f32 0.0, %v2170
      %v2172 = vpop.f32.mrb[0].mxu0
      %v2173 = vpop.f32.mrb[0].mxu0
      %v2174 = vadd.f32 0.0, %v2173
      %v2175 = vpop.f32.mrb[0].mxu0
      %2176 = vmatprep.mubr.bf16.mxu0 0
      %2177 = vmatmul.mubr.bf16.gmra.mrb[0].mxu0 %v1421
      %v2178 = vpop.f32.mrb[0].mxu0
      %v2179 = vadd.f32 0.0, %v2178
      %v2180 = vpop.f32.mrb[0].mxu0
      %v2181 = vpop.f32.mrb[0].mxu0
      %v2182 = vadd.f32 0.0, %v2181
      %v2183 = vpop.f32.mrb[0].mxu0
      %2184 = vmatprep.mubr.bf16.mxu0 0
      %2185 = vmatmul.mubr.bf16.gmra.mrb[0].mxu0 %v1424
      %v2186 = vpop.f32.mrb[0].mxu0
      %v2187 = vadd.f32 0.0, %v2186
      %v2188 = vpop.f32.mrb[0].mxu0
      %v2189 = vpop.f32.mrb[0].mxu0
      %v2190 = vadd.f32 0.0, %v2189
      %v2191 = vpop.f32.mrb[0].mxu0
      %2192 = vmatprep.mubr.bf16.mxu0 0
      %2193 = vmatmul.mubr.bf16.gmra.mrb[0].mxu0 %v1427
      %v2194 = vpop.f32.mrb[0].mxu0
      %v2195 = vadd.f32 0.0, %v2194
      %v2196 = vpop.f32.mrb[0].mxu0
      %v2197 = vpop.f32.mrb[0].mxu0
      %v2198 = vadd.f32 0.0, %v2197
      %v2199 = vpop.f32.mrb[0].mxu0
      %2200 = vmatprep.mubr.bf16.mxu0 0
      %2201 = vmatmul.mubr.bf16.gmra.mrb[0].mxu0 %v1430
      %v2202 = vpop.f32.mrb[0].mxu0
      %v2203 = vadd.f32 0.0, %v2202
      %v2204 = vpop.f32.mrb[0].mxu0
      %v2205 = vpop.f32.mrb[0].mxu0
      %v2206 = vadd.f32 0.0, %v2205
      %v2207 = vpop.f32.mrb[0].mxu0
      %2208 = vmatprep.mubr.bf16.mxu0 0
      %2209 = vmatmul.mubr.bf16.gmra.mrb[0].mxu0 %v1433
      %v2210 = vpop.f32.mrb[0].mxu0
      %v2211 = vadd.f32 0.0, %v2210
      %v2212 = vpop.f32.mrb[0].mxu0
      %v2213 = vpop.f32.mrb[0].mxu0
      %v2214 = vadd.f32 0.0, %v2213
      %v2215 = vpop.f32.mrb[0].mxu0
      %2216 = vmatprep.mubr.bf16.mxu0 0
      %2217 = vmatmul.mubr.bf16.gmra.mrb[0].mxu0 %v1436
      %v2218 = vpop.f32.mrb[0].mxu0
      %v2219 = vadd.f32 0.0, %v2218
      %v2220 = vpop.f32.mrb[0].mxu0
      %v2221 = vpop.f32.mrb[0].mxu0
      %v2222 = vadd.f32 0.0, %v2221
      %v2223 = vpop.f32.mrb[0].mxu0
      %2224 = vmatprep.mubr.bf16.mxu0 0
      %2225 = vmatmul.mubr.bf16.gmra.mrb[0].mxu0 %v1439
      %v2226 = vpop.f32.mrb[0].mxu0
      %v2227 = vadd.f32 0.0, %v2226
      %v2228 = vpop.f32.mrb[0].mxu0
      %v2229 = vpop.f32.mrb[0].mxu0
      %v2230 = vadd.f32 0.0, %v2229
      %v2231 = vpop.f32.mrb[0].mxu0
      %2232 = vmatprep.mubr.bf16.mxu0 0
      %2233 = vmatmul.mubr.bf16.gmra.mrb[0].mxu0 %v1442
      %v2234 = vpop.f32.mrb[0].mxu0
      %v2235 = vadd.f32 0.0, %v2234
      %v2236 = vpop.f32.mrb[0].mxu0
      %v2237 = vpop.f32.mrb[0].mxu0
      %v2238 = vadd.f32 0.0, %v2237
      %v2239 = vpop.f32.mrb[0].mxu0
      %2240 = vmatprep.mubr.bf16.mxu0 0
      %2241 = vmatmul.mubr.bf16.gmra.mrb[0].mxu0 %v1445
      %v2242 = vpop.f32.mrb[0].mxu0
      %v2243 = vadd.f32 0.0, %v2242
      %v2244 = vpop.f32.mrb[0].mxu0
      %v2245 = vpop.f32.mrb[0].mxu0
      %v2246 = vadd.f32 0.0, %v2245
      %v2247 = vpop.f32.mrb[0].mxu0
      %2248 = vmatprep.mubr.bf16.mxu0 0
      %2249 = vmatmul.mubr.bf16.gmra.mrb[0].mxu0 %v2091
      %v2250 = vpop.f32.mrb[0].mxu0
      %v2251 = vadd.f32 0.0, %v2250
      %v2252 = vpop.f32.mrb[0].mxu0
      %v2253 = vpop.f32.mrb[0].mxu0
      %v2254 = vadd.f32 0.0, %v2253
      %v2255 = vpop.f32.mrb[0].mxu0
      %2256 = vdwg.mxu0
      %v2257 = vadd.f32 %v2045, %v2131
      %v2258 = vadd.f32 %v2046, %v2134
      %v2259 = vadd.f32 %v2047, %v2139
      %v2260 = vadd.f32 %v2048, %v2142
      %v2261 = vadd.f32 %v2049, %v2147
      %v2262 = vadd.f32 %v2050, %v2150
      %v2263 = vadd.f32 %v2051, %v2155
      %v2264 = vadd.f32 %v2052, %v2158
      %v2265 = vadd.f32 %v2053, %v2163
      %v2266 = vadd.f32 %v2054, %v2166
      %v2267 = vadd.f32 %v2055, %v2171
      %v2268 = vadd.f32 %v2056, %v2174
      %v2269 = vadd.f32 %v2057, %v2179
      %v2270 = vadd.f32 %v2058, %v2182
      %v2271 = vadd.f32 %v2059, %v2187
      %v2272 = vadd.f32 %v2060, %v2190
      %v2273 = vadd.f32 %v2061, %v2195
      %v2274 = vadd.f32 %v2062, %v2198
      %v2275 = vadd.f32 %v2063, %v2203
      %v2276 = vadd.f32 %v2064, %v2206
      %v2277 = vadd.f32 %v2065, %v2211
      %v2278 = vadd.f32 %v2066, %v2214
      %v2279 = vadd.f32 %v2067, %v2219
      %v2280 = vadd.f32 %v2068, %v2222
      %v2281 = vadd.f32 %v2069, %v2227
      %v2282 = vadd.f32 %v2070, %v2230
      %v2283 = vadd.f32 %v2071, %v2235
      %v2284 = vadd.f32 %v2072, %v2238
      %v2285 = vadd.f32 %v2073, %v2243
      %v2286 = vadd.f32 %v2074, %v2246
      %v2287 = vadd.f32 %v2075, %v2251
      %v2288 = vadd.f32 %v2076, %v2254
      %s2289 = scalar_lea.vmem %s1, 24
      %v2290 = vld [vmem:[%s2289] sm:$0xf]
      %v2293 = vunpack.c.l.b16 %v271
      %v2294 = vunpack.c.l.b16 %v272
      %v2295 = vpack.c.b16 %v2294, %v2293
      %v2297 = vsel %vm712, %v2295, 0
      %v2300 = vsel %vm761, %v2290, 0
      %2302 = vmatprep.subr.bf16.mxu0 0
      %2303 = vmatpush1.bf16.msra.mxu0 %v2300
      %2304 = vmatprep.subr.bf16.mxu0 0
      %2305 = vmatpush1.bf16.msra.mxu0 0
      %2306 = vmatprep.subr.bf16.mxu0 0
      %2307 = vmatpush1.bf16.msra.mxu0 0
      %2308 = vmatprep.subr.bf16.mxu0 0
      %2309 = vmatpush1.bf16.msra.mxu0 0
      %2310 = vmatprep.subr.bf16.mxu0 0
      %2311 = vmatpush1.bf16.msra.mxu0 0
      %2312 = vmatprep.subr.bf16.mxu0 0
      %2313 = vmatpush1.bf16.msra.mxu0 0
      %2314 = vmatprep.subr.bf16.mxu0 0
      %2315 = vmatpush1.bf16.msra.mxu0 0
      %2316 = vmatprep.subr.bf16.mxu0 0
      %2317 = vmatpush1.bf16.msra.mxu0 0
      %2318 = vmatprep.subr.bf16.mxu0 0
      %2319 = vmatpush1.bf16.msra.mxu0 0
      %2320 = vmatprep.subr.bf16.mxu0 0
      %2321 = vmatpush1.bf16.msra.mxu0 0
      %2322 = vmatprep.subr.bf16.mxu0 0
      %2323 = vmatpush1.bf16.msra.mxu0 0
      %2324 = vmatprep.subr.bf16.mxu0 0
      %2325 = vmatpush1.bf16.msra.mxu0 0
      %2326 = vmatprep.subr.bf16.mxu0 0
      %2327 = vmatpush1.bf16.msra.mxu0 0
      %2328 = vmatprep.subr.bf16.mxu0 0
      %2329 = vmatpush1.bf16.msra.mxu0 0
      %2330 = vmatprep.subr.bf16.mxu0 0
      %2331 = vmatpush1.bf16.msra.mxu0 0
      %2332 = vmatprep.subr.bf16.mxu0 0
      %2333 = vmatpush1.bf16.msra.mxu0 0
      %2334 = vmatprep.mubr.bf16.mxu0 0
      %2335 = vmatmul.mubr.bf16.gmra.mrb[0].mxu0 %v1013
      %v2336 = vpop.f32.mrb[0].mxu0
      %v2337 = vadd.f32 0.0, %v2336
      %v2338 = vpop.f32.mrb[0].mxu0
      %v2339 = vpop.f32.mrb[0].mxu0
      %v2340 = vadd.f32 0.0, %v2339
      %v2341 = vpop.f32.mrb[0].mxu0
      %2342 = vmatprep.mubr.bf16.mxu0 0
      %2343 = vmatmul.mubr.bf16.gmra.mrb[0].mxu0 %v1016
      %v2344 = vpop.f32.mrb[0].mxu0
      %v2345 = vadd.f32 0.0, %v2344
      %v2346 = vpop.f32.mrb[0].mxu0
      %v2347 = vpop.f32.mrb[0].mxu0
      %v2348 = vadd.f32 0.0, %v2347
      %v2349 = vpop.f32.mrb[0].mxu0
      %2350 = vmatprep.mubr.bf16.mxu0 0
      %2351 = vmatmul.mubr.bf16.gmra.mrb[0].mxu0 %v1019
      %v2352 = vpop.f32.mrb[0].mxu0
      %v2353 = vadd.f32 0.0, %v2352
      %v2354 = vpop.f32.mrb[0].mxu0
      %v2355 = vpop.f32.mrb[0].mxu0
      %v2356 = vadd.f32 0.0, %v2355
      %v2357 = vpop.f32.mrb[0].mxu0
      %2358 = vmatprep.mubr.bf16.mxu0 0
      %2359 = vmatmul.mubr.bf16.gmra.mrb[0].mxu0 %v1022
      %v2360 = vpop.f32.mrb[0].mxu0
      %v2361 = vadd.f32 0.0, %v2360
      %v2362 = vpop.f32.mrb[0].mxu0
      %v2363 = vpop.f32.mrb[0].mxu0
      %v2364 = vadd.f32 0.0, %v2363
      %v2365 = vpop.f32.mrb[0].mxu0
      %2366 = vmatprep.mubr.bf16.mxu0 0
      %2367 = vmatmul.mubr.bf16.gmra.mrb[0].mxu0 %v1025
      %v2368 = vpop.f32.mrb[0].mxu0
      %v2369 = vadd.f32 0.0, %v2368
      %v2370 = vpop.f32.mrb[0].mxu0
      %v2371 = vpop.f32.mrb[0].mxu0
      %v2372 = vadd.f32 0.0, %v2371
      %v2373 = vpop.f32.mrb[0].mxu0
      %2374 = vmatprep.mubr.bf16.mxu0 0
      %2375 = vmatmul.mubr.bf16.gmra.mrb[0].mxu0 %v1028
      %v2376 = vpop.f32.mrb[0].mxu0
      %v2377 = vadd.f32 0.0, %v2376
      %v2378 = vpop.f32.mrb[0].mxu0
      %v2379 = vpop.f32.mrb[0].mxu0
      %v2380 = vadd.f32 0.0, %v2379
      %v2381 = vpop.f32.mrb[0].mxu0
      %2382 = vmatprep.mubr.bf16.mxu0 0
      %2383 = vmatmul.mubr.bf16.gmra.mrb[0].mxu0 %v1031
      %v2384 = vpop.f32.mrb[0].mxu0
      %v2385 = vadd.f32 0.0, %v2384
      %v2386 = vpop.f32.mrb[0].mxu0
      %v2387 = vpop.f32.mrb[0].mxu0
      %v2388 = vadd.f32 0.0, %v2387
      %v2389 = vpop.f32.mrb[0].mxu0
      %2390 = vmatprep.mubr.bf16.mxu0 0
      %2391 = vmatmul.mubr.bf16.gmra.mrb[0].mxu0 %v1034
      %v2392 = vpop.f32.mrb[0].mxu0
      %v2393 = vadd.f32 0.0, %v2392
      %v2394 = vpop.f32.mrb[0].mxu0
      %v2395 = vpop.f32.mrb[0].mxu0
      %v2396 = vadd.f32 0.0, %v2395
      %v2397 = vpop.f32.mrb[0].mxu0
      %2398 = vmatprep.mubr.bf16.mxu0 0
      %2399 = vmatmul.mubr.bf16.gmra.mrb[0].mxu0 %v1037
      %v2400 = vpop.f32.mrb[0].mxu0
      %v2401 = vadd.f32 0.0, %v2400
      %v2402 = vpop.f32.mrb[0].mxu0
      %v2403 = vpop.f32.mrb[0].mxu0
      %v2404 = vadd.f32 0.0, %v2403
      %v2405 = vpop.f32.mrb[0].mxu0
      %2406 = vmatprep.mubr.bf16.mxu0 0
      %2407 = vmatmul.mubr.bf16.gmra.mrb[0].mxu0 %v1040
      %v2408 = vpop.f32.mrb[0].mxu0
      %v2409 = vadd.f32 0.0, %v2408
      %v2410 = vpop.f32.mrb[0].mxu0
      %v2411 = vpop.f32.mrb[0].mxu0
      %v2412 = vadd.f32 0.0, %v2411
      %v2413 = vpop.f32.mrb[0].mxu0
      %2414 = vmatprep.mubr.bf16.mxu0 0
      %2415 = vmatmul.mubr.bf16.gmra.mrb[0].mxu0 %v1043
      %v2416 = vpop.f32.mrb[0].mxu0
      %v2417 = vadd.f32 0.0, %v2416
      %v2418 = vpop.f32.mrb[0].mxu0
      %v2419 = vpop.f32.mrb[0].mxu0
      %v2420 = vadd.f32 0.0, %v2419
      %v2421 = vpop.f32.mrb[0].mxu0
      %2422 = vmatprep.mubr.bf16.mxu0 0
      %2423 = vmatmul.mubr.bf16.gmra.mrb[0].mxu0 %v1046
      %v2424 = vpop.f32.mrb[0].mxu0
      %v2425 = vadd.f32 0.0, %v2424
      %v2426 = vpop.f32.mrb[0].mxu0
      %v2427 = vpop.f32.mrb[0].mxu0
      %v2428 = vadd.f32 0.0, %v2427
      %v2429 = vpop.f32.mrb[0].mxu0
      %2430 = vmatprep.mubr.bf16.mxu0 0
      %2431 = vmatmul.mubr.bf16.gmra.mrb[0].mxu0 %v1049
      %v2432 = vpop.f32.mrb[0].mxu0
      %v2433 = vadd.f32 0.0, %v2432
      %v2434 = vpop.f32.mrb[0].mxu0
      %v2435 = vpop.f32.mrb[0].mxu0
      %v2436 = vadd.f32 0.0, %v2435
      %v2437 = vpop.f32.mrb[0].mxu0
      %2438 = vmatprep.mubr.bf16.mxu0 0
      %2439 = vmatmul.mubr.bf16.gmra.mrb[0].mxu0 %v1052
      %v2440 = vpop.f32.mrb[0].mxu0
      %v2441 = vadd.f32 0.0, %v2440
      %v2442 = vpop.f32.mrb[0].mxu0
      %v2443 = vpop.f32.mrb[0].mxu0
      %v2444 = vadd.f32 0.0, %v2443
      %v2445 = vpop.f32.mrb[0].mxu0
      %2446 = vmatprep.mubr.bf16.mxu0 0
      %2447 = vmatmul.mubr.bf16.gmra.mrb[0].mxu0 %v1651
      %v2448 = vpop.f32.mrb[0].mxu0
      %v2449 = vadd.f32 0.0, %v2448
      %v2450 = vpop.f32.mrb[0].mxu0
      %v2451 = vpop.f32.mrb[0].mxu0
      %v2452 = vadd.f32 0.0, %v2451
      %v2453 = vpop.f32.mrb[0].mxu0
      %2454 = vmatprep.mubr.bf16.mxu0 0
      %2455 = vmatmul.mubr.bf16.gmra.mrb[0].mxu0 %v2297
      %v2456 = vpop.f32.mrb[0].mxu0
      %v2457 = vadd.f32 0.0, %v2456
      %v2458 = vpop.f32.mrb[0].mxu0
      %v2459 = vpop.f32.mrb[0].mxu0
      %v2460 = vadd.f32 0.0, %v2459
      %v2461 = vpop.f32.mrb[0].mxu0
      %2462 = vdwg.mxu0
      %v2463 = vadd.f32 %v2257, %v2337
      %v2464 = vadd.f32 %v2258, %v2340
      %v2465 = vadd.f32 %v2259, %v2345
      %v2466 = vadd.f32 %v2260, %v2348
      %v2467 = vadd.f32 %v2261, %v2353
      %v2468 = vadd.f32 %v2262, %v2356
      %v2469 = vadd.f32 %v2263, %v2361
      %v2470 = vadd.f32 %v2264, %v2364
      %v2471 = vadd.f32 %v2265, %v2369
      %v2472 = vadd.f32 %v2266, %v2372
      %v2473 = vadd.f32 %v2267, %v2377
      %v2474 = vadd.f32 %v2268, %v2380
      %v2475 = vadd.f32 %v2269, %v2385
      %v2476 = vadd.f32 %v2270, %v2388
      %v2477 = vadd.f32 %v2271, %v2393
      %v2478 = vadd.f32 %v2272, %v2396
      %v2479 = vadd.f32 %v2273, %v2401
      %v2480 = vadd.f32 %v2274, %v2404
      %v2481 = vadd.f32 %v2275, %v2409
      %v2482 = vadd.f32 %v2276, %v2412
      %v2483 = vadd.f32 %v2277, %v2417
      %v2484 = vadd.f32 %v2278, %v2420
      %v2485 = vadd.f32 %v2279, %v2425
      %v2486 = vadd.f32 %v2280, %v2428
      %v2487 = vadd.f32 %v2281, %v2433
      %v2488 = vadd.f32 %v2282, %v2436
      %v2489 = vadd.f32 %v2283, %v2441
      %v2490 = vadd.f32 %v2284, %v2444
      %v2491 = vadd.f32 %v2285, %v2449
      %v2492 = vadd.f32 %v2286, %v2452
      %v2493 = vadd.f32 %v2287, %v2457
      %v2494 = vadd.f32 %v2288, %v2460
      %v2496 = vshrl.u32 %v271, 16
      %v2498 = vrot.slane %v2496, 4
      %v2499 = vshll.u32 %v271, 16
      %v2501 = vrot.slane %v2499, 5
      %v2502 = vor.u32 %v2498, %v2501
      %v2503 = vrot.slane %v2502, 4
      %v2505 = vshll.u32 %v272, 16
      %v2507 = vrot.slane %v2505, 5
      %v2508 = vsel %vm277, %v2503, %v2507
      %v2509 = vshrl.u32 %v272, 16
      %v2511 = vrot.slane %v2509, 4
      %v2512 = vor.u32 %v2511, %v2507
      %v2513 = vrot.slane %v2512, 4
      %v2515 = vshll.u32 %v273, 16
      %v2517 = vrot.slane %v2515, 5
      %v2518 = vsel %vm277, %v2513, %v2517
      %s2519 = scalar_lea.vmem %s1, 28
      %v2520 = vld [vmem:[%s2519] sm:$0xf]
      %v2521 = vunpack.c.l.b16 %v2508
      %v2522 = vunpack.c.l.b16 %v2518
      %v2523 = vpack.c.b16 %v2522, %v2521
      %v2525 = vsel %vm712, %v2523, 0
      %v2528 = vsel %vm761, %v2520, 0
      %2530 = vmatprep.subr.bf16.mxu0 0
      %2531 = vmatpush1.bf16.msra.mxu0 %v2528
      %2532 = vmatprep.subr.bf16.mxu0 0
      %2533 = vmatpush1.bf16.msra.mxu0 0
      %2534 = vmatprep.subr.bf16.mxu0 0
      %2535 = vmatpush1.bf16.msra.mxu0 0
      %2536 = vmatprep.subr.bf16.mxu0 0
      %2537 = vmatpush1.bf16.msra.mxu0 0
      %2538 = vmatprep.subr.bf16.mxu0 0
      %2539 = vmatpush1.bf16.msra.mxu0 0
      %2540 = vmatprep.subr.bf16.mxu0 0
      %2541 = vmatpush1.bf16.msra.mxu0 0
      %2542 = vmatprep.subr.bf16.mxu0 0
      %2543 = vmatpush1.bf16.msra.mxu0 0
      %2544 = vmatprep.subr.bf16.mxu0 0
      %2545 = vmatpush1.bf16.msra.mxu0 0
      %2546 = vmatprep.subr.bf16.mxu0 0
      %2547 = vmatpush1.bf16.msra.mxu0 0
      %2548 = vmatprep.subr.bf16.mxu0 0
      %2549 = vmatpush1.bf16.msra.mxu0 0
      %2550 = vmatprep.subr.bf16.mxu0 0
      %2551 = vmatpush1.bf16.msra.mxu0 0
      %2552 = vmatprep.subr.bf16.mxu0 0
      %2553 = vmatpush1.bf16.msra.mxu0 0
      %2554 = vmatprep.subr.bf16.mxu0 0
      %2555 = vmatpush1.bf16.msra.mxu0 0
      %2556 = vmatprep.subr.bf16.mxu0 0
      %2557 = vmatpush1.bf16.msra.mxu0 0
      %2558 = vmatprep.subr.bf16.mxu0 0
      %2559 = vmatpush1.bf16.msra.mxu0 0
      %2560 = vmatprep.subr.bf16.mxu0 0
      %2561 = vmatpush1.bf16.msra.mxu0 0
      %2562 = vmatprep.mubr.bf16.mxu0 0
      %2563 = vmatmul.mubr.bf16.gmra.mrb[0].mxu0 %v720
      %v2564 = vpop.f32.mrb[0].mxu0
      %v2565 = vadd.f32 0.0, %v2564
      %v2566 = vpop.f32.mrb[0].mxu0
      %v2567 = vpop.f32.mrb[0].mxu0
      %v2568 = vadd.f32 0.0, %v2567
      %v2569 = vpop.f32.mrb[0].mxu0
      %2570 = vmatprep.mubr.bf16.mxu0 0
      %2571 = vmatmul.mubr.bf16.gmra.mrb[0].mxu0 %v723
      %v2572 = vpop.f32.mrb[0].mxu0
      %v2573 = vadd.f32 0.0, %v2572
      %v2574 = vpop.f32.mrb[0].mxu0
      %v2575 = vpop.f32.mrb[0].mxu0
      %v2576 = vadd.f32 0.0, %v2575
      %v2577 = vpop.f32.mrb[0].mxu0
      %2578 = vmatprep.mubr.bf16.mxu0 0
      %2579 = vmatmul.mubr.bf16.gmra.mrb[0].mxu0 %v726
      %v2580 = vpop.f32.mrb[0].mxu0
      %v2581 = vadd.f32 0.0, %v2580
      %v2582 = vpop.f32.mrb[0].mxu0
      %v2583 = vpop.f32.mrb[0].mxu0
      %v2584 = vadd.f32 0.0, %v2583
      %v2585 = vpop.f32.mrb[0].mxu0
      %2586 = vmatprep.mubr.bf16.mxu0 0
      %2587 = vmatmul.mubr.bf16.gmra.mrb[0].mxu0 %v729
      %v2588 = vpop.f32.mrb[0].mxu0
      %v2589 = vadd.f32 0.0, %v2588
      %v2590 = vpop.f32.mrb[0].mxu0
      %v2591 = vpop.f32.mrb[0].mxu0
      %v2592 = vadd.f32 0.0, %v2591
      %v2593 = vpop.f32.mrb[0].mxu0
      %2594 = vmatprep.mubr.bf16.mxu0 0
      %2595 = vmatmul.mubr.bf16.gmra.mrb[0].mxu0 %v732
      %v2596 = vpop.f32.mrb[0].mxu0
      %v2597 = vadd.f32 0.0, %v2596
      %v2598 = vpop.f32.mrb[0].mxu0
      %v2599 = vpop.f32.mrb[0].mxu0
      %v2600 = vadd.f32 0.0, %v2599
      %v2601 = vpop.f32.mrb[0].mxu0
      %2602 = vmatprep.mubr.bf16.mxu0 0
      %2603 = vmatmul.mubr.bf16.gmra.mrb[0].mxu0 %v735
      %v2604 = vpop.f32.mrb[0].mxu0
      %v2605 = vadd.f32 0.0, %v2604
      %v2606 = vpop.f32.mrb[0].mxu0
      %v2607 = vpop.f32.mrb[0].mxu0
      %v2608 = vadd.f32 0.0, %v2607
      %v2609 = vpop.f32.mrb[0].mxu0
      %2610 = vmatprep.mubr.bf16.mxu0 0
      %2611 = vmatmul.mubr.bf16.gmra.mrb[0].mxu0 %v738
      %v2612 = vpop.f32.mrb[0].mxu0
      %v2613 = vadd.f32 0.0, %v2612
      %v2614 = vpop.f32.mrb[0].mxu0
      %v2615 = vpop.f32.mrb[0].mxu0
      %v2616 = vadd.f32 0.0, %v2615
      %v2617 = vpop.f32.mrb[0].mxu0
      %2618 = vmatprep.mubr.bf16.mxu0 0
      %2619 = vmatmul.mubr.bf16.gmra.mrb[0].mxu0 %v741
      %v2620 = vpop.f32.mrb[0].mxu0
      %v2621 = vadd.f32 0.0, %v2620
      %v2622 = vpop.f32.mrb[0].mxu0
      %v2623 = vpop.f32.mrb[0].mxu0
      %v2624 = vadd.f32 0.0, %v2623
      %v2625 = vpop.f32.mrb[0].mxu0
      %2626 = vmatprep.mubr.bf16.mxu0 0
      %2627 = vmatmul.mubr.bf16.gmra.mrb[0].mxu0 %v744
      %v2628 = vpop.f32.mrb[0].mxu0
      %v2629 = vadd.f32 0.0, %v2628
      %v2630 = vpop.f32.mrb[0].mxu0
      %v2631 = vpop.f32.mrb[0].mxu0
      %v2632 = vadd.f32 0.0, %v2631
      %v2633 = vpop.f32.mrb[0].mxu0
      %2634 = vmatprep.mubr.bf16.mxu0 0
      %2635 = vmatmul.mubr.bf16.gmra.mrb[0].mxu0 %v747
      %v2636 = vpop.f32.mrb[0].mxu0
      %v2637 = vadd.f32 0.0, %v2636
      %v2638 = vpop.f32.mrb[0].mxu0
      %v2639 = vpop.f32.mrb[0].mxu0
      %v2640 = vadd.f32 0.0, %v2639
      %v2641 = vpop.f32.mrb[0].mxu0
      %2642 = vmatprep.mubr.bf16.mxu0 0
      %2643 = vmatmul.mubr.bf16.gmra.mrb[0].mxu0 %v750
      %v2644 = vpop.f32.mrb[0].mxu0
      %v2645 = vadd.f32 0.0, %v2644
      %v2646 = vpop.f32.mrb[0].mxu0
      %v2647 = vpop.f32.mrb[0].mxu0
      %v2648 = vadd.f32 0.0, %v2647
      %v2649 = vpop.f32.mrb[0].mxu0
      %2650 = vmatprep.mubr.bf16.mxu0 0
      %2651 = vmatmul.mubr.bf16.gmra.mrb[0].mxu0 %v753
      %v2652 = vpop.f32.mrb[0].mxu0
      %v2653 = vadd.f32 0.0, %v2652
      %v2654 = vpop.f32.mrb[0].mxu0
      %v2655 = vpop.f32.mrb[0].mxu0
      %v2656 = vadd.f32 0.0, %v2655
      %v2657 = vpop.f32.mrb[0].mxu0
      %2658 = vmatprep.mubr.bf16.mxu0 0
      %2659 = vmatmul.mubr.bf16.gmra.mrb[0].mxu0 %v756
      %v2660 = vpop.f32.mrb[0].mxu0
      %v2661 = vadd.f32 0.0, %v2660
      %v2662 = vpop.f32.mrb[0].mxu0
      %v2663 = vpop.f32.mrb[0].mxu0
      %v2664 = vadd.f32 0.0, %v2663
      %v2665 = vpop.f32.mrb[0].mxu0
      %2666 = vmatprep.mubr.bf16.mxu0 0
      %2667 = vmatmul.mubr.bf16.gmra.mrb[0].mxu0 %v759
      %v2668 = vpop.f32.mrb[0].mxu0
      %v2669 = vadd.f32 0.0, %v2668
      %v2670 = vpop.f32.mrb[0].mxu0
      %v2671 = vpop.f32.mrb[0].mxu0
      %v2672 = vadd.f32 0.0, %v2671
      %v2673 = vpop.f32.mrb[0].mxu0
      %2674 = vmatprep.mubr.bf16.mxu0 0
      %2675 = vmatmul.mubr.bf16.gmra.mrb[0].mxu0 %v1879
      %v2676 = vpop.f32.mrb[0].mxu0
      %v2677 = vadd.f32 0.0, %v2676
      %v2678 = vpop.f32.mrb[0].mxu0
      %v2679 = vpop.f32.mrb[0].mxu0
      %v2680 = vadd.f32 0.0, %v2679
      %v2681 = vpop.f32.mrb[0].mxu0
      %2682 = vmatprep.mubr.bf16.mxu0 0
      %2683 = vmatmul.mubr.bf16.gmra.mrb[0].mxu0 %v2525
      %v2684 = vpop.f32.mrb[0].mxu0
      %v2685 = vadd.f32 0.0, %v2684
      %v2686 = vpop.f32.mrb[0].mxu0
      %v2687 = vpop.f32.mrb[0].mxu0
      %v2688 = vadd.f32 0.0, %v2687
      %v2689 = vpop.f32.mrb[0].mxu0
      %2690 = vdwg.mxu0
      %v2691 = vadd.f32 %v2463, %v2565
      %v2692 = vadd.f32 %v2464, %v2568
      %v2693 = vadd.f32 %v2465, %v2573
      %v2694 = vadd.f32 %v2466, %v2576
      %v2695 = vadd.f32 %v2467, %v2581
      %v2696 = vadd.f32 %v2468, %v2584
      %v2697 = vadd.f32 %v2469, %v2589
      %v2698 = vadd.f32 %v2470, %v2592
      %v2699 = vadd.f32 %v2471, %v2597
      %v2700 = vadd.f32 %v2472, %v2600
      %v2701 = vadd.f32 %v2473, %v2605
      %v2702 = vadd.f32 %v2474, %v2608
      %v2703 = vadd.f32 %v2475, %v2613
      %v2704 = vadd.f32 %v2476, %v2616
      %v2705 = vadd.f32 %v2477, %v2621
      %v2706 = vadd.f32 %v2478, %v2624
      %v2707 = vadd.f32 %v2479, %v2629
      %v2708 = vadd.f32 %v2480, %v2632
      %v2709 = vadd.f32 %v2481, %v2637
      %v2710 = vadd.f32 %v2482, %v2640
      %v2711 = vadd.f32 %v2483, %v2645
      %v2712 = vadd.f32 %v2484, %v2648
      %v2713 = vadd.f32 %v2485, %v2653
      %v2714 = vadd.f32 %v2486, %v2656
      %v2715 = vadd.f32 %v2487, %v2661
      %v2716 = vadd.f32 %v2488, %v2664
      %v2717 = vadd.f32 %v2489, %v2669
      %v2718 = vadd.f32 %v2490, %v2672
      %v2719 = vadd.f32 %v2491, %v2677
      %v2720 = vadd.f32 %v2492, %v2680
      %v2721 = vadd.f32 %v2493, %v2685
      %v2722 = vadd.f32 %v2494, %v2688
      %v2724 = vrot.slane %v271, 5
      %v2725 = vrot.slane %v2724, 4
      %v2726 = vrot.slane %v272, 5
      %v2727 = vsel %vm1236, %v2725, %v2726
      %v2728 = vrot.slane %v2726, 4
      %v2729 = vrot.slane %v273, 5
      %v2730 = vsel %vm1236, %v2728, %v2729
      %s2731 = scalar_lea.vmem %s1, 32
      %v2732 = vld [vmem:[%s2731] sm:$0xf]
      %v2733 = vunpack.c.l.b16 %v2727
      %v2734 = vunpack.c.l.b16 %v2730
      %v2735 = vpack.c.b16 %v2734, %v2733
      %v2737 = vsel %vm712, %v2735, 0
      %v2740 = vsel %vm761, %v2732, 0
      %2742 = vmatprep.subr.bf16.mxu0 0
      %2743 = vmatpush1.bf16.msra.mxu0 %v2740
      %2744 = vmatprep.subr.bf16.mxu0 0
      %2745 = vmatpush1.bf16.msra.mxu0 0
      %2746 = vmatprep.subr.bf16.mxu0 0
      %2747 = vmatpush1.bf16.msra.mxu0 0
      %2748 = vmatprep.subr.bf16.mxu0 0
      %2749 = vmatpush1.bf16.msra.mxu0 0
      %2750 = vmatprep.subr.bf16.mxu0 0
      %2751 = vmatpush1.bf16.msra.mxu0 0
      %2752 = vmatprep.subr.bf16.mxu0 0
      %2753 = vmatpush1.bf16.msra.mxu0 0
      %2754 = vmatprep.subr.bf16.mxu0 0
      %2755 = vmatpush1.bf16.msra.mxu0 0
      %2756 = vmatprep.subr.bf16.mxu0 0
      %2757 = vmatpush1.bf16.msra.mxu0 0
      %2758 = vmatprep.subr.bf16.mxu0 0
      %2759 = vmatpush1.bf16.msra.mxu0 0
      %2760 = vmatprep.subr.bf16.mxu0 0
      %2761 = vmatpush1.bf16.msra.mxu0 0
      %2762 = vmatprep.subr.bf16.mxu0 0
      %2763 = vmatpush1.bf16.msra.mxu0 0
      %2764 = vmatprep.subr.bf16.mxu0 0
      %2765 = vmatpush1.bf16.msra.mxu0 0
      %2766 = vmatprep.subr.bf16.mxu0 0
      %2767 = vmatpush1.bf16.msra.mxu0 0
      %2768 = vmatprep.subr.bf16.mxu0 0
      %2769 = vmatpush1.bf16.msra.mxu0 0
      %2770 = vmatprep.subr.bf16.mxu0 0
      %2771 = vmatpush1.bf16.msra.mxu0 0
      %2772 = vmatprep.subr.bf16.mxu0 0
      %2773 = vmatpush1.bf16.msra.mxu0 0
      %2774 = vmatprep.mubr.bf16.mxu0 0
      %2775 = vmatmul.mubr.bf16.gmra.mrb[0].mxu0 %v1406
      %v2776 = vpop.f32.mrb[0].mxu0
      %v2777 = vadd.f32 0.0, %v2776
      %v2778 = vpop.f32.mrb[0].mxu0
      %v2779 = vpop.f32.mrb[0].mxu0
      %v2780 = vadd.f32 0.0, %v2779
      %v2781 = vpop.f32.mrb[0].mxu0
      %2782 = vmatprep.mubr.bf16.mxu0 0
      %2783 = vmatmul.mubr.bf16.gmra.mrb[0].mxu0 %v1409
      %v2784 = vpop.f32.mrb[0].mxu0
      %v2785 = vadd.f32 0.0, %v2784
      %v2786 = vpop.f32.mrb[0].mxu0
      %v2787 = vpop.f32.mrb[0].mxu0
      %v2788 = vadd.f32 0.0, %v2787
      %v2789 = vpop.f32.mrb[0].mxu0
      %2790 = vmatprep.mubr.bf16.mxu0 0
      %2791 = vmatmul.mubr.bf16.gmra.mrb[0].mxu0 %v1412
      %v2792 = vpop.f32.mrb[0].mxu0
      %v2793 = vadd.f32 0.0, %v2792
      %v2794 = vpop.f32.mrb[0].mxu0
      %v2795 = vpop.f32.mrb[0].mxu0
      %v2796 = vadd.f32 0.0, %v2795
      %v2797 = vpop.f32.mrb[0].mxu0
      %2798 = vmatprep.mubr.bf16.mxu0 0
      %2799 = vmatmul.mubr.bf16.gmra.mrb[0].mxu0 %v1415
      %v2800 = vpop.f32.mrb[0].mxu0
      %v2801 = vadd.f32 0.0, %v2800
      %v2802 = vpop.f32.mrb[0].mxu0
      %v2803 = vpop.f32.mrb[0].mxu0
      %v2804 = vadd.f32 0.0, %v2803
      %v2805 = vpop.f32.mrb[0].mxu0
      %2806 = vmatprep.mubr.bf16.mxu0 0
      %2807 = vmatmul.mubr.bf16.gmra.mrb[0].mxu0 %v1418
      %v2808 = vpop.f32.mrb[0].mxu0
      %v2809 = vadd.f32 0.0, %v2808
      %v2810 = vpop.f32.mrb[0].mxu0
      %v2811 = vpop.f32.mrb[0].mxu0
      %v2812 = vadd.f32 0.0, %v2811
      %v2813 = vpop.f32.mrb[0].mxu0
      %2814 = vmatprep.mubr.bf16.mxu0 0
      %2815 = vmatmul.mubr.bf16.gmra.mrb[0].mxu0 %v1421
      %v2816 = vpop.f32.mrb[0].mxu0
      %v2817 = vadd.f32 0.0, %v2816
      %v2818 = vpop.f32.mrb[0].mxu0
      %v2819 = vpop.f32.mrb[0].mxu0
      %v2820 = vadd.f32 0.0, %v2819
      %v2821 = vpop.f32.mrb[0].mxu0
      %2822 = vmatprep.mubr.bf16.mxu0 0
      %2823 = vmatmul.mubr.bf16.gmra.mrb[0].mxu0 %v1424
      %v2824 = vpop.f32.mrb[0].mxu0
      %v2825 = vadd.f32 0.0, %v2824
      %v2826 = vpop.f32.mrb[0].mxu0
      %v2827 = vpop.f32.mrb[0].mxu0
      %v2828 = vadd.f32 0.0, %v2827
      %v2829 = vpop.f32.mrb[0].mxu0
      %2830 = vmatprep.mubr.bf16.mxu0 0
      %2831 = vmatmul.mubr.bf16.gmra.mrb[0].mxu0 %v1427
      %v2832 = vpop.f32.mrb[0].mxu0
      %v2833 = vadd.f32 0.0, %v2832
      %v2834 = vpop.f32.mrb[0].mxu0
      %v2835 = vpop.f32.mrb[0].mxu0
      %v2836 = vadd.f32 0.0, %v2835
      %v2837 = vpop.f32.mrb[0].mxu0
      %2838 = vmatprep.mubr.bf16.mxu0 0
      %2839 = vmatmul.mubr.bf16.gmra.mrb[0].mxu0 %v1430
      %v2840 = vpop.f32.mrb[0].mxu0
      %v2841 = vadd.f32 0.0, %v2840
      %v2842 = vpop.f32.mrb[0].mxu0
      %v2843 = vpop.f32.mrb[0].mxu0
      %v2844 = vadd.f32 0.0, %v2843
      %v2845 = vpop.f32.mrb[0].mxu0
      %2846 = vmatprep.mubr.bf16.mxu0 0
      %2847 = vmatmul.mubr.bf16.gmra.mrb[0].mxu0 %v1433
      %v2848 = vpop.f32.mrb[0].mxu0
      %v2849 = vadd.f32 0.0, %v2848
      %v2850 = vpop.f32.mrb[0].mxu0
      %v2851 = vpop.f32.mrb[0].mxu0
      %v2852 = vadd.f32 0.0, %v2851
      %v2853 = vpop.f32.mrb[0].mxu0
      %2854 = vmatprep.mubr.bf16.mxu0 0
      %2855 = vmatmul.mubr.bf16.gmra.mrb[0].mxu0 %v1436
      %v2856 = vpop.f32.mrb[0].mxu0
      %v2857 = vadd.f32 0.0, %v2856
      %v2858 = vpop.f32.mrb[0].mxu0
      %v2859 = vpop.f32.mrb[0].mxu0
      %v2860 = vadd.f32 0.0, %v2859
      %v2861 = vpop.f32.mrb[0].mxu0
      %2862 = vmatprep.mubr.bf16.mxu0 0
      %2863 = vmatmul.mubr.bf16.gmra.mrb[0].mxu0 %v1439
      %v2864 = vpop.f32.mrb[0].mxu0
      %v2865 = vadd.f32 0.0, %v2864
      %v2866 = vpop.f32.mrb[0].mxu0
      %v2867 = vpop.f32.mrb[0].mxu0
      %v2868 = vadd.f32 0.0, %v2867
      %v2869 = vpop.f32.mrb[0].mxu0
      %2870 = vmatprep.mubr.bf16.mxu0 0
      %2871 = vmatmul.mubr.bf16.gmra.mrb[0].mxu0 %v1442
      %v2872 = vpop.f32.mrb[0].mxu0
      %v2873 = vadd.f32 0.0, %v2872
      %v2874 = vpop.f32.mrb[0].mxu0
      %v2875 = vpop.f32.mrb[0].mxu0
      %v2876 = vadd.f32 0.0, %v2875
      %v2877 = vpop.f32.mrb[0].mxu0
      %2878 = vmatprep.mubr.bf16.mxu0 0
      %2879 = vmatmul.mubr.bf16.gmra.mrb[0].mxu0 %v1445
      %v2880 = vpop.f32.mrb[0].mxu0
      %v2881 = vadd.f32 0.0, %v2880
      %v2882 = vpop.f32.mrb[0].mxu0
      %v2883 = vpop.f32.mrb[0].mxu0
      %v2884 = vadd.f32 0.0, %v2883
      %v2885 = vpop.f32.mrb[0].mxu0
      %2886 = vmatprep.mubr.bf16.mxu0 0
      %2887 = vmatmul.mubr.bf16.gmra.mrb[0].mxu0 %v2091
      %v2888 = vpop.f32.mrb[0].mxu0
      %v2889 = vadd.f32 0.0, %v2888
      %v2890 = vpop.f32.mrb[0].mxu0
      %v2891 = vpop.f32.mrb[0].mxu0
      %v2892 = vadd.f32 0.0, %v2891
      %v2893 = vpop.f32.mrb[0].mxu0
      %2894 = vmatprep.mubr.bf16.mxu0 0
      %2895 = vmatmul.mubr.bf16.gmra.mrb[0].mxu0 %v2737
      %v2896 = vpop.f32.mrb[0].mxu0
      %v2897 = vadd.f32 0.0, %v2896
      %v2898 = vpop.f32.mrb[0].mxu0
      %v2899 = vpop.f32.mrb[0].mxu0
      %v2900 = vadd.f32 0.0, %v2899
      %v2901 = vpop.f32.mrb[0].mxu0
      %2902 = vdwg.mxu0
      %v2903 = vadd.f32 %v2691, %v2777
      %v2904 = vadd.f32 %v2692, %v2780
      %v2905 = vadd.f32 %v2693, %v2785
      %v2906 = vadd.f32 %v2694, %v2788
      %v2907 = vadd.f32 %v2695, %v2793
      %v2908 = vadd.f32 %v2696, %v2796
      %v2909 = vadd.f32 %v2697, %v2801
      %v2910 = vadd.f32 %v2698, %v2804
      %v2911 = vadd.f32 %v2699, %v2809
      %v2912 = vadd.f32 %v2700, %v2812
      %v2913 = vadd.f32 %v2701, %v2817
      %v2914 = vadd.f32 %v2702, %v2820
      %v2915 = vadd.f32 %v2703, %v2825
      %v2916 = vadd.f32 %v2704, %v2828
      %v2917 = vadd.f32 %v2705, %v2833
      %v2918 = vadd.f32 %v2706, %v2836
      %v2919 = vadd.f32 %v2707, %v2841
      %v2920 = vadd.f32 %v2708, %v2844
      %v2921 = vadd.f32 %v2709, %v2849
      %v2922 = vadd.f32 %v2710, %v2852
      %v2923 = vadd.f32 %v2711, %v2857
      %v2924 = vadd.f32 %v2712, %v2860
      %v2925 = vadd.f32 %v2713, %v2865
      %v2926 = vadd.f32 %v2714, %v2868
      %v2927 = vadd.f32 %v2715, %v2873
      %v2928 = vadd.f32 %v2716, %v2876
      %v2929 = vadd.f32 %v2717, %v2881
      %v2930 = vadd.f32 %v2718, %v2884
      %v2931 = vadd.f32 %v2719, %v2889
      %v2932 = vadd.f32 %v2720, %v2892
      %v2933 = vadd.f32 %v2721, %v2897
      %v2934 = vadd.f32 %v2722, %v2900
      %v2935 = vpack.c.bf16 %v2904, %v2903
      %v2936 = vpack.c.bf16 %v2906, %v2905
      %v2937 = vpack.c.bf16 %v2908, %v2907
      %v2938 = vpack.c.bf16 %v2910, %v2909
      %v2939 = vpack.c.bf16 %v2912, %v2911
      %v2940 = vpack.c.bf16 %v2914, %v2913
      %v2941 = vpack.c.bf16 %v2916, %v2915
      %v2942 = vpack.c.bf16 %v2918, %v2917
      %v2943 = vpack.c.bf16 %v2920, %v2919
      %v2944 = vpack.c.bf16 %v2922, %v2921
      %v2945 = vpack.c.bf16 %v2924, %v2923
      %v2946 = vpack.c.bf16 %v2926, %v2925
      %v2947 = vpack.c.bf16 %v2928, %v2927
      %v2948 = vpack.c.bf16 %v2930, %v2929
      %v2949 = vpack.c.bf16 %v2932, %v2931
      %v2950 = vpack.c.bf16 %v2934, %v2933
      %v2967 = vunpack.c.l.b16 %v2935
      %v2968 = vunpack.c.h.b16 %v2935
      %v2969 = vunpack.c.l.b16 %v2936
      %v2970 = vunpack.c.h.b16 %v2936
      %v2971 = vunpack.c.l.b16 %v2937
      %v2972 = vunpack.c.h.b16 %v2937
      %v2973 = vunpack.c.l.b16 %v2938
      %v2974 = vunpack.c.h.b16 %v2938
      %v2975 = vunpack.c.l.b16 %v2939
      %v2976 = vunpack.c.h.b16 %v2939
      %v2977 = vunpack.c.l.b16 %v2940
      %v2978 = vunpack.c.h.b16 %v2940
      %v2979 = vunpack.c.l.b16 %v2941
      %v2980 = vunpack.c.h.b16 %v2941
      %v2981 = vunpack.c.l.b16 %v2942
      %v2982 = vunpack.c.h.b16 %v2942
      %v2983 = vunpack.c.l.b16 %v2943
      %v2984 = vunpack.c.h.b16 %v2943
      %v2985 = vunpack.c.l.b16 %v2944
      %v2986 = vunpack.c.h.b16 %v2944
      %v2987 = vunpack.c.l.b16 %v2945
      %v2988 = vunpack.c.h.b16 %v2945
      %v2989 = vunpack.c.l.b16 %v2946
      %v2990 = vunpack.c.h.b16 %v2946
      %v2991 = vunpack.c.l.b16 %v2947
      %v2992 = vunpack.c.h.b16 %v2947
      %v2993 = vunpack.c.l.b16 %v2948
      %v2994 = vunpack.c.h.b16 %v2948
      %v2995 = vunpack.c.l.b16 %v2949
      %v2996 = vunpack.c.h.b16 %v2949
      %v2997 = vunpack.c.l.b16 %v2950
      %v2998 = vunpack.c.h.b16 %v2950
      %v2999 = vpack.c.b16 %v2967, %v2967
      %v3000 = vpack.c.b16 %v2968, %v2968
      %v3001 = vpack.c.b16 %v2969, %v2969
      %v3002 = vpack.c.b16 %v2970, %v2970
      %v3003 = vpack.c.b16 %v2971, %v2971
      %v3004 = vpack.c.b16 %v2972, %v2972
      %v3005 = vpack.c.b16 %v2973, %v2973
      %v3006 = vpack.c.b16 %v2974, %v2974
      %v3007 = vpack.c.b16 %v2975, %v2975
      %v3008 = vpack.c.b16 %v2976, %v2976
      %v3009 = vpack.c.b16 %v2977, %v2977
      %v3010 = vpack.c.b16 %v2978, %v2978
      %v3011 = vpack.c.b16 %v2979, %v2979
      %v3012 = vpack.c.b16 %v2980, %v2980
      %v3013 = vpack.c.b16 %v2981, %v2981
      %v3014 = vpack.c.b16 %v2982, %v2982
      %v3015 = vpack.c.b16 %v2983, %v2983
      %v3016 = vpack.c.b16 %v2984, %v2984
      %v3017 = vpack.c.b16 %v2985, %v2985
      %v3018 = vpack.c.b16 %v2986, %v2986
      %v3019 = vpack.c.b16 %v2987, %v2987
      %v3020 = vpack.c.b16 %v2988, %v2988
      %v3021 = vpack.c.b16 %v2989, %v2989
      %v3022 = vpack.c.b16 %v2990, %v2990
      %v3023 = vpack.c.b16 %v2991, %v2991
      %v3024 = vpack.c.b16 %v2992, %v2992
      %v3025 = vpack.c.b16 %v2993, %v2993
      %v3026 = vpack.c.b16 %v2994, %v2994
      %v3027 = vpack.c.b16 %v2995, %v2995
      %v3028 = vpack.c.b16 %v2996, %v2996
      %v3029 = vpack.c.b16 %v2997, %v2997
      %v3030 = vpack.c.b16 %v2998, %v2998
      %vm3063 = vcmask 60416
      %3064 = vst.msk [vmem:[%s206] sm:$0xf] %vm3063, %v2999
      %3065 = vst.msk [vmem:[%s206 + $0x4] sm:$0xf] %vm3063, %v3000
      %3066 = vst.msk [vmem:[%s206 + $0x8] sm:$0xf] %vm3063, %v3001
      %3067 = vst.msk [vmem:[%s206 + $0xc] sm:$0xf] %vm3063, %v3002
      %3068 = vst.msk [vmem:[%s206 + $0x10] sm:$0xf] %vm3063, %v3003
      %3069 = vst.msk [vmem:[%s206 + $0x14] sm:$0xf] %vm3063, %v3004
      %3070 = vst.msk [vmem:[%s206 + $0x18] sm:$0xf] %vm3063, %v3005
      %3071 = vst.msk [vmem:[%s206 + $0x1c] sm:$0xf] %vm3063, %v3006
      %3072 = vst.msk [vmem:[%s206 + $0x20] sm:$0xf] %vm3063, %v3007
      %3073 = vst.msk [vmem:[%s206 + $0x24] sm:$0xf] %vm3063, %v3008
      %3074 = vst.msk [vmem:[%s206 + $0x28] sm:$0xf] %vm3063, %v3009
      %3075 = vst.msk [vmem:[%s206 + $0x2c] sm:$0xf] %vm3063, %v3010
      %3076 = vst.msk [vmem:[%s206 + $0x30] sm:$0xf] %vm3063, %v3011
      %3077 = vst.msk [vmem:[%s206 + $0x34] sm:$0xf] %vm3063, %v3012
      %3078 = vst.msk [vmem:[%s206 + $0x38] sm:$0xf] %vm3063, %v3013
      %3079 = vst.msk [vmem:[%s206 + $0x3c] sm:$0xf] %vm3063, %v3014
      %3080 = vst.msk [vmem:[%s206 + $0x40] sm:$0xf] %vm3063, %v3015
      %3081 = vst.msk [vmem:[%s206 + $0x44] sm:$0xf] %vm3063, %v3016
      %3082 = vst.msk [vmem:[%s206 + $0x48] sm:$0xf] %vm3063, %v3017
      %3083 = vst.msk [vmem:[%s206 + $0x4c] sm:$0xf] %vm3063, %v3018
      %3084 = vst.msk [vmem:[%s206 + $0x50] sm:$0xf] %vm3063, %v3019
      %3085 = vst.msk [vmem:[%s206 + $0x54] sm:$0xf] %vm3063, %v3020
      %3086 = vst.msk [vmem:[%s206 + $0x58] sm:$0xf] %vm3063, %v3021
      %3087 = vst.msk [vmem:[%s206 + $0x5c] sm:$0xf] %vm3063, %v3022
      %3088 = vst.msk [vmem:[%s206 + $0x60] sm:$0xf] %vm3063, %v3023
      %3089 = vst.msk [vmem:[%s206 + $0x64] sm:$0xf] %vm3063, %v3024
      %3090 = vst.msk [vmem:[%s206 + $0x68] sm:$0xf] %vm3063, %v3025
      %3091 = vst.msk [vmem:[%s206 + $0x6c] sm:$0xf] %vm3063, %v3026
      %3092 = vst.msk [vmem:[%s206 + $0x70] sm:$0xf] %vm3063, %v3027
      %3093 = vst.msk [vmem:[%s206 + $0x74] sm:$0xf] %vm3063, %v3028
      %3094 = vst.msk [vmem:[%s206 + $0x78] sm:$0xf] %vm3063, %v3029
      %3095 = vst.msk [vmem:[%s206 + $0x7c] sm:$0xf] %vm3063, %v3030
      %v3096 = vsel %vm712, %v2903, 0.0
      %v3097 = vsel %vm712, %v2904, 0.0
      %v3098 = vadd.f32 %v3096, %v3097
      %v3099 = vsel %vm712, %v2905, 0.0
      %v3100 = vadd.f32 %v3098, %v3099
      %v3101 = vsel %vm712, %v2906, 0.0
      %v3102 = vadd.f32 %v3100, %v3101
      %v3103 = vsel %vm712, %v2907, 0.0
      %v3104 = vadd.f32 %v3102, %v3103
      %v3105 = vsel %vm712, %v2908, 0.0
      %v3106 = vadd.f32 %v3104, %v3105
      %v3107 = vsel %vm712, %v2909, 0.0
      %v3108 = vadd.f32 %v3106, %v3107
      %v3109 = vsel %vm712, %v2910, 0.0
      %v3110 = vadd.f32 %v3108, %v3109
      %v3111 = vsel %vm712, %v2911, 0.0
      %v3112 = vadd.f32 %v3110, %v3111
      %v3113 = vsel %vm712, %v2912, 0.0
      %v3114 = vadd.f32 %v3112, %v3113
      %v3115 = vsel %vm712, %v2913, 0.0
      %v3116 = vadd.f32 %v3114, %v3115
      %v3117 = vsel %vm712, %v2914, 0.0
      %v3118 = vadd.f32 %v3116, %v3117
      %v3119 = vsel %vm712, %v2915, 0.0
      %v3120 = vadd.f32 %v3118, %v3119
      %v3121 = vsel %vm712, %v2916, 0.0
      %v3122 = vadd.f32 %v3120, %v3121
      %v3123 = vsel %vm712, %v2917, 0.0
      %v3124 = vadd.f32 %v3122, %v3123
      %v3125 = vsel %vm712, %v2918, 0.0
      %v3126 = vadd.f32 %v3124, %v3125
      %v3127 = vsel %vm712, %v2919, 0.0
      %v3128 = vadd.f32 %v3126, %v3127
      %v3129 = vsel %vm712, %v2920, 0.0
      %v3130 = vadd.f32 %v3128, %v3129
      %v3131 = vsel %vm712, %v2921, 0.0
      %v3132 = vadd.f32 %v3130, %v3131
      %v3133 = vsel %vm712, %v2922, 0.0
      %v3134 = vadd.f32 %v3132, %v3133
      %v3135 = vsel %vm712, %v2923, 0.0
      %v3136 = vadd.f32 %v3134, %v3135
      %v3137 = vsel %vm712, %v2924, 0.0
      %v3138 = vadd.f32 %v3136, %v3137
      %v3139 = vsel %vm712, %v2925, 0.0
      %v3140 = vadd.f32 %v3138, %v3139
      %v3141 = vsel %vm712, %v2926, 0.0
      %v3142 = vadd.f32 %v3140, %v3141
      %v3143 = vsel %vm712, %v2927, 0.0
      %v3144 = vadd.f32 %v3142, %v3143
      %v3145 = vsel %vm712, %v2928, 0.0
      %v3146 = vadd.f32 %v3144, %v3145
      %v3147 = vsel %vm712, %v2929, 0.0
      %v3148 = vadd.f32 %v3146, %v3147
      %v3149 = vsel %vm712, %v2930, 0.0
      %v3150 = vadd.f32 %v3148, %v3149
      %v3151 = vsel %vm712, %v2931, 0.0
      %v3152 = vadd.f32 %v3150, %v3151
      %v3153 = vsel %vm712, %v2932, 0.0
      %v3154 = vadd.f32 %v3152, %v3153
      %v3155 = vsel %vm712, %v2933, 0.0
      %v3156 = vadd.f32 %v3154, %v3155
      %v3157 = vsel %vm712, %v2934, 0.0
      %v3158 = vadd.f32 %v3156, %v3157
      %v3159 = vrot.slane %v3158, 4
      %v3160 = vadd.f32 %v3158, %v3159
      %v3161 = vrot.slane %v3160, 2
      %v3162 = vadd.f32 %v3160, %v3161
      %v3163 = vrot.slane %v3162, 1
      %v3164 = vadd.f32 %v3162, %v3163
      %vm3165 = vcmask 57344
      %3166 = vst.msk [vmem:[%s214] sm:$0x1] %vm3165, %v3164
      %v3167 = vmul.f32 %v2903, %v2903
      %v3168 = vmul.f32 %v2904, %v2904
      %v3169 = vmul.f32 %v2905, %v2905
      %v3170 = vmul.f32 %v2906, %v2906
      %v3171 = vmul.f32 %v2907, %v2907
      %v3172 = vmul.f32 %v2908, %v2908
      %v3173 = vmul.f32 %v2909, %v2909
      %v3174 = vmul.f32 %v2910, %v2910
      %v3175 = vmul.f32 %v2911, %v2911
      %v3176 = vmul.f32 %v2912, %v2912
      %v3177 = vmul.f32 %v2913, %v2913
      %v3178 = vmul.f32 %v2914, %v2914
      %v3179 = vmul.f32 %v2915, %v2915
      %v3180 = vmul.f32 %v2916, %v2916
      %v3181 = vmul.f32 %v2917, %v2917
      %v3182 = vmul.f32 %v2918, %v2918
      %v3183 = vmul.f32 %v2919, %v2919
      %v3184 = vmul.f32 %v2920, %v2920
      %v3185 = vmul.f32 %v2921, %v2921
      %v3186 = vmul.f32 %v2922, %v2922
      %v3187 = vmul.f32 %v2923, %v2923
      %v3188 = vmul.f32 %v2924, %v2924
      %v3189 = vmul.f32 %v2925, %v2925
      %v3190 = vmul.f32 %v2926, %v2926
      %v3191 = vmul.f32 %v2927, %v2927
      %v3192 = vmul.f32 %v2928, %v2928
      %v3193 = vmul.f32 %v2929, %v2929
      %v3194 = vmul.f32 %v2930, %v2930
      %v3195 = vmul.f32 %v2931, %v2931
      %v3196 = vmul.f32 %v2932, %v2932
      %v3197 = vmul.f32 %v2933, %v2933
      %v3198 = vmul.f32 %v2934, %v2934
      %v3199 = vsel %vm712, %v3167, 0.0
      %v3200 = vsel %vm712, %v3168, 0.0
      %v3201 = vadd.f32 %v3199, %v3200
      %v3202 = vsel %vm712, %v3169, 0.0
      %v3203 = vadd.f32 %v3201, %v3202
      %v3204 = vsel %vm712, %v3170, 0.0
      %v3205 = vadd.f32 %v3203, %v3204
      %v3206 = vsel %vm712, %v3171, 0.0
      %v3207 = vadd.f32 %v3205, %v3206
      %v3208 = vsel %vm712, %v3172, 0.0
      %v3209 = vadd.f32 %v3207, %v3208
      %v3210 = vsel %vm712, %v3173, 0.0
      %v3211 = vadd.f32 %v3209, %v3210
      %v3212 = vsel %vm712, %v3174, 0.0
      %v3213 = vadd.f32 %v3211, %v3212
      %v3214 = vsel %vm712, %v3175, 0.0
      %v3215 = vadd.f32 %v3213, %v3214
      %v3216 = vsel %vm712, %v3176, 0.0
      %v3217 = vadd.f32 %v3215, %v3216
      %v3218 = vsel %vm712, %v3177, 0.0
      %v3219 = vadd.f32 %v3217, %v3218
      %v3220 = vsel %vm712, %v3178, 0.0
      %v3221 = vadd.f32 %v3219, %v3220
      %v3222 = vsel %vm712, %v3179, 0.0
      %v3223 = vadd.f32 %v3221, %v3222
      %v3224 = vsel %vm712, %v3180, 0.0
      %v3225 = vadd.f32 %v3223, %v3224
      %v3226 = vsel %vm712, %v3181, 0.0
      %v3227 = vadd.f32 %v3225, %v3226
      %v3228 = vsel %vm712, %v3182, 0.0
      %v3229 = vadd.f32 %v3227, %v3228
      %v3230 = vsel %vm712, %v3183, 0.0
      %v3231 = vadd.f32 %v3229, %v3230
      %v3232 = vsel %vm712, %v3184, 0.0
      %v3233 = vadd.f32 %v3231, %v3232
      %v3234 = vsel %vm712, %v3185, 0.0
      %v3235 = vadd.f32 %v3233, %v3234
      %v3236 = vsel %vm712, %v3186, 0.0
      %v3237 = vadd.f32 %v3235, %v3236
      %v3238 = vsel %vm712, %v3187, 0.0
      %v3239 = vadd.f32 %v3237, %v3238
      %v3240 = vsel %vm712, %v3188, 0.0
      %v3241 = vadd.f32 %v3239, %v3240
      %v3242 = vsel %vm712, %v3189, 0.0
      %v3243 = vadd.f32 %v3241, %v3242
      %v3244 = vsel %vm712, %v3190, 0.0
      %v3245 = vadd.f32 %v3243, %v3244
      %v3246 = vsel %vm712, %v3191, 0.0
      %v3247 = vadd.f32 %v3245, %v3246
      %v3248 = vsel %vm712, %v3192, 0.0
      %v3249 = vadd.f32 %v3247, %v3248
      %v3250 = vsel %vm712, %v3193, 0.0
      %v3251 = vadd.f32 %v3249, %v3250
      %v3252 = vsel %vm712, %v3194, 0.0
      %v3253 = vadd.f32 %v3251, %v3252
      %v3254 = vsel %vm712, %v3195, 0.0
      %v3255 = vadd.f32 %v3253, %v3254
      %v3256 = vsel %vm712, %v3196, 0.0
      %v3257 = vadd.f32 %v3255, %v3256
      %v3258 = vsel %vm712, %v3197, 0.0
      %v3259 = vadd.f32 %v3257, %v3258
      %v3260 = vsel %vm712, %v3198, 0.0
      %v3261 = vadd.f32 %v3259, %v3260
      %v3262 = vrot.slane %v3261, 4
      %v3263 = vadd.f32 %v3261, %v3262
      %v3264 = vrot.slane %v3263, 2
      %v3265 = vadd.f32 %v3263, %v3264
      %v3266 = vrot.slane %v3265, 1
      %v3267 = vadd.f32 %v3265, %v3266
      %3268 = vst.msk [vmem:[%s214 + $0x1] sm:$0x1] %vm3165, %v3267
      %s3269 = smul.u32 16, %s20
      %p3270 = scmp.lt.s32.totalorder %s19, 1
      %s3271 = scalar_select %p3270, %s19, 1
      %p3272 = scmp.lt.s32.totalorder %s3269, 15
      %s3273 = scalar_select %p3272, %s3269, 15
      %s3274 = smul.addr %s3273, 2
      %s3275 = smul.addr %s3271, 32
      %s3276 = sadd.s32 %s3274, %s3275
      %s3277 = smul.addr %s3276, 4
      %s3278 = scalar_lea.vmem %s2, %s3277
      %p3279 = scmp.lt.s32.totalorder %s19, 1
      %s3280 = scalar_select %p3279, %s19, 1
      %p3281 = scmp.lt.s32.totalorder %s20, 0
      %s3282 = scalar_select %p3281, %s20, 0
      %s3283 = sadd.s32 %s3282, %s3280
      %s3284 = smul.addr %s3283, 2
      %s3285 = scalar_lea.vmem %s3, %s3284
      // Predicated region
      $region29: #{dis_block_forward.3} parent=27 // pred_check
        %p3286 = pneg %p94
      $region30: #{dis_block_forward.3} parent=27 // pred_check_branch
        %3288 = sbr.rel (%p3286) target = $region32
      $region31: #{dis_block_forward.3} parent=27 // pred_region
        %s3289 = smul.u32 16, %s20
      $region32: #{dis_block_forward.3} parent=27 // pred_fallthru
        _
      // Predicated region
      $region33: #{dis_block_forward.3} parent=27 // pred_check
        %p3290 = pneg %p122
      $region34: #{dis_block_forward.3} parent=27 // pred_check_branch
        %3292 = sbr.rel (%p3290) target = $region36
      $region35: #{dis_block_forward.3} parent=27 // pred_region
        _
      $region36: #{dis_block_forward.3} parent=27 // pred_fallthru
        _
    $region28: #{dis_block_forward.3} parent=5 // pred_fallthru
      _
    %p3293 = scmp.le.s32.totalorder 2, %s10
    // Predicated region
    $region37: #{dis_block_forward.3} parent=5 // pred_check
      %p3294 = pneg %p3293
    $region38: #{dis_block_forward.3} parent=5 // pred_check_branch
      %3296 = sbr.rel (%p3294) target = $region40
    $region39: #{dis_block_forward.3} parent=5 // pred_region
      %s3297 = ssub.s32 %s10, 2
      // Predicated region
      $region41: #{dis_block_forward.3} parent=39 // pred_check
        %p3298 = pneg %p100
      $region42: #{dis_block_forward.3} parent=39 // pred_check_branch
        %3300 = sbr.rel (%p3298) target = $region44
      $region43: #{dis_block_forward.3} parent=39 // pred_region
        %s3301 = smul.u32 16, %s22
        %p3302 = scmp.lt.s32.totalorder %s21, 1
        %s3303 = scalar_select %p3302, %s21, 1
        %p3304 = scmp.lt.s32.totalorder %s3301, 15
        %s3305 = scalar_select %p3304, %s3301, 15
        %s3306 = smul.addr %s3305, 2
        %s3307 = smul.addr %s3303, 32
        %s3308 = sadd.s32 %s3306, %s3307
        %s3309 = smul.addr %s3308, 4
        %s3310 = scalar_lea.vmem %s2, %s3309
      $region44: #{dis_block_forward.3} parent=39 // pred_fallthru
        _
      // Predicated region
      $region45: #{dis_block_forward.3} parent=39 // pred_check
        %p3311 = pneg %p128
      $region46: #{dis_block_forward.3} parent=39 // pred_check_branch
        %3313 = sbr.rel (%p3311) target = $region48
      $region47: #{dis_block_forward.3} parent=39 // pred_region
        %p3314 = scmp.lt.s32.totalorder %s21, 1
        %s3315 = scalar_select %p3314, %s21, 1
        %p3316 = scmp.lt.s32.totalorder %s22, 0
        %s3317 = scalar_select %p3316, %s22, 0
        %s3318 = sadd.s32 %s3317, %s3315
        %s3319 = smul.addr %s3318, 2
        %s3320 = scalar_lea.vmem %s3, %s3319
      $region48: #{dis_block_forward.3} parent=39 // pred_fallthru
        _
    $region40: #{dis_block_forward.3} parent=5 // pred_fallthru
      _
  $region6: #{dis_block_forward.3} parent=0 // loop_footer
    %s14 = sadd.s32 1, %s10
  $region7: #{dis_block_forward.3} parent=0 // loop_footer_branch
    %9 = sbr.rel target = $region3
  $region8: #{dis_block_forward.3} parent=0 // loop_exit
    _

</llo_original>
